<compile_context>
chip_gen: v6e
topology: v6e:2x2x1
jax: 0.10.0
libtpu: 0.0.40
codegen_flags: <defaults>
</compile_context>

<pallas_src>
import functools

import jax
import jax.numpy as jnp
from jax.experimental import pallas as pl
from jax.experimental.pallas import tpu as pltpu


# modality_idx -> (conv1 out channels, conv2 out channels), per the PyTorch module.
_CHANNELS = {0: (3, 6), 1: (3, 6), 2: (3, 6),
             3: (4, 8), 4: (4, 8), 5: (4, 8),
             6: (6, 12), 7: (6, 12), 8: (6, 12)}


def _har_kernel(x_ref, fcw_ref, fcb_ref,              # VMEM
                w1_ref, b1_ref, w2_ref, b2_ref,       # SMEM (flat scalar params)
                out_ref,
                *, C1, C2, K, L, Lc1, Lp1, Lc2, Lp2, PW, PS):
    f32 = jnp.float32

    def shift_mask(n_in, n_out, shift, stride):
        # (n_in, n_out) 0/1 matrix with M[stride*c + shift, c] = 1  (built on VPU).
        r = jax.lax.broadcasted_iota(jnp.int32, (n_in, n_out), 0)
        c = jax.lax.broadcasted_iota(jnp.int32, (n_in, n_out), 1)
        return (r == stride * c + shift).astype(f32)

    def block_diag(block, n):
        # Block-diagonal matrix with `n` copies of `block` (channel-concatenated layout).
        h, w = block.shape
        z = jnp.zeros((h, w), f32)
        rows = []
        for i in range(n):
            row = [z] * n
            row[i] = block
            rows.append(jnp.concatenate(row, axis=1))
        return jnp.concatenate(rows, axis=0)

    x = x_ref[...].astype(f32)                                   # (TB, L)

    # ---- conv1: fold taps + channels into one effective weight (L, C1*Lc1) ----
    m1 = [shift_mask(L, Lc1, k, 1) for k in range(K)]
    w1_blocks, b1_blocks = [], []
    for co in range(C1):
        acc = w1_ref[co * K] * m1[0]
        for k in range(1, K):
            acc = acc + w1_ref[co * K + k] * m1[k]
        w1_blocks.append(acc)
        b1_blocks.append(jnp.full((1, Lc1), b1_ref[co], dtype=f32))
    w1_eff = jnp.concatenate(w1_blocks, axis=1)                  # (L, C1*Lc1)
    bias1 = jnp.concatenate(b1_blocks, axis=1)                   # (1, C1*Lc1)
    h1 = jnp.maximum(
        jnp.dot(x, w1_eff, preferred_element_type=f32) + bias1, 0.0)   # (TB, C1*Lc1)

    # ---- pool1: 3 block-diagonal selection matmuls + VPU max ----
    p1 = None
    for j in range(PW):
        g = block_diag(shift_mask(Lc1, Lp1, j, PS), C1)          # (C1*Lc1, C1*Lp1)
        t = jnp.dot(h1, g, preferred_element_type=f32)
        p1 = t if p1 is None else jnp.maximum(p1, t)             # (TB, C1*Lp1)

    # ---- conv2: one effective block matrix (C1*Lp1, C2*Lc2) ----
    m2 = [shift_mask(Lp1, Lc2, k, 1) for k in range(K)]
    w2_cols, b2_blocks = [], []
    for co in range(C2):
        ci_blocks = []
        for ci in range(C1):
            base = (co * C1 + ci) * K
            acc = w2_ref[base] * m2[0]
            for k in range(1, K):
                acc = acc + w2_ref[base + k] * m2[k]
            ci_blocks.append(acc)                                # (Lp1, Lc2)
        w2_cols.append(jnp.concatenate(ci_blocks, axis=0))       # (C1*Lp1, Lc2)
        b2_blocks.append(jnp.full((1, Lc2), b2_ref[co], dtype=f32))
    w2_eff = jnp.concatenate(w2_cols, axis=1)                    # (C1*Lp1, C2*Lc2)
    bias2 = jnp.concatenate(b2_blocks, axis=1)                   # (1, C2*Lc2)
    h2 = jnp.maximum(
        jnp.dot(p1, w2_eff, preferred_element_type=f32) + bias2, 0.0)  # (TB, C2*Lc2)

    # ---- pool2: block-diagonal selection -> output already in flatten order ----
    p2 = None
    for j in range(PW):
        g = block_diag(shift_mask(Lc2, Lp2, j, PS), C2)          # (C2*Lc2, C2*Lp2)
        t = jnp.dot(h2, g, preferred_element_type=f32)
        p2 = t if p2 is None else jnp.maximum(p2, t)             # (TB, C2*Lp2)

    # ---- fc ----
    logits = jnp.dot(p2, fcw_ref[...], preferred_element_type=f32) + fcb_ref[...]
    out_ref[...] = logits.astype(out_ref.dtype)


def har_model_forward(x, params, *, kernel_size=5, pool_window=3, pool_stride=2,
                      batch_tile=128):
    """Pallas forward pass of HAR_Model.

    x: (B, 1, L) f32.
    params: conv1_w (C1,1,K), conv1_b (C1,), conv2_w (C2,C1,K), conv2_b (C2,),
            fc_w (num_classes, C2*Lp2), fc_b (num_classes,).
    Returns logits (B, num_classes) f32.
    """
    B, cin, L = x.shape
    assert cin == 1
    K = kernel_size
    w1, b1 = params["conv1_w"], params["conv1_b"]
    w2, b2 = params["conv2_w"], params["conv2_b"]
    fc_w, fc_b = params["fc_w"], params["fc_b"]
    C1, C2, nc = w1.shape[0], w2.shape[0], fc_w.shape[0]

    Lc1 = L - K + 1                                   # conv1 output length
    Lp1 = (Lc1 - pool_window) // pool_stride + 1      # pool1 output length
    Lc2 = Lp1 - K + 1                                 # conv2 output length
    Lp2 = (Lc2 - pool_window) // pool_stride + 1      # pool2 output length
    assert fc_w.shape[1] == C2 * Lp2, (fc_w.shape, C2, Lp2)

    # ---- layout plumbing (values unchanged) ----
    x2d = x.reshape(B, L).astype(jnp.float32)
    TB = min(batch_tile, ((B + 7) // 8) * 8)          # batch tile, multiple of 8
    Bp = ((B + TB - 1) // TB) * TB
    if Bp != B:
        x2d = jnp.pad(x2d, ((0, Bp - B), (0, 0)))     # zero-pad; padded rows sliced off

    w1_s = w1.reshape(-1).astype(jnp.float32)          # (C1*K,)   SMEM
    b1_s = b1.astype(jnp.float32)                      # (C1,)     SMEM
    w2_s = w2.reshape(-1).astype(jnp.float32)          # (C2*C1*K,) SMEM
    b2_s = b2.astype(jnp.float32)                      # (C2,)     SMEM
    fcw_t = jnp.transpose(fc_w).astype(jnp.float32)    # (C2*Lp2, nc) VMEM
    fcb_r = fc_b.reshape(1, nc).astype(jnp.float32)    # (1, nc)      VMEM

    kernel = functools.partial(
        _har_kernel, C1=C1, C2=C2, K=K, L=L, Lc1=Lc1, Lp1=Lp1, Lc2=Lc2, Lp2=Lp2,
        PW=pool_window, PS=pool_stride)

    smem = pl.BlockSpec(memory_space=pltpu.MemorySpace.SMEM)
    out = pl.pallas_call(
        kernel,
        out_shape=jax.ShapeDtypeStruct((Bp, nc), jnp.float32),
        grid=(Bp // TB,),
        in_specs=[
            pl.BlockSpec((TB, L), lambda i: (i, 0)),            # x  (pipelined)
            pl.BlockSpec((C2 * Lp2, nc), lambda i: (0, 0)),     # fc weight (resident)
            pl.BlockSpec((1, nc), lambda i: (0, 0)),            # fc bias
            smem, smem, smem, smem,                             # conv taps / biases
        ],
        out_specs=pl.BlockSpec((TB, nc), lambda i: (i, 0)),
        compiler_params=pltpu.CompilerParams(
            dimension_semantics=("parallel",)),                 # v7x: batch over 2 TCs
    )(x2d, fcw_t, fcb_r, w1_s, b1_s, w2_s, b2_s)
    return out[:B]


def har_model_reference(x, params):
    """Pure-JAX reference of the PyTorch forward."""
    w1, b1 = params["conv1_w"], params["conv1_b"]
    w2, b2 = params["conv2_w"], params["conv2_b"]
    fc_w, fc_b = params["fc_w"], params["fc_b"]
    dn = ("NCH", "OIH", "NCH")
    y = jax.lax.conv_general_dilated(x, w1, (1,), "VALID", dimension_numbers=dn)
    y = jnp.maximum(y + b1[None, :, None], 0.0)
    y = jax.lax.reduce_window(y, -jnp.inf, jax.lax.max, (1, 1, 3), (1, 1, 2), "VALID")
    y = jax.lax.conv_general_dilated(y, w2, (1,), "VALID", dimension_numbers=dn)
    y = jnp.maximum(y + b2[None, :, None], 0.0)
    y = jax.lax.reduce_window(y, -jnp.inf, jax.lax.max, (1, 1, 3), (1, 1, 2), "VALID")
    y = y.reshape(y.shape[0], -1)
    return y @ fc_w.T + fc_b


if __name__ == "__main__":
    modality_idx = 0
    num_classes = 6
    C1, C2 = _CHANNELS[modality_idx]
    # L=73 gives pool2 length 14, so the flattened feature size is C2*14
    # (= 84 for modality 0), matching nn.Linear(84, num_classes) in the module.
    B, L, K, Lp2 = 64, 73, 5, 14

    key = jax.random.PRNGKey(0)
    ks = jax.random.split(key, 7)
    scale = 0.1
    params = {
        "conv1_w": scale * jax.random.normal(ks[0], (C1, 1, K), jnp.float32),
        "conv1_b": scale * jax.random.normal(ks[1], (C1,), jnp.float32),
        "conv2_w": scale * jax.random.normal(ks[2], (C2, C1, K), jnp.float32),
        "conv2_b": scale * jax.random.normal(ks[3], (C2,), jnp.float32),
        "fc_w": scale * jax.random.normal(ks[4], (num_classes, C2 * Lp2), jnp.float32),
        "fc_b": scale * jax.random.normal(ks[5], (num_classes,), jnp.float32),
    }
    x = jax.random.normal(ks[6], (B, 1, L), dtype=jnp.float32)

    out = jax.block_until_ready(har_model_forward(x, params))
    ref = jax.block_until_ready(har_model_reference(x, params))

    assert out.shape == (B, num_classes)
    assert jnp.allclose(out, ref, atol=1e-4, rtol=1e-4), (out, ref)
    print("KERNEL_OK")
</pallas_src>

<mosaic_0001>
module attributes {stable_mosaic.version = 11 : i64} {
  func.func @_har_kernel(%arg0: i32, %arg1: memref<64x73xf32, #tpu.memory_space<vmem>>, %arg2: memref<84x6xf32, #tpu.memory_space<vmem>>, %arg3: memref<1x6xf32, #tpu.memory_space<vmem>>, %arg4: memref<15xf32, #tpu.memory_space<smem>>, %arg5: memref<3xf32, #tpu.memory_space<smem>>, %arg6: memref<90xf32, #tpu.memory_space<smem>>, %arg7: memref<6xf32, #tpu.memory_space<smem>>, %arg8: memref<64x6xf32, #tpu.memory_space<vmem>>) attributes {dimension_semantics = [#tpu.dimension_semantics<parallel>], iteration_bounds = array<i64: 1>, scalar_prefetch = 0 : i64, scratch_operands = 0 : i64, tpu.core_type = #tpu.core_type<tc>, window_params = [{transform_indices = @transform_0, window_bounds = array<i64: 64, 73>}, {pipeline_mode = #tpu.pipeline_mode<synchronous>, transform_indices = @transform_1, window_bounds = array<i64: 84, 6>}, {pipeline_mode = #tpu.pipeline_mode<synchronous>, transform_indices = @transform_2, window_bounds = array<i64: 1, 6>}, {transform_indices = @transform_3, window_bounds = array<i64: 15>}, {transform_indices = @transform_4, window_bounds = array<i64: 3>}, {transform_indices = @transform_5, window_bounds = array<i64: 90>}, {transform_indices = @transform_6, window_bounds = array<i64: 6>}, {transform_indices = @transform_7, window_bounds = array<i64: 64, 6>}]} {
    %c0 = arith.constant 0 : index
    %c0_0 = arith.constant 0 : index
    %0 = vector.load %arg1[%c0, %c0_0] : memref<64x73xf32, #tpu.memory_space<vmem>>, vector<64x73xf32>
    %1 = tpu.iota {dimensions = array<i32: 0>} : vector<73x69xi32>
    %2 = tpu.iota {dimensions = array<i32: 1>} : vector<73x69xi32>
    %c1_i32 = arith.constant 1 : i32
    %3 = vector.broadcast %c1_i32 : i32 to vector<73x69xi32>
    %4 = arith.muli %3, %2 : vector<73x69xi32>
    %c0_i32 = arith.constant 0 : i32
    %5 = vector.broadcast %c0_i32 : i32 to vector<73x69xi32>
    %6 = arith.addi %4, %5 : vector<73x69xi32>
    %7 = arith.cmpi eq, %1, %6 : vector<73x69xi32>
    %8 = arith.extui %7 : vector<73x69xi1> to vector<73x69xi32>
    %9 = arith.sitofp %8 : vector<73x69xi32> to vector<73x69xf32>
    %10 = tpu.iota {dimensions = array<i32: 0>} : vector<73x69xi32>
    %11 = tpu.iota {dimensions = array<i32: 1>} : vector<73x69xi32>
    %c1_i32_1 = arith.constant 1 : i32
    %12 = vector.broadcast %c1_i32_1 : i32 to vector<73x69xi32>
    %13 = arith.muli %12, %11 : vector<73x69xi32>
    %c1_i32_2 = arith.constant 1 : i32
    %14 = vector.broadcast %c1_i32_2 : i32 to vector<73x69xi32>
    %15 = arith.addi %13, %14 : vector<73x69xi32>
    %16 = arith.cmpi eq, %10, %15 : vector<73x69xi32>
    %17 = arith.extui %16 : vector<73x69xi1> to vector<73x69xi32>
    %18 = arith.sitofp %17 : vector<73x69xi32> to vector<73x69xf32>
    %19 = tpu.iota {dimensions = array<i32: 0>} : vector<73x69xi32>
    %20 = tpu.iota {dimensions = array<i32: 1>} : vector<73x69xi32>
    %c1_i32_3 = arith.constant 1 : i32
    %21 = vector.broadcast %c1_i32_3 : i32 to vector<73x69xi32>
    %22 = arith.muli %21, %20 : vector<73x69xi32>
    %c2_i32 = arith.constant 2 : i32
    %23 = vector.broadcast %c2_i32 : i32 to vector<73x69xi32>
    %24 = arith.addi %22, %23 : vector<73x69xi32>
    %25 = arith.cmpi eq, %19, %24 : vector<73x69xi32>
    %26 = arith.extui %25 : vector<73x69xi1> to vector<73x69xi32>
    %27 = arith.sitofp %26 : vector<73x69xi32> to vector<73x69xf32>
    %28 = tpu.iota {dimensions = array<i32: 0>} : vector<73x69xi32>
    %29 = tpu.iota {dimensions = array<i32: 1>} : vector<73x69xi32>
    %c1_i32_4 = arith.constant 1 : i32
    %30 = vector.broadcast %c1_i32_4 : i32 to vector<73x69xi32>
    %31 = arith.muli %30, %29 : vector<73x69xi32>
    %c3_i32 = arith.constant 3 : i32
    %32 = vector.broadcast %c3_i32 : i32 to vector<73x69xi32>
    %33 = arith.addi %31, %32 : vector<73x69xi32>
    %34 = arith.cmpi eq, %28, %33 : vector<73x69xi32>
    %35 = arith.extui %34 : vector<73x69xi1> to vector<73x69xi32>
    %36 = arith.sitofp %35 : vector<73x69xi32> to vector<73x69xf32>
    %37 = tpu.iota {dimensions = array<i32: 0>} : vector<73x69xi32>
    %38 = tpu.iota {dimensions = array<i32: 1>} : vector<73x69xi32>
    %c1_i32_5 = arith.constant 1 : i32
    %39 = vector.broadcast %c1_i32_5 : i32 to vector<73x69xi32>
    %40 = arith.muli %39, %38 : vector<73x69xi32>
    %c4_i32 = arith.constant 4 : i32
    %41 = vector.broadcast %c4_i32 : i32 to vector<73x69xi32>
    %42 = arith.addi %40, %41 : vector<73x69xi32>
    %43 = arith.cmpi eq, %37, %42 : vector<73x69xi32>
    %44 = arith.extui %43 : vector<73x69xi1> to vector<73x69xi32>
    %45 = arith.sitofp %44 : vector<73x69xi32> to vector<73x69xf32>
    %c0_6 = arith.constant 0 : index
    %46 = memref.load %arg4[%c0_6] : memref<15xf32, #tpu.memory_space<smem>>
    %47 = vector.broadcast %46 : f32 to vector<73x69xf32>
    %48 = arith.mulf %47, %9 : vector<73x69xf32>
    %c1 = arith.constant 1 : index
    %49 = memref.load %arg4[%c1] : memref<15xf32, #tpu.memory_space<smem>>
    %50 = vector.broadcast %49 : f32 to vector<73x69xf32>
    %51 = arith.mulf %50, %18 : vector<73x69xf32>
    %52 = arith.addf %48, %51 : vector<73x69xf32>
    %c2 = arith.constant 2 : index
    %53 = memref.load %arg4[%c2] : memref<15xf32, #tpu.memory_space<smem>>
    %54 = vector.broadcast %53 : f32 to vector<73x69xf32>
    %55 = arith.mulf %54, %27 : vector<73x69xf32>
    %56 = arith.addf %52, %55 : vector<73x69xf32>
    %c3 = arith.constant 3 : index
    %57 = memref.load %arg4[%c3] : memref<15xf32, #tpu.memory_space<smem>>
    %58 = vector.broadcast %57 : f32 to vector<73x69xf32>
    %59 = arith.mulf %58, %36 : vector<73x69xf32>
    %60 = arith.addf %56, %59 : vector<73x69xf32>
    %c4 = arith.constant 4 : index
    %61 = memref.load %arg4[%c4] : memref<15xf32, #tpu.memory_space<smem>>
    %62 = vector.broadcast %61 : f32 to vector<73x69xf32>
    %63 = arith.mulf %62, %45 : vector<73x69xf32>
    %64 = arith.addf %60, %63 : vector<73x69xf32>
    %c0_7 = arith.constant 0 : index
    %65 = memref.load %arg5[%c0_7] : memref<3xf32, #tpu.memory_space<smem>>
    %66 = vector.broadcast %65 : f32 to vector<1x69xf32>
    %c5 = arith.constant 5 : index
    %67 = memref.load %arg4[%c5] : memref<15xf32, #tpu.memory_space<smem>>
    %68 = vector.broadcast %67 : f32 to vector<73x69xf32>
    %69 = arith.mulf %68, %9 : vector<73x69xf32>
    %c6 = arith.constant 6 : index
    %70 = memref.load %arg4[%c6] : memref<15xf32, #tpu.memory_space<smem>>
    %71 = vector.broadcast %70 : f32 to vector<73x69xf32>
    %72 = arith.mulf %71, %18 : vector<73x69xf32>
    %73 = arith.addf %69, %72 : vector<73x69xf32>
    %c7 = arith.constant 7 : index
    %74 = memref.load %arg4[%c7] : memref<15xf32, #tpu.memory_space<smem>>
    %75 = vector.broadcast %74 : f32 to vector<73x69xf32>
    %76 = arith.mulf %75, %27 : vector<73x69xf32>
    %77 = arith.addf %73, %76 : vector<73x69xf32>
    %c8 = arith.constant 8 : index
    %78 = memref.load %arg4[%c8] : memref<15xf32, #tpu.memory_space<smem>>
    %79 = vector.broadcast %78 : f32 to vector<73x69xf32>
    %80 = arith.mulf %79, %36 : vector<73x69xf32>
    %81 = arith.addf %77, %80 : vector<73x69xf32>
    %c9 = arith.constant 9 : index
    %82 = memref.load %arg4[%c9] : memref<15xf32, #tpu.memory_space<smem>>
    %83 = vector.broadcast %82 : f32 to vector<73x69xf32>
    %84 = arith.mulf %83, %45 : vector<73x69xf32>
    %85 = arith.addf %81, %84 : vector<73x69xf32>
    %c1_8 = arith.constant 1 : index
    %86 = memref.load %arg5[%c1_8] : memref<3xf32, #tpu.memory_space<smem>>
    %87 = vector.broadcast %86 : f32 to vector<1x69xf32>
    %c10 = arith.constant 10 : index
    %88 = memref.load %arg4[%c10] : memref<15xf32, #tpu.memory_space<smem>>
    %89 = vector.broadcast %88 : f32 to vector<73x69xf32>
    %90 = arith.mulf %89, %9 : vector<73x69xf32>
    %c11 = arith.constant 11 : index
    %91 = memref.load %arg4[%c11] : memref<15xf32, #tpu.memory_space<smem>>
    %92 = vector.broadcast %91 : f32 to vector<73x69xf32>
    %93 = arith.mulf %92, %18 : vector<73x69xf32>
    %94 = arith.addf %90, %93 : vector<73x69xf32>
    %c12 = arith.constant 12 : index
    %95 = memref.load %arg4[%c12] : memref<15xf32, #tpu.memory_space<smem>>
    %96 = vector.broadcast %95 : f32 to vector<73x69xf32>
    %97 = arith.mulf %96, %27 : vector<73x69xf32>
    %98 = arith.addf %94, %97 : vector<73x69xf32>
    %c13 = arith.constant 13 : index
    %99 = memref.load %arg4[%c13] : memref<15xf32, #tpu.memory_space<smem>>
    %100 = vector.broadcast %99 : f32 to vector<73x69xf32>
    %101 = arith.mulf %100, %36 : vector<73x69xf32>
    %102 = arith.addf %98, %101 : vector<73x69xf32>
    %c14 = arith.constant 14 : index
    %103 = memref.load %arg4[%c14] : memref<15xf32, #tpu.memory_space<smem>>
    %104 = vector.broadcast %103 : f32 to vector<73x69xf32>
    %105 = arith.mulf %104, %45 : vector<73x69xf32>
    %106 = arith.addf %102, %105 : vector<73x69xf32>
    %c2_9 = arith.constant 2 : index
    %107 = memref.load %arg5[%c2_9] : memref<3xf32, #tpu.memory_space<smem>>
    %108 = vector.broadcast %107 : f32 to vector<1x69xf32>
    %109 = tpu.concatenate %64, %85, %106 in 1 : vector<73x69xf32>, vector<73x69xf32>, vector<73x69xf32> -> vector<73x207xf32>
    %110 = tpu.concatenate %66, %87, %108 in 1 : vector<1x69xf32>, vector<1x69xf32>, vector<1x69xf32> -> vector<1x207xf32>
    %cst = arith.constant dense<0.000000e+00> : vector<64x207xf32>
    %111 = tpu.matmul %0, %109, %cst {dimension_numbers = #tpu.dot_dimension_numbers<[1], [0], [0], [1], [0, 0, 1, 1], [], []>} : vector<64x73xf32>, vector<73x207xf32>, vector<64x207xf32> -> vector<64x207xf32>
    %112 = vector.broadcast %110 : vector<1x207xf32> to vector<64x207xf32>
    %113 = arith.addf %111, %112 : vector<64x207xf32>
    %cst_10 = arith.constant 0.000000e+00 : f32
    %114 = vector.broadcast %cst_10 : f32 to vector<64x207xf32>
    %115 = arith.maximumf %113, %114 : vector<64x207xf32>
    %116 = tpu.iota {dimensions = array<i32: 0>} : vector<69x34xi32>
    %117 = tpu.iota {dimensions = array<i32: 1>} : vector<69x34xi32>
    %c2_i32_11 = arith.constant 2 : i32
    %118 = vector.broadcast %c2_i32_11 : i32 to vector<69x34xi32>
    %119 = arith.muli %118, %117 : vector<69x34xi32>
    %c0_i32_12 = arith.constant 0 : i32
    %120 = vector.broadcast %c0_i32_12 : i32 to vector<69x34xi32>
    %121 = arith.addi %119, %120 : vector<69x34xi32>
    %122 = arith.cmpi eq, %116, %121 : vector<69x34xi32>
    %123 = arith.extui %122 : vector<69x34xi1> to vector<69x34xi32>
    %124 = arith.sitofp %123 : vector<69x34xi32> to vector<69x34xf32>
    %cst_13 = arith.constant 0.000000e+00 : f32
    %125 = vector.broadcast %cst_13 : f32 to vector<69x34xf32>
    %126 = tpu.concatenate %124, %125, %125 in 1 : vector<69x34xf32>, vector<69x34xf32>, vector<69x34xf32> -> vector<69x102xf32>
    %127 = tpu.concatenate %125, %124, %125 in 1 : vector<69x34xf32>, vector<69x34xf32>, vector<69x34xf32> -> vector<69x102xf32>
    %128 = tpu.concatenate %125, %125, %124 in 1 : vector<69x34xf32>, vector<69x34xf32>, vector<69x34xf32> -> vector<69x102xf32>
    %129 = tpu.concatenate %126, %127, %128 in 0 : vector<69x102xf32>, vector<69x102xf32>, vector<69x102xf32> -> vector<207x102xf32>
    %cst_14 = arith.constant dense<0.000000e+00> : vector<64x102xf32>
    %130 = tpu.matmul %115, %129, %cst_14 {dimension_numbers = #tpu.dot_dimension_numbers<[1], [0], [0], [1], [0, 0, 1, 1], [], []>} : vector<64x207xf32>, vector<207x102xf32>, vector<64x102xf32> -> vector<64x102xf32>
    %131 = tpu.iota {dimensions = array<i32: 0>} : vector<69x34xi32>
    %132 = tpu.iota {dimensions = array<i32: 1>} : vector<69x34xi32>
    %c2_i32_15 = arith.constant 2 : i32
    %133 = vector.broadcast %c2_i32_15 : i32 to vector<69x34xi32>
    %134 = arith.muli %133, %132 : vector<69x34xi32>
    %c1_i32_16 = arith.constant 1 : i32
    %135 = vector.broadcast %c1_i32_16 : i32 to vector<69x34xi32>
    %136 = arith.addi %134, %135 : vector<69x34xi32>
    %137 = arith.cmpi eq, %131, %136 : vector<69x34xi32>
    %138 = arith.extui %137 : vector<69x34xi1> to vector<69x34xi32>
    %139 = arith.sitofp %138 : vector<69x34xi32> to vector<69x34xf32>
    %cst_17 = arith.constant 0.000000e+00 : f32
    %140 = vector.broadcast %cst_17 : f32 to vector<69x34xf32>
    %141 = tpu.concatenate %139, %140, %140 in 1 : vector<69x34xf32>, vector<69x34xf32>, vector<69x34xf32> -> vector<69x102xf32>
    %142 = tpu.concatenate %140, %139, %140 in 1 : vector<69x34xf32>, vector<69x34xf32>, vector<69x34xf32> -> vector<69x102xf32>
    %143 = tpu.concatenate %140, %140, %139 in 1 : vector<69x34xf32>, vector<69x34xf32>, vector<69x34xf32> -> vector<69x102xf32>
    %144 = tpu.concatenate %141, %142, %143 in 0 : vector<69x102xf32>, vector<69x102xf32>, vector<69x102xf32> -> vector<207x102xf32>
    %cst_18 = arith.constant dense<0.000000e+00> : vector<64x102xf32>
    %145 = tpu.matmul %115, %144, %cst_18 {dimension_numbers = #tpu.dot_dimension_numbers<[1], [0], [0], [1], [0, 0, 1, 1], [], []>} : vector<64x207xf32>, vector<207x102xf32>, vector<64x102xf32> -> vector<64x102xf32>
    %146 = arith.maximumf %130, %145 : vector<64x102xf32>
    %147 = tpu.iota {dimensions = array<i32: 0>} : vector<69x34xi32>
    %148 = tpu.iota {dimensions = array<i32: 1>} : vector<69x34xi32>
    %c2_i32_19 = arith.constant 2 : i32
    %149 = vector.broadcast %c2_i32_19 : i32 to vector<69x34xi32>
    %150 = arith.muli %149, %148 : vector<69x34xi32>
    %c2_i32_20 = arith.constant 2 : i32
    %151 = vector.broadcast %c2_i32_20 : i32 to vector<69x34xi32>
    %152 = arith.addi %150, %151 : vector<69x34xi32>
    %153 = arith.cmpi eq, %147, %152 : vector<69x34xi32>
    %154 = arith.extui %153 : vector<69x34xi1> to vector<69x34xi32>
    %155 = arith.sitofp %154 : vector<69x34xi32> to vector<69x34xf32>
    %cst_21 = arith.constant 0.000000e+00 : f32
    %156 = vector.broadcast %cst_21 : f32 to vector<69x34xf32>
    %157 = tpu.concatenate %155, %156, %156 in 1 : vector<69x34xf32>, vector<69x34xf32>, vector<69x34xf32> -> vector<69x102xf32>
    %158 = tpu.concatenate %156, %155, %156 in 1 : vector<69x34xf32>, vector<69x34xf32>, vector<69x34xf32> -> vector<69x102xf32>
    %159 = tpu.concatenate %156, %156, %155 in 1 : vector<69x34xf32>, vector<69x34xf32>, vector<69x34xf32> -> vector<69x102xf32>
    %160 = tpu.concatenate %157, %158, %159 in 0 : vector<69x102xf32>, vector<69x102xf32>, vector<69x102xf32> -> vector<207x102xf32>
    %cst_22 = arith.constant dense<0.000000e+00> : vector<64x102xf32>
    %161 = tpu.matmul %115, %160, %cst_22 {dimension_numbers = #tpu.dot_dimension_numbers<[1], [0], [0], [1], [0, 0, 1, 1], [], []>} : vector<64x207xf32>, vector<207x102xf32>, vector<64x102xf32> -> vector<64x102xf32>
    %162 = arith.maximumf %146, %161 : vector<64x102xf32>
    %163 = tpu.iota {dimensions = array<i32: 0>} : vector<34x30xi32>
    %164 = tpu.iota {dimensions = array<i32: 1>} : vector<34x30xi32>
    %c1_i32_23 = arith.constant 1 : i32
    %165 = vector.broadcast %c1_i32_23 : i32 to vector<34x30xi32>
    %166 = arith.muli %165, %164 : vector<34x30xi32>
    %c0_i32_24 = arith.constant 0 : i32
    %167 = vector.broadcast %c0_i32_24 : i32 to vector<34x30xi32>
    %168 = arith.addi %166, %167 : vector<34x30xi32>
    %169 = arith.cmpi eq, %163, %168 : vector<34x30xi32>
    %170 = arith.extui %169 : vector<34x30xi1> to vector<34x30xi32>
    %171 = arith.sitofp %170 : vector<34x30xi32> to vector<34x30xf32>
    %172 = tpu.iota {dimensions = array<i32: 0>} : vector<34x30xi32>
    %173 = tpu.iota {dimensions = array<i32: 1>} : vector<34x30xi32>
    %c1_i32_25 = arith.constant 1 : i32
    %174 = vector.broadcast %c1_i32_25 : i32 to vector<34x30xi32>
    %175 = arith.muli %174, %173 : vector<34x30xi32>
    %c1_i32_26 = arith.constant 1 : i32
    %176 = vector.broadcast %c1_i32_26 : i32 to vector<34x30xi32>
    %177 = arith.addi %175, %176 : vector<34x30xi32>
    %178 = arith.cmpi eq, %172, %177 : vector<34x30xi32>
    %179 = arith.extui %178 : vector<34x30xi1> to vector<34x30xi32>
    %180 = arith.sitofp %179 : vector<34x30xi32> to vector<34x30xf32>
    %181 = tpu.iota {dimensions = array<i32: 0>} : vector<34x30xi32>
    %182 = tpu.iota {dimensions = array<i32: 1>} : vector<34x30xi32>
    %c1_i32_27 = arith.constant 1 : i32
    %183 = vector.broadcast %c1_i32_27 : i32 to vector<34x30xi32>
    %184 = arith.muli %183, %182 : vector<34x30xi32>
    %c2_i32_28 = arith.constant 2 : i32
    %185 = vector.broadcast %c2_i32_28 : i32 to vector<34x30xi32>
    %186 = arith.addi %184, %185 : vector<34x30xi32>
    %187 = arith.cmpi eq, %181, %186 : vector<34x30xi32>
    %188 = arith.extui %187 : vector<34x30xi1> to vector<34x30xi32>
    %189 = arith.sitofp %188 : vector<34x30xi32> to vector<34x30xf32>
    %190 = tpu.iota {dimensions = array<i32: 0>} : vector<34x30xi32>
    %191 = tpu.iota {dimensions = array<i32: 1>} : vector<34x30xi32>
    %c1_i32_29 = arith.constant 1 : i32
    %192 = vector.broadcast %c1_i32_29 : i32 to vector<34x30xi32>
    %193 = arith.muli %192, %191 : vector<34x30xi32>
    %c3_i32_30 = arith.constant 3 : i32
    %194 = vector.broadcast %c3_i32_30 : i32 to vector<34x30xi32>
    %195 = arith.addi %193, %194 : vector<34x30xi32>
    %196 = arith.cmpi eq, %190, %195 : vector<34x30xi32>
    %197 = arith.extui %196 : vector<34x30xi1> to vector<34x30xi32>
    %198 = arith.sitofp %197 : vector<34x30xi32> to vector<34x30xf32>
    %199 = tpu.iota {dimensions = array<i32: 0>} : vector<34x30xi32>
    %200 = tpu.iota {dimensions = array<i32: 1>} : vector<34x30xi32>
    %c1_i32_31 = arith.constant 1 : i32
    %201 = vector.broadcast %c1_i32_31 : i32 to vector<34x30xi32>
    %202 = arith.muli %201, %200 : vector<34x30xi32>
    %c4_i32_32 = arith.constant 4 : i32
    %203 = vector.broadcast %c4_i32_32 : i32 to vector<34x30xi32>
    %204 = arith.addi %202, %203 : vector<34x30xi32>
    %205 = arith.cmpi eq, %199, %204 : vector<34x30xi32>
    %206 = arith.extui %205 : vector<34x30xi1> to vector<34x30xi32>
    %207 = arith.sitofp %206 : vector<34x30xi32> to vector<34x30xf32>
    %c0_33 = arith.constant 0 : index
    %208 = memref.load %arg6[%c0_33] : memref<90xf32, #tpu.memory_space<smem>>
    %209 = vector.broadcast %208 : f32 to vector<34x30xf32>
    %210 = arith.mulf %209, %171 : vector<34x30xf32>
    %c1_34 = arith.constant 1 : index
    %211 = memref.load %arg6[%c1_34] : memref<90xf32, #tpu.memory_space<smem>>
    %212 = vector.broadcast %211 : f32 to vector<34x30xf32>
    %213 = arith.mulf %212, %180 : vector<34x30xf32>
    %214 = arith.addf %210, %213 : vector<34x30xf32>
    %c2_35 = arith.constant 2 : index
    %215 = memref.load %arg6[%c2_35] : memref<90xf32, #tpu.memory_space<smem>>
    %216 = vector.broadcast %215 : f32 to vector<34x30xf32>
    %217 = arith.mulf %216, %189 : vector<34x30xf32>
    %218 = arith.addf %214, %217 : vector<34x30xf32>
    %c3_36 = arith.constant 3 : index
    %219 = memref.load %arg6[%c3_36] : memref<90xf32, #tpu.memory_space<smem>>
    %220 = vector.broadcast %219 : f32 to vector<34x30xf32>
    %221 = arith.mulf %220, %198 : vector<34x30xf32>
    %222 = arith.addf %218, %221 : vector<34x30xf32>
    %c4_37 = arith.constant 4 : index
    %223 = memref.load %arg6[%c4_37] : memref<90xf32, #tpu.memory_space<smem>>
    %224 = vector.broadcast %223 : f32 to vector<34x30xf32>
    %225 = arith.mulf %224, %207 : vector<34x30xf32>
    %226 = arith.addf %222, %225 : vector<34x30xf32>
    %c5_38 = arith.constant 5 : index
    %227 = memref.load %arg6[%c5_38] : memref<90xf32, #tpu.memory_space<smem>>
    %228 = vector.broadcast %227 : f32 to vector<34x30xf32>
    %229 = arith.mulf %228, %171 : vector<34x30xf32>
    %c6_39 = arith.constant 6 : index
    %230 = memref.load %arg6[%c6_39] : memref<90xf32, #tpu.memory_space<smem>>
    %231 = vector.broadcast %230 : f32 to vector<34x30xf32>
    %232 = arith.mulf %231, %180 : vector<34x30xf32>
    %233 = arith.addf %229, %232 : vector<34x30xf32>
    %c7_40 = arith.constant 7 : index
    %234 = memref.load %arg6[%c7_40] : memref<90xf32, #tpu.memory_space<smem>>
    %235 = vector.broadcast %234 : f32 to vector<34x30xf32>
    %236 = arith.mulf %235, %189 : vector<34x30xf32>
    %237 = arith.addf %233, %236 : vector<34x30xf32>
    %c8_41 = arith.constant 8 : index
    %238 = memref.load %arg6[%c8_41] : memref<90xf32, #tpu.memory_space<smem>>
    %239 = vector.broadcast %238 : f32 to vector<34x30xf32>
    %240 = arith.mulf %239, %198 : vector<34x30xf32>
    %241 = arith.addf %237, %240 : vector<34x30xf32>
    %c9_42 = arith.constant 9 : index
    %242 = memref.load %arg6[%c9_42] : memref<90xf32, #tpu.memory_space<smem>>
    %243 = vector.broadcast %242 : f32 to vector<34x30xf32>
    %244 = arith.mulf %243, %207 : vector<34x30xf32>
    %245 = arith.addf %241, %244 : vector<34x30xf32>
    %c10_43 = arith.constant 10 : index
    %246 = memref.load %arg6[%c10_43] : memref<90xf32, #tpu.memory_space<smem>>
    %247 = vector.broadcast %246 : f32 to vector<34x30xf32>
    %248 = arith.mulf %247, %171 : vector<34x30xf32>
    %c11_44 = arith.constant 11 : index
    %249 = memref.load %arg6[%c11_44] : memref<90xf32, #tpu.memory_space<smem>>
    %250 = vector.broadcast %249 : f32 to vector<34x30xf32>
    %251 = arith.mulf %250, %180 : vector<34x30xf32>
    %252 = arith.addf %248, %251 : vector<34x30xf32>
    %c12_45 = arith.constant 12 : index
    %253 = memref.load %arg6[%c12_45] : memref<90xf32, #tpu.memory_space<smem>>
    %254 = vector.broadcast %253 : f32 to vector<34x30xf32>
    %255 = arith.mulf %254, %189 : vector<34x30xf32>
    %256 = arith.addf %252, %255 : vector<34x30xf32>
    %c13_46 = arith.constant 13 : index
    %257 = memref.load %arg6[%c13_46] : memref<90xf32, #tpu.memory_space<smem>>
    %258 = vector.broadcast %257 : f32 to vector<34x30xf32>
    %259 = arith.mulf %258, %198 : vector<34x30xf32>
    %260 = arith.addf %256, %259 : vector<34x30xf32>
    %c14_47 = arith.constant 14 : index
    %261 = memref.load %arg6[%c14_47] : memref<90xf32, #tpu.memory_space<smem>>
    %262 = vector.broadcast %261 : f32 to vector<34x30xf32>
    %263 = arith.mulf %262, %207 : vector<34x30xf32>
    %264 = arith.addf %260, %263 : vector<34x30xf32>
    %265 = tpu.concatenate %226, %245, %264 in 0 : vector<34x30xf32>, vector<34x30xf32>, vector<34x30xf32> -> vector<102x30xf32>
    %c0_48 = arith.constant 0 : index
    %266 = memref.load %arg7[%c0_48] : memref<6xf32, #tpu.memory_space<smem>>
    %267 = vector.broadcast %266 : f32 to vector<1x30xf32>
    %c15 = arith.constant 15 : index
    %268 = memref.load %arg6[%c15] : memref<90xf32, #tpu.memory_space<smem>>
    %269 = vector.broadcast %268 : f32 to vector<34x30xf32>
    %270 = arith.mulf %269, %171 : vector<34x30xf32>
    %c16 = arith.constant 16 : index
    %271 = memref.load %arg6[%c16] : memref<90xf32, #tpu.memory_space<smem>>
    %272 = vector.broadcast %271 : f32 to vector<34x30xf32>
    %273 = arith.mulf %272, %180 : vector<34x30xf32>
    %274 = arith.addf %270, %273 : vector<34x30xf32>
    %c17 = arith.constant 17 : index
    %275 = memref.load %arg6[%c17] : memref<90xf32, #tpu.memory_space<smem>>
    %276 = vector.broadcast %275 : f32 to vector<34x30xf32>
    %277 = arith.mulf %276, %189 : vector<34x30xf32>
    %278 = arith.addf %274, %277 : vector<34x30xf32>
    %c18 = arith.constant 18 : index
    %279 = memref.load %arg6[%c18] : memref<90xf32, #tpu.memory_space<smem>>
    %280 = vector.broadcast %279 : f32 to vector<34x30xf32>
    %281 = arith.mulf %280, %198 : vector<34x30xf32>
    %282 = arith.addf %278, %281 : vector<34x30xf32>
    %c19 = arith.constant 19 : index
    %283 = memref.load %arg6[%c19] : memref<90xf32, #tpu.memory_space<smem>>
    %284 = vector.broadcast %283 : f32 to vector<34x30xf32>
    %285 = arith.mulf %284, %207 : vector<34x30xf32>
    %286 = arith.addf %282, %285 : vector<34x30xf32>
    %c20 = arith.constant 20 : index
    %287 = memref.load %arg6[%c20] : memref<90xf32, #tpu.memory_space<smem>>
    %288 = vector.broadcast %287 : f32 to vector<34x30xf32>
    %289 = arith.mulf %288, %171 : vector<34x30xf32>
    %c21 = arith.constant 21 : index
    %290 = memref.load %arg6[%c21] : memref<90xf32, #tpu.memory_space<smem>>
    %291 = vector.broadcast %290 : f32 to vector<34x30xf32>
    %292 = arith.mulf %291, %180 : vector<34x30xf32>
    %293 = arith.addf %289, %292 : vector<34x30xf32>
    %c22 = arith.constant 22 : index
    %294 = memref.load %arg6[%c22] : memref<90xf32, #tpu.memory_space<smem>>
    %295 = vector.broadcast %294 : f32 to vector<34x30xf32>
    %296 = arith.mulf %295, %189 : vector<34x30xf32>
    %297 = arith.addf %293, %296 : vector<34x30xf32>
    %c23 = arith.constant 23 : index
    %298 = memref.load %arg6[%c23] : memref<90xf32, #tpu.memory_space<smem>>
    %299 = vector.broadcast %298 : f32 to vector<34x30xf32>
    %300 = arith.mulf %299, %198 : vector<34x30xf32>
    %301 = arith.addf %297, %300 : vector<34x30xf32>
    %c24 = arith.constant 24 : index
    %302 = memref.load %arg6[%c24] : memref<90xf32, #tpu.memory_space<smem>>
    %303 = vector.broadcast %302 : f32 to vector<34x30xf32>
    %304 = arith.mulf %303, %207 : vector<34x30xf32>
    %305 = arith.addf %301, %304 : vector<34x30xf32>
    %c25 = arith.constant 25 : index
    %306 = memref.load %arg6[%c25] : memref<90xf32, #tpu.memory_space<smem>>
    %307 = vector.broadcast %306 : f32 to vector<34x30xf32>
    %308 = arith.mulf %307, %171 : vector<34x30xf32>
    %c26 = arith.constant 26 : index
    %309 = memref.load %arg6[%c26] : memref<90xf32, #tpu.memory_space<smem>>
    %310 = vector.broadcast %309 : f32 to vector<34x30xf32>
    %311 = arith.mulf %310, %180 : vector<34x30xf32>
    %312 = arith.addf %308, %311 : vector<34x30xf32>
    %c27 = arith.constant 27 : index
    %313 = memref.load %arg6[%c27] : memref<90xf32, #tpu.memory_space<smem>>
    %314 = vector.broadcast %313 : f32 to vector<34x30xf32>
    %315 = arith.mulf %314, %189 : vector<34x30xf32>
    %316 = arith.addf %312, %315 : vector<34x30xf32>
    %c28 = arith.constant 28 : index
    %317 = memref.load %arg6[%c28] : memref<90xf32, #tpu.memory_space<smem>>
    %318 = vector.broadcast %317 : f32 to vector<34x30xf32>
    %319 = arith.mulf %318, %198 : vector<34x30xf32>
    %320 = arith.addf %316, %319 : vector<34x30xf32>
    %c29 = arith.constant 29 : index
    %321 = memref.load %arg6[%c29] : memref<90xf32, #tpu.memory_space<smem>>
    %322 = vector.broadcast %321 : f32 to vector<34x30xf32>
    %323 = arith.mulf %322, %207 : vector<34x30xf32>
    %324 = arith.addf %320, %323 : vector<34x30xf32>
    %325 = tpu.concatenate %286, %305, %324 in 0 : vector<34x30xf32>, vector<34x30xf32>, vector<34x30xf32> -> vector<102x30xf32>
    %c1_49 = arith.constant 1 : index
    %326 = memref.load %arg7[%c1_49] : memref<6xf32, #tpu.memory_space<smem>>
    %327 = vector.broadcast %326 : f32 to vector<1x30xf32>
    %c30 = arith.constant 30 : index
    %328 = memref.load %arg6[%c30] : memref<90xf32, #tpu.memory_space<smem>>
    %329 = vector.broadcast %328 : f32 to vector<34x30xf32>
    %330 = arith.mulf %329, %171 : vector<34x30xf32>
    %c31 = arith.constant 31 : index
    %331 = memref.load %arg6[%c31] : memref<90xf32, #tpu.memory_space<smem>>
    %332 = vector.broadcast %331 : f32 to vector<34x30xf32>
    %333 = arith.mulf %332, %180 : vector<34x30xf32>
    %334 = arith.addf %330, %333 : vector<34x30xf32>
    %c32 = arith.constant 32 : index
    %335 = memref.load %arg6[%c32] : memref<90xf32, #tpu.memory_space<smem>>
    %336 = vector.broadcast %335 : f32 to vector<34x30xf32>
    %337 = arith.mulf %336, %189 : vector<34x30xf32>
    %338 = arith.addf %334, %337 : vector<34x30xf32>
    %c33 = arith.constant 33 : index
    %339 = memref.load %arg6[%c33] : memref<90xf32, #tpu.memory_space<smem>>
    %340 = vector.broadcast %339 : f32 to vector<34x30xf32>
    %341 = arith.mulf %340, %198 : vector<34x30xf32>
    %342 = arith.addf %338, %341 : vector<34x30xf32>
    %c34 = arith.constant 34 : index
    %343 = memref.load %arg6[%c34] : memref<90xf32, #tpu.memory_space<smem>>
    %344 = vector.broadcast %343 : f32 to vector<34x30xf32>
    %345 = arith.mulf %344, %207 : vector<34x30xf32>
    %346 = arith.addf %342, %345 : vector<34x30xf32>
    %c35 = arith.constant 35 : index
    %347 = memref.load %arg6[%c35] : memref<90xf32, #tpu.memory_space<smem>>
    %348 = vector.broadcast %347 : f32 to vector<34x30xf32>
    %349 = arith.mulf %348, %171 : vector<34x30xf32>
    %c36 = arith.constant 36 : index
    %350 = memref.load %arg6[%c36] : memref<90xf32, #tpu.memory_space<smem>>
    %351 = vector.broadcast %350 : f32 to vector<34x30xf32>
    %352 = arith.mulf %351, %180 : vector<34x30xf32>
    %353 = arith.addf %349, %352 : vector<34x30xf32>
    %c37 = arith.constant 37 : index
    %354 = memref.load %arg6[%c37] : memref<90xf32, #tpu.memory_space<smem>>
    %355 = vector.broadcast %354 : f32 to vector<34x30xf32>
    %356 = arith.mulf %355, %189 : vector<34x30xf32>
    %357 = arith.addf %353, %356 : vector<34x30xf32>
    %c38 = arith.constant 38 : index
    %358 = memref.load %arg6[%c38] : memref<90xf32, #tpu.memory_space<smem>>
    %359 = vector.broadcast %358 : f32 to vector<34x30xf32>
    %360 = arith.mulf %359, %198 : vector<34x30xf32>
    %361 = arith.addf %357, %360 : vector<34x30xf32>
    %c39 = arith.constant 39 : index
    %362 = memref.load %arg6[%c39] : memref<90xf32, #tpu.memory_space<smem>>
    %363 = vector.broadcast %362 : f32 to vector<34x30xf32>
    %364 = arith.mulf %363, %207 : vector<34x30xf32>
    %365 = arith.addf %361, %364 : vector<34x30xf32>
    %c40 = arith.constant 40 : index
    %366 = memref.load %arg6[%c40] : memref<90xf32, #tpu.memory_space<smem>>
    %367 = vector.broadcast %366 : f32 to vector<34x30xf32>
    %368 = arith.mulf %367, %171 : vector<34x30xf32>
    %c41 = arith.constant 41 : index
    %369 = memref.load %arg6[%c41] : memref<90xf32, #tpu.memory_space<smem>>
    %370 = vector.broadcast %369 : f32 to vector<34x30xf32>
    %371 = arith.mulf %370, %180 : vector<34x30xf32>
    %372 = arith.addf %368, %371 : vector<34x30xf32>
    %c42 = arith.constant 42 : index
    %373 = memref.load %arg6[%c42] : memref<90xf32, #tpu.memory_space<smem>>
    %374 = vector.broadcast %373 : f32 to vector<34x30xf32>
    %375 = arith.mulf %374, %189 : vector<34x30xf32>
    %376 = arith.addf %372, %375 : vector<34x30xf32>
    %c43 = arith.constant 43 : index
    %377 = memref.load %arg6[%c43] : memref<90xf32, #tpu.memory_space<smem>>
    %378 = vector.broadcast %377 : f32 to vector<34x30xf32>
    %379 = arith.mulf %378, %198 : vector<34x30xf32>
    %380 = arith.addf %376, %379 : vector<34x30xf32>
    %c44 = arith.constant 44 : index
    %381 = memref.load %arg6[%c44] : memref<90xf32, #tpu.memory_space<smem>>
    %382 = vector.broadcast %381 : f32 to vector<34x30xf32>
    %383 = arith.mulf %382, %207 : vector<34x30xf32>
    %384 = arith.addf %380, %383 : vector<34x30xf32>
    %385 = tpu.concatenate %346, %365, %384 in 0 : vector<34x30xf32>, vector<34x30xf32>, vector<34x30xf32> -> vector<102x30xf32>
    %c2_50 = arith.constant 2 : index
    %386 = memref.load %arg7[%c2_50] : memref<6xf32, #tpu.memory_space<smem>>
    %387 = vector.broadcast %386 : f32 to vector<1x30xf32>
    %c45 = arith.constant 45 : index
    %388 = memref.load %arg6[%c45] : memref<90xf32, #tpu.memory_space<smem>>
    %389 = vector.broadcast %388 : f32 to vector<34x30xf32>
    %390 = arith.mulf %389, %171 : vector<34x30xf32>
    %c46 = arith.constant 46 : index
    %391 = memref.load %arg6[%c46] : memref<90xf32, #tpu.memory_space<smem>>
    %392 = vector.broadcast %391 : f32 to vector<34x30xf32>
    %393 = arith.mulf %392, %180 : vector<34x30xf32>
    %394 = arith.addf %390, %393 : vector<34x30xf32>
    %c47 = arith.constant 47 : index
    %395 = memref.load %arg6[%c47] : memref<90xf32, #tpu.memory_space<smem>>
    %396 = vector.broadcast %395 : f32 to vector<34x30xf32>
    %397 = arith.mulf %396, %189 : vector<34x30xf32>
    %398 = arith.addf %394, %397 : vector<34x30xf32>
    %c48 = arith.constant 48 : index
    %399 = memref.load %arg6[%c48] : memref<90xf32, #tpu.memory_space<smem>>
    %400 = vector.broadcast %399 : f32 to vector<34x30xf32>
    %401 = arith.mulf %400, %198 : vector<34x30xf32>
    %402 = arith.addf %398, %401 : vector<34x30xf32>
    %c49 = arith.constant 49 : index
    %403 = memref.load %arg6[%c49] : memref<90xf32, #tpu.memory_space<smem>>
    %404 = vector.broadcast %403 : f32 to vector<34x30xf32>
    %405 = arith.mulf %404, %207 : vector<34x30xf32>
    %406 = arith.addf %402, %405 : vector<34x30xf32>
    %c50 = arith.constant 50 : index
    %407 = memref.load %arg6[%c50] : memref<90xf32, #tpu.memory_space<smem>>
    %408 = vector.broadcast %407 : f32 to vector<34x30xf32>
    %409 = arith.mulf %408, %171 : vector<34x30xf32>
    %c51 = arith.constant 51 : index
    %410 = memref.load %arg6[%c51] : memref<90xf32, #tpu.memory_space<smem>>
    %411 = vector.broadcast %410 : f32 to vector<34x30xf32>
    %412 = arith.mulf %411, %180 : vector<34x30xf32>
    %413 = arith.addf %409, %412 : vector<34x30xf32>
    %c52 = arith.constant 52 : index
    %414 = memref.load %arg6[%c52] : memref<90xf32, #tpu.memory_space<smem>>
    %415 = vector.broadcast %414 : f32 to vector<34x30xf32>
    %416 = arith.mulf %415, %189 : vector<34x30xf32>
    %417 = arith.addf %413, %416 : vector<34x30xf32>
    %c53 = arith.constant 53 : index
    %418 = memref.load %arg6[%c53] : memref<90xf32, #tpu.memory_space<smem>>
    %419 = vector.broadcast %418 : f32 to vector<34x30xf32>
    %420 = arith.mulf %419, %198 : vector<34x30xf32>
    %421 = arith.addf %417, %420 : vector<34x30xf32>
    %c54 = arith.constant 54 : index
    %422 = memref.load %arg6[%c54] : memref<90xf32, #tpu.memory_space<smem>>
    %423 = vector.broadcast %422 : f32 to vector<34x30xf32>
    %424 = arith.mulf %423, %207 : vector<34x30xf32>
    %425 = arith.addf %421, %424 : vector<34x30xf32>
    %c55 = arith.constant 55 : index
    %426 = memref.load %arg6[%c55] : memref<90xf32, #tpu.memory_space<smem>>
    %427 = vector.broadcast %426 : f32 to vector<34x30xf32>
    %428 = arith.mulf %427, %171 : vector<34x30xf32>
    %c56 = arith.constant 56 : index
    %429 = memref.load %arg6[%c56] : memref<90xf32, #tpu.memory_space<smem>>
    %430 = vector.broadcast %429 : f32 to vector<34x30xf32>
    %431 = arith.mulf %430, %180 : vector<34x30xf32>
    %432 = arith.addf %428, %431 : vector<34x30xf32>
    %c57 = arith.constant 57 : index
    %433 = memref.load %arg6[%c57] : memref<90xf32, #tpu.memory_space<smem>>
    %434 = vector.broadcast %433 : f32 to vector<34x30xf32>
    %435 = arith.mulf %434, %189 : vector<34x30xf32>
    %436 = arith.addf %432, %435 : vector<34x30xf32>
    %c58 = arith.constant 58 : index
    %437 = memref.load %arg6[%c58] : memref<90xf32, #tpu.memory_space<smem>>
    %438 = vector.broadcast %437 : f32 to vector<34x30xf32>
    %439 = arith.mulf %438, %198 : vector<34x30xf32>
    %440 = arith.addf %436, %439 : vector<34x30xf32>
    %c59 = arith.constant 59 : index
    %441 = memref.load %arg6[%c59] : memref<90xf32, #tpu.memory_space<smem>>
    %442 = vector.broadcast %441 : f32 to vector<34x30xf32>
    %443 = arith.mulf %442, %207 : vector<34x30xf32>
    %444 = arith.addf %440, %443 : vector<34x30xf32>
    %445 = tpu.concatenate %406, %425, %444 in 0 : vector<34x30xf32>, vector<34x30xf32>, vector<34x30xf32> -> vector<102x30xf32>
    %c3_51 = arith.constant 3 : index
    %446 = memref.load %arg7[%c3_51] : memref<6xf32, #tpu.memory_space<smem>>
    %447 = vector.broadcast %446 : f32 to vector<1x30xf32>
    %c60 = arith.constant 60 : index
    %448 = memref.load %arg6[%c60] : memref<90xf32, #tpu.memory_space<smem>>
    %449 = vector.broadcast %448 : f32 to vector<34x30xf32>
    %450 = arith.mulf %449, %171 : vector<34x30xf32>
    %c61 = arith.constant 61 : index
    %451 = memref.load %arg6[%c61] : memref<90xf32, #tpu.memory_space<smem>>
    %452 = vector.broadcast %451 : f32 to vector<34x30xf32>
    %453 = arith.mulf %452, %180 : vector<34x30xf32>
    %454 = arith.addf %450, %453 : vector<34x30xf32>
    %c62 = arith.constant 62 : index
    %455 = memref.load %arg6[%c62] : memref<90xf32, #tpu.memory_space<smem>>
    %456 = vector.broadcast %455 : f32 to vector<34x30xf32>
    %457 = arith.mulf %456, %189 : vector<34x30xf32>
    %458 = arith.addf %454, %457 : vector<34x30xf32>
    %c63 = arith.constant 63 : index
    %459 = memref.load %arg6[%c63] : memref<90xf32, #tpu.memory_space<smem>>
    %460 = vector.broadcast %459 : f32 to vector<34x30xf32>
    %461 = arith.mulf %460, %198 : vector<34x30xf32>
    %462 = arith.addf %458, %461 : vector<34x30xf32>
    %c64 = arith.constant 64 : index
    %463 = memref.load %arg6[%c64] : memref<90xf32, #tpu.memory_space<smem>>
    %464 = vector.broadcast %463 : f32 to vector<34x30xf32>
    %465 = arith.mulf %464, %207 : vector<34x30xf32>
    %466 = arith.addf %462, %465 : vector<34x30xf32>
    %c65 = arith.constant 65 : index
    %467 = memref.load %arg6[%c65] : memref<90xf32, #tpu.memory_space<smem>>
    %468 = vector.broadcast %467 : f32 to vector<34x30xf32>
    %469 = arith.mulf %468, %171 : vector<34x30xf32>
    %c66 = arith.constant 66 : index
    %470 = memref.load %arg6[%c66] : memref<90xf32, #tpu.memory_space<smem>>
    %471 = vector.broadcast %470 : f32 to vector<34x30xf32>
    %472 = arith.mulf %471, %180 : vector<34x30xf32>
    %473 = arith.addf %469, %472 : vector<34x30xf32>
    %c67 = arith.constant 67 : index
    %474 = memref.load %arg6[%c67] : memref<90xf32, #tpu.memory_space<smem>>
    %475 = vector.broadcast %474 : f32 to vector<34x30xf32>
    %476 = arith.mulf %475, %189 : vector<34x30xf32>
    %477 = arith.addf %473, %476 : vector<34x30xf32>
    %c68 = arith.constant 68 : index
    %478 = memref.load %arg6[%c68] : memref<90xf32, #tpu.memory_space<smem>>
    %479 = vector.broadcast %478 : f32 to vector<34x30xf32>
    %480 = arith.mulf %479, %198 : vector<34x30xf32>
    %481 = arith.addf %477, %480 : vector<34x30xf32>
    %c69 = arith.constant 69 : index
    %482 = memref.load %arg6[%c69] : memref<90xf32, #tpu.memory_space<smem>>
    %483 = vector.broadcast %482 : f32 to vector<34x30xf32>
    %484 = arith.mulf %483, %207 : vector<34x30xf32>
    %485 = arith.addf %481, %484 : vector<34x30xf32>
    %c70 = arith.constant 70 : index
    %486 = memref.load %arg6[%c70] : memref<90xf32, #tpu.memory_space<smem>>
    %487 = vector.broadcast %486 : f32 to vector<34x30xf32>
    %488 = arith.mulf %487, %171 : vector<34x30xf32>
    %c71 = arith.constant 71 : index
    %489 = memref.load %arg6[%c71] : memref<90xf32, #tpu.memory_space<smem>>
    %490 = vector.broadcast %489 : f32 to vector<34x30xf32>
    %491 = arith.mulf %490, %180 : vector<34x30xf32>
    %492 = arith.addf %488, %491 : vector<34x30xf32>
    %c72 = arith.constant 72 : index
    %493 = memref.load %arg6[%c72] : memref<90xf32, #tpu.memory_space<smem>>
    %494 = vector.broadcast %493 : f32 to vector<34x30xf32>
    %495 = arith.mulf %494, %189 : vector<34x30xf32>
    %496 = arith.addf %492, %495 : vector<34x30xf32>
    %c73 = arith.constant 73 : index
    %497 = memref.load %arg6[%c73] : memref<90xf32, #tpu.memory_space<smem>>
    %498 = vector.broadcast %497 : f32 to vector<34x30xf32>
    %499 = arith.mulf %498, %198 : vector<34x30xf32>
    %500 = arith.addf %496, %499 : vector<34x30xf32>
    %c74 = arith.constant 74 : index
    %501 = memref.load %arg6[%c74] : memref<90xf32, #tpu.memory_space<smem>>
    %502 = vector.broadcast %501 : f32 to vector<34x30xf32>
    %503 = arith.mulf %502, %207 : vector<34x30xf32>
    %504 = arith.addf %500, %503 : vector<34x30xf32>
    %505 = tpu.concatenate %466, %485, %504 in 0 : vector<34x30xf32>, vector<34x30xf32>, vector<34x30xf32> -> vector<102x30xf32>
    %c4_52 = arith.constant 4 : index
    %506 = memref.load %arg7[%c4_52] : memref<6xf32, #tpu.memory_space<smem>>
    %507 = vector.broadcast %506 : f32 to vector<1x30xf32>
    %c75 = arith.constant 75 : index
    %508 = memref.load %arg6[%c75] : memref<90xf32, #tpu.memory_space<smem>>
    %509 = vector.broadcast %508 : f32 to vector<34x30xf32>
    %510 = arith.mulf %509, %171 : vector<34x30xf32>
    %c76 = arith.constant 76 : index
    %511 = memref.load %arg6[%c76] : memref<90xf32, #tpu.memory_space<smem>>
    %512 = vector.broadcast %511 : f32 to vector<34x30xf32>
    %513 = arith.mulf %512, %180 : vector<34x30xf32>
    %514 = arith.addf %510, %513 : vector<34x30xf32>
    %c77 = arith.constant 77 : index
    %515 = memref.load %arg6[%c77] : memref<90xf32, #tpu.memory_space<smem>>
    %516 = vector.broadcast %515 : f32 to vector<34x30xf32>
    %517 = arith.mulf %516, %189 : vector<34x30xf32>
    %518 = arith.addf %514, %517 : vector<34x30xf32>
    %c78 = arith.constant 78 : index
    %519 = memref.load %arg6[%c78] : memref<90xf32, #tpu.memory_space<smem>>
    %520 = vector.broadcast %519 : f32 to vector<34x30xf32>
    %521 = arith.mulf %520, %198 : vector<34x30xf32>
    %522 = arith.addf %518, %521 : vector<34x30xf32>
    %c79 = arith.constant 79 : index
    %523 = memref.load %arg6[%c79] : memref<90xf32, #tpu.memory_space<smem>>
    %524 = vector.broadcast %523 : f32 to vector<34x30xf32>
    %525 = arith.mulf %524, %207 : vector<34x30xf32>
    %526 = arith.addf %522, %525 : vector<34x30xf32>
    %c80 = arith.constant 80 : index
    %527 = memref.load %arg6[%c80] : memref<90xf32, #tpu.memory_space<smem>>
    %528 = vector.broadcast %527 : f32 to vector<34x30xf32>
    %529 = arith.mulf %528, %171 : vector<34x30xf32>
    %c81 = arith.constant 81 : index
    %530 = memref.load %arg6[%c81] : memref<90xf32, #tpu.memory_space<smem>>
    %531 = vector.broadcast %530 : f32 to vector<34x30xf32>
    %532 = arith.mulf %531, %180 : vector<34x30xf32>
    %533 = arith.addf %529, %532 : vector<34x30xf32>
    %c82 = arith.constant 82 : index
    %534 = memref.load %arg6[%c82] : memref<90xf32, #tpu.memory_space<smem>>
    %535 = vector.broadcast %534 : f32 to vector<34x30xf32>
    %536 = arith.mulf %535, %189 : vector<34x30xf32>
    %537 = arith.addf %533, %536 : vector<34x30xf32>
    %c83 = arith.constant 83 : index
    %538 = memref.load %arg6[%c83] : memref<90xf32, #tpu.memory_space<smem>>
    %539 = vector.broadcast %538 : f32 to vector<34x30xf32>
    %540 = arith.mulf %539, %198 : vector<34x30xf32>
    %541 = arith.addf %537, %540 : vector<34x30xf32>
    %c84 = arith.constant 84 : index
    %542 = memref.load %arg6[%c84] : memref<90xf32, #tpu.memory_space<smem>>
    %543 = vector.broadcast %542 : f32 to vector<34x30xf32>
    %544 = arith.mulf %543, %207 : vector<34x30xf32>
    %545 = arith.addf %541, %544 : vector<34x30xf32>
    %c85 = arith.constant 85 : index
    %546 = memref.load %arg6[%c85] : memref<90xf32, #tpu.memory_space<smem>>
    %547 = vector.broadcast %546 : f32 to vector<34x30xf32>
    %548 = arith.mulf %547, %171 : vector<34x30xf32>
    %c86 = arith.constant 86 : index
    %549 = memref.load %arg6[%c86] : memref<90xf32, #tpu.memory_space<smem>>
    %550 = vector.broadcast %549 : f32 to vector<34x30xf32>
    %551 = arith.mulf %550, %180 : vector<34x30xf32>
    %552 = arith.addf %548, %551 : vector<34x30xf32>
    %c87 = arith.constant 87 : index
    %553 = memref.load %arg6[%c87] : memref<90xf32, #tpu.memory_space<smem>>
    %554 = vector.broadcast %553 : f32 to vector<34x30xf32>
    %555 = arith.mulf %554, %189 : vector<34x30xf32>
    %556 = arith.addf %552, %555 : vector<34x30xf32>
    %c88 = arith.constant 88 : index
    %557 = memref.load %arg6[%c88] : memref<90xf32, #tpu.memory_space<smem>>
    %558 = vector.broadcast %557 : f32 to vector<34x30xf32>
    %559 = arith.mulf %558, %198 : vector<34x30xf32>
    %560 = arith.addf %556, %559 : vector<34x30xf32>
    %c89 = arith.constant 89 : index
    %561 = memref.load %arg6[%c89] : memref<90xf32, #tpu.memory_space<smem>>
    %562 = vector.broadcast %561 : f32 to vector<34x30xf32>
    %563 = arith.mulf %562, %207 : vector<34x30xf32>
    %564 = arith.addf %560, %563 : vector<34x30xf32>
    %565 = tpu.concatenate %526, %545, %564 in 0 : vector<34x30xf32>, vector<34x30xf32>, vector<34x30xf32> -> vector<102x30xf32>
    %c5_53 = arith.constant 5 : index
    %566 = memref.load %arg7[%c5_53] : memref<6xf32, #tpu.memory_space<smem>>
    %567 = vector.broadcast %566 : f32 to vector<1x30xf32>
    %568 = tpu.concatenate %265, %325, %385, %445, %505, %565 in 1 : vector<102x30xf32>, vector<102x30xf32>, vector<102x30xf32>, vector<102x30xf32>, vector<102x30xf32>, vector<102x30xf32> -> vector<102x180xf32>
    %569 = tpu.concatenate %267, %327, %387, %447, %507, %567 in 1 : vector<1x30xf32>, vector<1x30xf32>, vector<1x30xf32>, vector<1x30xf32>, vector<1x30xf32>, vector<1x30xf32> -> vector<1x180xf32>
    %cst_54 = arith.constant dense<0.000000e+00> : vector<64x180xf32>
    %570 = tpu.matmul %162, %568, %cst_54 {dimension_numbers = #tpu.dot_dimension_numbers<[1], [0], [0], [1], [0, 0, 1, 1], [], []>} : vector<64x102xf32>, vector<102x180xf32>, vector<64x180xf32> -> vector<64x180xf32>
    %571 = vector.broadcast %569 : vector<1x180xf32> to vector<64x180xf32>
    %572 = arith.addf %570, %571 : vector<64x180xf32>
    %cst_55 = arith.constant 0.000000e+00 : f32
    %573 = vector.broadcast %cst_55 : f32 to vector<64x180xf32>
    %574 = arith.maximumf %572, %573 : vector<64x180xf32>
    %575 = tpu.iota {dimensions = array<i32: 0>} : vector<30x14xi32>
    %576 = tpu.iota {dimensions = array<i32: 1>} : vector<30x14xi32>
    %c2_i32_56 = arith.constant 2 : i32
    %577 = vector.broadcast %c2_i32_56 : i32 to vector<30x14xi32>
    %578 = arith.muli %577, %576 : vector<30x14xi32>
    %c0_i32_57 = arith.constant 0 : i32
    %579 = vector.broadcast %c0_i32_57 : i32 to vector<30x14xi32>
    %580 = arith.addi %578, %579 : vector<30x14xi32>
    %581 = arith.cmpi eq, %575, %580 : vector<30x14xi32>
    %582 = arith.extui %581 : vector<30x14xi1> to vector<30x14xi32>
    %583 = arith.sitofp %582 : vector<30x14xi32> to vector<30x14xf32>
    %cst_58 = arith.constant 0.000000e+00 : f32
    %584 = vector.broadcast %cst_58 : f32 to vector<30x14xf32>
    %585 = tpu.concatenate %583, %584, %584, %584, %584, %584 in 1 : vector<30x14xf32>, vector<30x14xf32>, vector<30x14xf32>, vector<30x14xf32>, vector<30x14xf32>, vector<30x14xf32> -> vector<30x84xf32>
    %586 = tpu.concatenate %584, %583, %584, %584, %584, %584 in 1 : vector<30x14xf32>, vector<30x14xf32>, vector<30x14xf32>, vector<30x14xf32>, vector<30x14xf32>, vector<30x14xf32> -> vector<30x84xf32>
    %587 = tpu.concatenate %584, %584, %583, %584, %584, %584 in 1 : vector<30x14xf32>, vector<30x14xf32>, vector<30x14xf32>, vector<30x14xf32>, vector<30x14xf32>, vector<30x14xf32> -> vector<30x84xf32>
    %588 = tpu.concatenate %584, %584, %584, %583, %584, %584 in 1 : vector<30x14xf32>, vector<30x14xf32>, vector<30x14xf32>, vector<30x14xf32>, vector<30x14xf32>, vector<30x14xf32> -> vector<30x84xf32>
    %589 = tpu.concatenate %584, %584, %584, %584, %583, %584 in 1 : vector<30x14xf32>, vector<30x14xf32>, vector<30x14xf32>, vector<30x14xf32>, vector<30x14xf32>, vector<30x14xf32> -> vector<30x84xf32>
    %590 = tpu.concatenate %584, %584, %584, %584, %584, %583 in 1 : vector<30x14xf32>, vector<30x14xf32>, vector<30x14xf32>, vector<30x14xf32>, vector<30x14xf32>, vector<30x14xf32> -> vector<30x84xf32>
    %591 = tpu.concatenate %585, %586, %587, %588, %589, %590 in 0 : vector<30x84xf32>, vector<30x84xf32>, vector<30x84xf32>, vector<30x84xf32>, vector<30x84xf32>, vector<30x84xf32> -> vector<180x84xf32>
    %cst_59 = arith.constant dense<0.000000e+00> : vector<64x84xf32>
    %592 = tpu.matmul %574, %591, %cst_59 {dimension_numbers = #tpu.dot_dimension_numbers<[1], [0], [0], [1], [0, 0, 1, 1], [], []>} : vector<64x180xf32>, vector<180x84xf32>, vector<64x84xf32> -> vector<64x84xf32>
    %593 = tpu.iota {dimensions = array<i32: 0>} : vector<30x14xi32>
    %594 = tpu.iota {dimensions = array<i32: 1>} : vector<30x14xi32>
    %c2_i32_60 = arith.constant 2 : i32
    %595 = vector.broadcast %c2_i32_60 : i32 to vector<30x14xi32>
    %596 = arith.muli %595, %594 : vector<30x14xi32>
    %c1_i32_61 = arith.constant 1 : i32
    %597 = vector.broadcast %c1_i32_61 : i32 to vector<30x14xi32>
    %598 = arith.addi %596, %597 : vector<30x14xi32>
    %599 = arith.cmpi eq, %593, %598 : vector<30x14xi32>
    %600 = arith.extui %599 : vector<30x14xi1> to vector<30x14xi32>
    %601 = arith.sitofp %600 : vector<30x14xi32> to vector<30x14xf32>
    %cst_62 = arith.constant 0.000000e+00 : f32
    %602 = vector.broadcast %cst_62 : f32 to vector<30x14xf32>
    %603 = tpu.concatenate %601, %602, %602, %602, %602, %602 in 1 : vector<30x14xf32>, vector<30x14xf32>, vector<30x14xf32>, vector<30x14xf32>, vector<30x14xf32>, vector<30x14xf32> -> vector<30x84xf32>
    %604 = tpu.concatenate %602, %601, %602, %602, %602, %602 in 1 : vector<30x14xf32>, vector<30x14xf32>, vector<30x14xf32>, vector<30x14xf32>, vector<30x14xf32>, vector<30x14xf32> -> vector<30x84xf32>
    %605 = tpu.concatenate %602, %602, %601, %602, %602, %602 in 1 : vector<30x14xf32>, vector<30x14xf32>, vector<30x14xf32>, vector<30x14xf32>, vector<30x14xf32>, vector<30x14xf32> -> vector<30x84xf32>
    %606 = tpu.concatenate %602, %602, %602, %601, %602, %602 in 1 : vector<30x14xf32>, vector<30x14xf32>, vector<30x14xf32>, vector<30x14xf32>, vector<30x14xf32>, vector<30x14xf32> -> vector<30x84xf32>
    %607 = tpu.concatenate %602, %602, %602, %602, %601, %602 in 1 : vector<30x14xf32>, vector<30x14xf32>, vector<30x14xf32>, vector<30x14xf32>, vector<30x14xf32>, vector<30x14xf32> -> vector<30x84xf32>
    %608 = tpu.concatenate %602, %602, %602, %602, %602, %601 in 1 : vector<30x14xf32>, vector<30x14xf32>, vector<30x14xf32>, vector<30x14xf32>, vector<30x14xf32>, vector<30x14xf32> -> vector<30x84xf32>
    %609 = tpu.concatenate %603, %604, %605, %606, %607, %608 in 0 : vector<30x84xf32>, vector<30x84xf32>, vector<30x84xf32>, vector<30x84xf32>, vector<30x84xf32>, vector<30x84xf32> -> vector<180x84xf32>
    %cst_63 = arith.constant dense<0.000000e+00> : vector<64x84xf32>
    %610 = tpu.matmul %574, %609, %cst_63 {dimension_numbers = #tpu.dot_dimension_numbers<[1], [0], [0], [1], [0, 0, 1, 1], [], []>} : vector<64x180xf32>, vector<180x84xf32>, vector<64x84xf32> -> vector<64x84xf32>
    %611 = arith.maximumf %592, %610 : vector<64x84xf32>
    %612 = tpu.iota {dimensions = array<i32: 0>} : vector<30x14xi32>
    %613 = tpu.iota {dimensions = array<i32: 1>} : vector<30x14xi32>
    %c2_i32_64 = arith.constant 2 : i32
    %614 = vector.broadcast %c2_i32_64 : i32 to vector<30x14xi32>
    %615 = arith.muli %614, %613 : vector<30x14xi32>
    %c2_i32_65 = arith.constant 2 : i32
    %616 = vector.broadcast %c2_i32_65 : i32 to vector<30x14xi32>
    %617 = arith.addi %615, %616 : vector<30x14xi32>
    %618 = arith.cmpi eq, %612, %617 : vector<30x14xi32>
    %619 = arith.extui %618 : vector<30x14xi1> to vector<30x14xi32>
    %620 = arith.sitofp %619 : vector<30x14xi32> to vector<30x14xf32>
    %cst_66 = arith.constant 0.000000e+00 : f32
    %621 = vector.broadcast %cst_66 : f32 to vector<30x14xf32>
    %622 = tpu.concatenate %620, %621, %621, %621, %621, %621 in 1 : vector<30x14xf32>, vector<30x14xf32>, vector<30x14xf32>, vector<30x14xf32>, vector<30x14xf32>, vector<30x14xf32> -> vector<30x84xf32>
    %623 = tpu.concatenate %621, %620, %621, %621, %621, %621 in 1 : vector<30x14xf32>, vector<30x14xf32>, vector<30x14xf32>, vector<30x14xf32>, vector<30x14xf32>, vector<30x14xf32> -> vector<30x84xf32>
    %624 = tpu.concatenate %621, %621, %620, %621, %621, %621 in 1 : vector<30x14xf32>, vector<30x14xf32>, vector<30x14xf32>, vector<30x14xf32>, vector<30x14xf32>, vector<30x14xf32> -> vector<30x84xf32>
    %625 = tpu.concatenate %621, %621, %621, %620, %621, %621 in 1 : vector<30x14xf32>, vector<30x14xf32>, vector<30x14xf32>, vector<30x14xf32>, vector<30x14xf32>, vector<30x14xf32> -> vector<30x84xf32>
    %626 = tpu.concatenate %621, %621, %621, %621, %620, %621 in 1 : vector<30x14xf32>, vector<30x14xf32>, vector<30x14xf32>, vector<30x14xf32>, vector<30x14xf32>, vector<30x14xf32> -> vector<30x84xf32>
    %627 = tpu.concatenate %621, %621, %621, %621, %621, %620 in 1 : vector<30x14xf32>, vector<30x14xf32>, vector<30x14xf32>, vector<30x14xf32>, vector<30x14xf32>, vector<30x14xf32> -> vector<30x84xf32>
    %628 = tpu.concatenate %622, %623, %624, %625, %626, %627 in 0 : vector<30x84xf32>, vector<30x84xf32>, vector<30x84xf32>, vector<30x84xf32>, vector<30x84xf32>, vector<30x84xf32> -> vector<180x84xf32>
    %cst_67 = arith.constant dense<0.000000e+00> : vector<64x84xf32>
    %629 = tpu.matmul %574, %628, %cst_67 {dimension_numbers = #tpu.dot_dimension_numbers<[1], [0], [0], [1], [0, 0, 1, 1], [], []>} : vector<64x180xf32>, vector<180x84xf32>, vector<64x84xf32> -> vector<64x84xf32>
    %630 = arith.maximumf %611, %629 : vector<64x84xf32>
    %c0_68 = arith.constant 0 : index
    %c0_69 = arith.constant 0 : index
    %631 = vector.load %arg2[%c0_68, %c0_69] : memref<84x6xf32, #tpu.memory_space<vmem>>, vector<84x6xf32>
    %cst_70 = arith.constant dense<0.000000e+00> : vector<64x6xf32>
    %632 = tpu.matmul %630, %631, %cst_70 {dimension_numbers = #tpu.dot_dimension_numbers<[1], [0], [0], [1], [0, 0, 1, 1], [], []>} : vector<64x84xf32>, vector<84x6xf32>, vector<64x6xf32> -> vector<64x6xf32>
    %c0_71 = arith.constant 0 : index
    %c0_72 = arith.constant 0 : index
    %633 = vector.load %arg3[%c0_71, %c0_72] : memref<1x6xf32, #tpu.memory_space<vmem>>, vector<1x6xf32>
    %634 = vector.broadcast %633 : vector<1x6xf32> to vector<64x6xf32>
    %635 = arith.addf %632, %634 : vector<64x6xf32>
    %c0_73 = arith.constant 0 : index
    %c0_74 = arith.constant 0 : index
    %636 = vector.load %arg8[%c0_73, %c0_74] : memref<64x6xf32, #tpu.memory_space<vmem>>, vector<64x6xf32>
    tpu.vector_store %arg8[%c0_73, %c0_74], %635 {strides = array<i32>} : memref<64x6xf32, #tpu.memory_space<vmem>>, vector<64x6xf32>,
    return
  }
  func.func @transform_0(%arg0: i32) -> (i32, i32) {
    %c0_i32 = arith.constant 0 : i32
    %c0_i32_0 = arith.constant 0 : i32
    return %arg0, %c0_i32 : i32, i32
  }
  func.func @transform_1(%arg0: i32) -> (i32, i32) {
    %c0_i32 = arith.constant 0 : i32
    %c0_i32_0 = arith.constant 0 : i32
    %c0_i32_1 = arith.constant 0 : i32
    return %c0_i32, %c0_i32_0 : i32, i32
  }
  func.func @transform_2(%arg0: i32) -> (i32, i32) {
    %c0_i32 = arith.constant 0 : i32
    %c0_i32_0 = arith.constant 0 : i32
    %c0_i32_1 = arith.constant 0 : i32
    return %c0_i32, %c0_i32_0 : i32, i32
  }
  func.func @transform_3(%arg0: i32) -> i32 {
    %c0_i32 = arith.constant 0 : i32
    %c0_i32_0 = arith.constant 0 : i32
    return %c0_i32 : i32
  }
  func.func @transform_4(%arg0: i32) -> i32 {
    %c0_i32 = arith.constant 0 : i32
    %c0_i32_0 = arith.constant 0 : i32
    return %c0_i32 : i32
  }
  func.func @transform_5(%arg0: i32) -> i32 {
    %c0_i32 = arith.constant 0 : i32
    %c0_i32_0 = arith.constant 0 : i32
    return %c0_i32 : i32
  }
  func.func @transform_6(%arg0: i32) -> i32 {
    %c0_i32 = arith.constant 0 : i32
    %c0_i32_0 = arith.constant 0 : i32
    return %c0_i32 : i32
  }
  func.func @transform_7(%arg0: i32) -> (i32, i32) {
    %c0_i32 = arith.constant 0 : i32
    %c0_i32_0 = arith.constant 0 : i32
    return %arg0, %c0_i32 : i32, i32
  }
}

</mosaic_0001>

<llo_original>
// kernel: tpu_custom_call.1
$region0: #{tpu_custom_call.1}
  #allocation0 [shape = 'u32[]', space=smem, size = 0x4, offset = 0x4, fixed_abs, tag = 'smem constant byte address 0x4 - core index']
  #allocation1 [shape = 'u32[144,128]{1,0:T(1,128)}', space=vmem, size = 0x12000, scoped, tag = 'internal scratch']
  %s0 = inlined_call_operand.vmem [shape: f32[64,73], index: 0, kind: input, shape index: {}]
  %s1 = inlined_call_operand.vmem [shape: f32[84,6], index: 1, kind: input, shape index: {}]
  %s2 = inlined_call_operand.vmem [shape: f32[1,6], index: 2, kind: input, shape index: {}]
  %s3 = inlined_call_operand.vmem [shape: f32[15], index: 3, kind: input, shape index: {}]
  %s4 = inlined_call_operand.vmem [shape: f32[3], index: 4, kind: input, shape index: {}]
  %s5 = inlined_call_operand.vmem [shape: f32[90], index: 5, kind: input, shape index: {}]
  %s6 = inlined_call_operand.vmem [shape: f32[6], index: 6, kind: input, shape index: {}]
  %s7 = inlined_call_operand.vmem [shape: f32[64,6], index: 7, kind: output, shape index: {}]
  %s8 = sld [smem:[#allocation0]]
  $region54: #{tpu_custom_call.1} parent=0
    _
  %s10 = ssub.s32 1, %s8
  %s11 = scalar_select 0, %s10, %s8
  $region1: #{tpu_custom_call.1} parent=0
    #allocation2 [shape = 'u8[512]{0}', space=smem, size = 0x200, scoped, tag = 'input window, operand 3, single buffered']
    #allocation3 [shape = 's32[1]{0}', space=sflag, size = 0x4, scoped, tag = 'scoped memory for tpu_custom_call.1']
    #allocation4 [shape = 'u8[512]{0}', space=smem, size = 0x200, scoped, tag = 'input window, operand 4, single buffered']
    #allocation5 [shape = 's32[1]{0}', space=sflag, size = 0x4, scoped, tag = 'scoped memory for tpu_custom_call.1']
    #allocation6 [shape = 'u8[512]{0}', space=smem, size = 0x200, scoped, tag = 'input window, operand 5, single buffered']
    #allocation7 [shape = 'u8[512]{0}', space=smem, size = 0x200, scoped, tag = 'input window, operand 6, single buffered']
    #allocation8 [shape = 's32[1]{0}', space=sflag, size = 0x4, scoped, tag = 'scoped memory for tpu_custom_call.1']
    %12 = vsyncpa [#allocation3], 0
    %13 = vsyncpa [#allocation5], 0
    %14 = vsyncpa [#allocation8], 0
    // Predicated region
    $region2: #{tpu_custom_call.1} parent=1 // pred_check
      _
    $region3: #{tpu_custom_call.1} parent=1 // pred_check_branch
      %16 = sbr.rel (0) target = $region5
    $region4: #{tpu_custom_call.1} parent=1 // pred_region
      _
    $region5: #{tpu_custom_call.1} parent=1 // pred_fallthru
      _
    // Predicated region
    $region6: #{tpu_custom_call.1} parent=1 // pred_check
      _
    $region7: #{tpu_custom_call.1} parent=1 // pred_check_branch
      %18 = sbr.rel (0) target = $region9
    $region8: #{tpu_custom_call.1} parent=1 // pred_region
      _
    $region9: #{tpu_custom_call.1} parent=1 // pred_fallthru
      _
    // Predicated region
    $region10: #{tpu_custom_call.1} parent=1 // pred_check
      _
    $region11: #{tpu_custom_call.1} parent=1 // pred_check_branch
      %20 = sbr.rel (0) target = $region13
    $region12: #{tpu_custom_call.1} parent=1 // pred_region
      _
    $region13: #{tpu_custom_call.1} parent=1 // pred_fallthru
      _
    // Predicated region
    $region14: #{tpu_custom_call.1} parent=1 // pred_check
      _
    $region15: #{tpu_custom_call.1} parent=1 // pred_check_branch
      %22 = sbr.rel (0) target = $region17
    $region16: #{tpu_custom_call.1} parent=1 // pred_region
      %s24 = ssub.s32 16, 16
      %25 = vsyncadd [#allocation3], %s24
      %s27 = sshll.u32 %s3, 4
      %s28 = int_to_ptr.vmem [resolvable:$true] %s27
      %30 = dma.vmem_to_smem %s28, 16, [#allocation2], [#allocation3]
    $region17: #{tpu_custom_call.1} parent=1 // pred_fallthru
      _
    // Predicated region
    $region18: #{tpu_custom_call.1} parent=1 // pred_check
      _
    $region19: #{tpu_custom_call.1} parent=1 // pred_check_branch
      %32 = sbr.rel (0) target = $region21
    $region20: #{tpu_custom_call.1} parent=1 // pred_region
      %s34 = ssub.s32 16, 16
      %35 = vsyncadd [#allocation5], %s34
      %s37 = sshll.u32 %s4, 4
      %s38 = int_to_ptr.vmem [resolvable:$true] %s37
      %40 = dma.vmem_to_smem %s38, 16, [#allocation4], [#allocation5]
    $region21: #{tpu_custom_call.1} parent=1 // pred_fallthru
      _
    // Predicated region
    $region22: #{tpu_custom_call.1} parent=1 // pred_check
      _
    $region23: #{tpu_custom_call.1} parent=1 // pred_check_branch
      %42 = sbr.rel (0) target = $region25
    $region24: #{tpu_custom_call.1} parent=1 // pred_region
      %s44 = ssub.s32 16, 16
      %45 = vsyncadd [#allocation5], %s44
      %s47 = sshll.u32 %s5, 4
      %s48 = int_to_ptr.vmem [resolvable:$true] %s47
      %50 = dma.vmem_to_smem %s48, 16, [#allocation6], [#allocation5]
    $region25: #{tpu_custom_call.1} parent=1 // pred_fallthru
      _
    // Predicated region
    $region26: #{tpu_custom_call.1} parent=1 // pred_check
      _
    $region27: #{tpu_custom_call.1} parent=1 // pred_check_branch
      %52 = sbr.rel (0) target = $region29
    $region28: #{tpu_custom_call.1} parent=1 // pred_region
      %s54 = ssub.s32 16, 16
      %55 = vsyncadd [#allocation8], %s54
      %s57 = sshll.u32 %s6, 4
      %s58 = int_to_ptr.vmem [resolvable:$true] %s57
      %60 = dma.vmem_to_smem %s58, 16, [#allocation7], [#allocation8]
    $region29: #{tpu_custom_call.1} parent=1 // pred_fallthru
      _
    // Predicated region
    $region30: #{tpu_custom_call.1} parent=1 // pred_check
      _
    $region31: #{tpu_custom_call.1} parent=1 // pred_check_branch
      %62 = sbr.rel (0) target = $region33
    $region32: #{tpu_custom_call.1} parent=1 // pred_region
      %63 = dma.done [#allocation3], 16
    $region33: #{tpu_custom_call.1} parent=1 // pred_fallthru
      _
    // Predicated region
    $region34: #{tpu_custom_call.1} parent=1 // pred_check
      _
    $region35: #{tpu_custom_call.1} parent=1 // pred_check_branch
      %65 = sbr.rel (0) target = $region37
    $region36: #{tpu_custom_call.1} parent=1 // pred_region
      %66 = dma.done [#allocation5], 16
    $region37: #{tpu_custom_call.1} parent=1 // pred_fallthru
      _
    // Predicated region
    $region38: #{tpu_custom_call.1} parent=1 // pred_check
      _
    $region39: #{tpu_custom_call.1} parent=1 // pred_check_branch
      %68 = sbr.rel (0) target = $region41
    $region40: #{tpu_custom_call.1} parent=1 // pred_region
      %69 = dma.done [#allocation5], 16
    $region41: #{tpu_custom_call.1} parent=1 // pred_fallthru
      _
    // Predicated region
    $region42: #{tpu_custom_call.1} parent=1 // pred_check
      _
    $region43: #{tpu_custom_call.1} parent=1 // pred_check_branch
      %71 = sbr.rel (0) target = $region45
    $region44: #{tpu_custom_call.1} parent=1 // pred_region
      %72 = dma.done [#allocation8], 16
    $region45: #{tpu_custom_call.1} parent=1 // pred_fallthru
      _
    %73 = sfence
    %v74 = vld [vmem:[%s0] sm:$0xff]
    %v75 = vld [vmem:[%s0 + $0x8] sm:$0xff]
    %v76 = vld [vmem:[%s0 + $0x10] sm:$0xff]
    %v77 = vld [vmem:[%s0 + $0x18] sm:$0xff]
    %v78 = vld [vmem:[%s0 + $0x20] sm:$0xff]
    %v79 = vld [vmem:[%s0 + $0x28] sm:$0xff]
    %v80 = vld [vmem:[%s0 + $0x30] sm:$0xff]
    %v81 = vld [vmem:[%s0 + $0x38] sm:$0xff]
    %v82 = vlaneseq
    %v83 = vshrl.u32 %v82, 7
    %v84 = vadd.s32 %v83, 8
    %v85 = vadd.s32 %v83, 16
    %v86 = vadd.s32 %v83, 24
    %v87 = vadd.s32 %v83, 32
    %v88 = vadd.s32 %v83, 40
    %v89 = vadd.s32 %v83, 48
    %v90 = vadd.s32 %v83, 56
    %v91 = vadd.s32 %v83, 64
    %v92 = vadd.s32 %v83, 72
    %v93 = vlaneseq
    %v94 = vand.u32 %v93, 127
    %vm95 = vcmp.eq.s32.totalorder %v83, %v94
    %vm96 = vcmp.eq.s32.totalorder %v84, %v94
    %vm97 = vcmp.eq.s32.totalorder %v85, %v94
    %vm98 = vcmp.eq.s32.totalorder %v86, %v94
    %vm99 = vcmp.eq.s32.totalorder %v87, %v94
    %vm100 = vcmp.eq.s32.totalorder %v88, %v94
    %vm101 = vcmp.eq.s32.totalorder %v89, %v94
    %vm102 = vcmp.eq.s32.totalorder %v90, %v94
    %vm103 = vcmp.eq.s32.totalorder %v91, %v94
    %vm104 = vcmp.eq.s32.totalorder %v92, %v94
    %v105 = vsel %vm95, 1, 0
    %v106 = vsel %vm96, 1, 0
    %v107 = vsel %vm97, 1, 0
    %v108 = vsel %vm98, 1, 0
    %v109 = vsel %vm99, 1, 0
    %v110 = vsel %vm100, 1, 0
    %v111 = vsel %vm101, 1, 0
    %v112 = vsel %vm102, 1, 0
    %v113 = vsel %vm103, 1, 0
    %v114 = vsel %vm104, 1, 0
    %v115 = vcvt.s32.f32 %v105
    %v116 = vcvt.s32.f32 %v106
    %v117 = vcvt.s32.f32 %v107
    %v118 = vcvt.s32.f32 %v108
    %v119 = vcvt.s32.f32 %v109
    %v120 = vcvt.s32.f32 %v110
    %v121 = vcvt.s32.f32 %v111
    %v122 = vcvt.s32.f32 %v112
    %v123 = vcvt.s32.f32 %v113
    %v124 = vcvt.s32.f32 %v114
    %v125 = vadd.s32 %v94, 1
    %vm126 = vcmp.eq.s32.totalorder %v83, %v125
    %vm127 = vcmp.eq.s32.totalorder %v84, %v125
    %vm128 = vcmp.eq.s32.totalorder %v85, %v125
    %vm129 = vcmp.eq.s32.totalorder %v86, %v125
    %vm130 = vcmp.eq.s32.totalorder %v87, %v125
    %vm131 = vcmp.eq.s32.totalorder %v88, %v125
    %vm132 = vcmp.eq.s32.totalorder %v89, %v125
    %vm133 = vcmp.eq.s32.totalorder %v90, %v125
    %vm134 = vcmp.eq.s32.totalorder %v91, %v125
    %vm135 = vcmp.eq.s32.totalorder %v92, %v125
    %v136 = vsel %vm126, 1, 0
    %v137 = vsel %vm127, 1, 0
    %v138 = vsel %vm128, 1, 0
    %v139 = vsel %vm129, 1, 0
    %v140 = vsel %vm130, 1, 0
    %v141 = vsel %vm131, 1, 0
    %v142 = vsel %vm132, 1, 0
    %v143 = vsel %vm133, 1, 0
    %v144 = vsel %vm134, 1, 0
    %v145 = vsel %vm135, 1, 0
    %v146 = vcvt.s32.f32 %v136
    %v147 = vcvt.s32.f32 %v137
    %v148 = vcvt.s32.f32 %v138
    %v149 = vcvt.s32.f32 %v139
    %v150 = vcvt.s32.f32 %v140
    %v151 = vcvt.s32.f32 %v141
    %v152 = vcvt.s32.f32 %v142
    %v153 = vcvt.s32.f32 %v143
    %v154 = vcvt.s32.f32 %v144
    %v155 = vcvt.s32.f32 %v145
    %v156 = vadd.s32 %v94, 2
    %vm157 = vcmp.eq.s32.totalorder %v83, %v156
    %vm158 = vcmp.eq.s32.totalorder %v84, %v156
    %vm159 = vcmp.eq.s32.totalorder %v85, %v156
    %vm160 = vcmp.eq.s32.totalorder %v86, %v156
    %vm161 = vcmp.eq.s32.totalorder %v87, %v156
    %vm162 = vcmp.eq.s32.totalorder %v88, %v156
    %vm163 = vcmp.eq.s32.totalorder %v89, %v156
    %vm164 = vcmp.eq.s32.totalorder %v90, %v156
    %vm165 = vcmp.eq.s32.totalorder %v91, %v156
    %vm166 = vcmp.eq.s32.totalorder %v92, %v156
    %v167 = vsel %vm157, 1, 0
    %v168 = vsel %vm158, 1, 0
    %v169 = vsel %vm159, 1, 0
    %v170 = vsel %vm160, 1, 0
    %v171 = vsel %vm161, 1, 0
    %v172 = vsel %vm162, 1, 0
    %v173 = vsel %vm163, 1, 0
    %v174 = vsel %vm164, 1, 0
    %v175 = vsel %vm165, 1, 0
    %v176 = vsel %vm166, 1, 0
    %v177 = vcvt.s32.f32 %v167
    %v178 = vcvt.s32.f32 %v168
    %v179 = vcvt.s32.f32 %v169
    %v180 = vcvt.s32.f32 %v170
    %v181 = vcvt.s32.f32 %v171
    %v182 = vcvt.s32.f32 %v172
    %v183 = vcvt.s32.f32 %v173
    %v184 = vcvt.s32.f32 %v174
    %v185 = vcvt.s32.f32 %v175
    %v186 = vcvt.s32.f32 %v176
    %v187 = vadd.s32 %v94, 3
    %vm188 = vcmp.eq.s32.totalorder %v83, %v187
    %vm189 = vcmp.eq.s32.totalorder %v84, %v187
    %vm190 = vcmp.eq.s32.totalorder %v85, %v187
    %vm191 = vcmp.eq.s32.totalorder %v86, %v187
    %vm192 = vcmp.eq.s32.totalorder %v87, %v187
    %vm193 = vcmp.eq.s32.totalorder %v88, %v187
    %vm194 = vcmp.eq.s32.totalorder %v89, %v187
    %vm195 = vcmp.eq.s32.totalorder %v90, %v187
    %vm196 = vcmp.eq.s32.totalorder %v91, %v187
    %vm197 = vcmp.eq.s32.totalorder %v92, %v187
    %v198 = vsel %vm188, 1, 0
    %v199 = vsel %vm189, 1, 0
    %v200 = vsel %vm190, 1, 0
    %v201 = vsel %vm191, 1, 0
    %v202 = vsel %vm192, 1, 0
    %v203 = vsel %vm193, 1, 0
    %v204 = vsel %vm194, 1, 0
    %v205 = vsel %vm195, 1, 0
    %v206 = vsel %vm196, 1, 0
    %v207 = vsel %vm197, 1, 0
    %v208 = vcvt.s32.f32 %v198
    %v209 = vcvt.s32.f32 %v199
    %v210 = vcvt.s32.f32 %v200
    %v211 = vcvt.s32.f32 %v201
    %v212 = vcvt.s32.f32 %v202
    %v213 = vcvt.s32.f32 %v203
    %v214 = vcvt.s32.f32 %v204
    %v215 = vcvt.s32.f32 %v205
    %v216 = vcvt.s32.f32 %v206
    %v217 = vcvt.s32.f32 %v207
    %v218 = vadd.s32 %v94, 4
    %vm219 = vcmp.eq.s32.totalorder %v83, %v218
    %vm220 = vcmp.eq.s32.totalorder %v84, %v218
    %vm221 = vcmp.eq.s32.totalorder %v85, %v218
    %vm222 = vcmp.eq.s32.totalorder %v86, %v218
    %vm223 = vcmp.eq.s32.totalorder %v87, %v218
    %vm224 = vcmp.eq.s32.totalorder %v88, %v218
    %vm225 = vcmp.eq.s32.totalorder %v89, %v218
    %vm226 = vcmp.eq.s32.totalorder %v90, %v218
    %vm227 = vcmp.eq.s32.totalorder %v91, %v218
    %vm228 = vcmp.eq.s32.totalorder %v92, %v218
    %v229 = vsel %vm219, 1, 0
    %v230 = vsel %vm220, 1, 0
    %v231 = vsel %vm221, 1, 0
    %v232 = vsel %vm222, 1, 0
    %v233 = vsel %vm223, 1, 0
    %v234 = vsel %vm224, 1, 0
    %v235 = vsel %vm225, 1, 0
    %v236 = vsel %vm226, 1, 0
    %v237 = vsel %vm227, 1, 0
    %v238 = vsel %vm228, 1, 0
    %v239 = vcvt.s32.f32 %v229
    %v240 = vcvt.s32.f32 %v230
    %v241 = vcvt.s32.f32 %v231
    %v242 = vcvt.s32.f32 %v232
    %v243 = vcvt.s32.f32 %v233
    %v244 = vcvt.s32.f32 %v234
    %v245 = vcvt.s32.f32 %v235
    %v246 = vcvt.s32.f32 %v236
    %v247 = vcvt.s32.f32 %v237
    %v248 = vcvt.s32.f32 %v238
    %s249 = sld [smem:[#allocation2]]
    %v250 = vstv %s249
    %v251 = vmul.f32 %v250, %v115
    %v252 = vmul.f32 %v250, %v116
    %v253 = vmul.f32 %v250, %v117
    %v254 = vmul.f32 %v250, %v118
    %v255 = vmul.f32 %v250, %v119
    %v256 = vmul.f32 %v250, %v120
    %v257 = vmul.f32 %v250, %v121
    %v258 = vmul.f32 %v250, %v122
    %v259 = vmul.f32 %v250, %v123
    %v260 = vmul.f32 %v250, %v124
    %s261 = sld [smem:[#allocation2 + $0x1]]
    %v262 = vstv %s261
    %v263 = vmul.f32 %v262, %v146
    %v264 = vmul.f32 %v262, %v147
    %v265 = vmul.f32 %v262, %v148
    %v266 = vmul.f32 %v262, %v149
    %v267 = vmul.f32 %v262, %v150
    %v268 = vmul.f32 %v262, %v151
    %v269 = vmul.f32 %v262, %v152
    %v270 = vmul.f32 %v262, %v153
    %v271 = vmul.f32 %v262, %v154
    %v272 = vmul.f32 %v262, %v155
    %v273 = vadd.f32 %v251, %v263
    %v274 = vadd.f32 %v252, %v264
    %v275 = vadd.f32 %v253, %v265
    %v276 = vadd.f32 %v254, %v266
    %v277 = vadd.f32 %v255, %v267
    %v278 = vadd.f32 %v256, %v268
    %v279 = vadd.f32 %v257, %v269
    %v280 = vadd.f32 %v258, %v270
    %v281 = vadd.f32 %v259, %v271
    %v282 = vadd.f32 %v260, %v272
    %s283 = sld [smem:[#allocation2 + $0x2]]
    %v284 = vstv %s283
    %v285 = vmul.f32 %v284, %v177
    %v286 = vmul.f32 %v284, %v178
    %v287 = vmul.f32 %v284, %v179
    %v288 = vmul.f32 %v284, %v180
    %v289 = vmul.f32 %v284, %v181
    %v290 = vmul.f32 %v284, %v182
    %v291 = vmul.f32 %v284, %v183
    %v292 = vmul.f32 %v284, %v184
    %v293 = vmul.f32 %v284, %v185
    %v294 = vmul.f32 %v284, %v186
    %v295 = vadd.f32 %v273, %v285
    %v296 = vadd.f32 %v274, %v286
    %v297 = vadd.f32 %v275, %v287
    %v298 = vadd.f32 %v276, %v288
    %v299 = vadd.f32 %v277, %v289
    %v300 = vadd.f32 %v278, %v290
    %v301 = vadd.f32 %v279, %v291
    %v302 = vadd.f32 %v280, %v292
    %v303 = vadd.f32 %v281, %v293
    %v304 = vadd.f32 %v282, %v294
    %s305 = sld [smem:[#allocation2 + $0x3]]
    %v306 = vstv %s305
    %v307 = vmul.f32 %v306, %v208
    %v308 = vmul.f32 %v306, %v209
    %v309 = vmul.f32 %v306, %v210
    %v310 = vmul.f32 %v306, %v211
    %v311 = vmul.f32 %v306, %v212
    %v312 = vmul.f32 %v306, %v213
    %v313 = vmul.f32 %v306, %v214
    %v314 = vmul.f32 %v306, %v215
    %v315 = vmul.f32 %v306, %v216
    %v316 = vmul.f32 %v306, %v217
    %v317 = vadd.f32 %v295, %v307
    %v318 = vadd.f32 %v296, %v308
    %v319 = vadd.f32 %v297, %v309
    %v320 = vadd.f32 %v298, %v310
    %v321 = vadd.f32 %v299, %v311
    %v322 = vadd.f32 %v300, %v312
    %v323 = vadd.f32 %v301, %v313
    %v324 = vadd.f32 %v302, %v314
    %v325 = vadd.f32 %v303, %v315
    %v326 = vadd.f32 %v304, %v316
    %s327 = sld [smem:[#allocation2 + $0x4]]
    %v328 = vstv %s327
    %v329 = vmul.f32 %v328, %v239
    %v330 = vmul.f32 %v328, %v240
    %v331 = vmul.f32 %v328, %v241
    %v332 = vmul.f32 %v328, %v242
    %v333 = vmul.f32 %v328, %v243
    %v334 = vmul.f32 %v328, %v244
    %v335 = vmul.f32 %v328, %v245
    %v336 = vmul.f32 %v328, %v246
    %v337 = vmul.f32 %v328, %v247
    %v338 = vmul.f32 %v328, %v248
    %v339 = vadd.f32 %v317, %v329
    %v340 = vadd.f32 %v318, %v330
    %v341 = vadd.f32 %v319, %v331
    %v342 = vadd.f32 %v320, %v332
    %v343 = vadd.f32 %v321, %v333
    %v344 = vadd.f32 %v322, %v334
    %v345 = vadd.f32 %v323, %v335
    %v346 = vadd.f32 %v324, %v336
    %v347 = vadd.f32 %v325, %v337
    %v348 = vadd.f32 %v326, %v338
    %s349 = sld [smem:[#allocation4]]
    %v350 = vstv %s349
    %s351 = sld [smem:[#allocation2 + $0x5]]
    %v352 = vstv %s351
    %v353 = vmul.f32 %v352, %v115
    %v354 = vmul.f32 %v352, %v116
    %v355 = vmul.f32 %v352, %v117
    %v356 = vmul.f32 %v352, %v118
    %v357 = vmul.f32 %v352, %v119
    %v358 = vmul.f32 %v352, %v120
    %v359 = vmul.f32 %v352, %v121
    %v360 = vmul.f32 %v352, %v122
    %v361 = vmul.f32 %v352, %v123
    %v362 = vmul.f32 %v352, %v124
    %s363 = sld [smem:[#allocation2 + $0x6]]
    %v364 = vstv %s363
    %v365 = vmul.f32 %v364, %v146
    %v366 = vmul.f32 %v364, %v147
    %v367 = vmul.f32 %v364, %v148
    %v368 = vmul.f32 %v364, %v149
    %v369 = vmul.f32 %v364, %v150
    %v370 = vmul.f32 %v364, %v151
    %v371 = vmul.f32 %v364, %v152
    %v372 = vmul.f32 %v364, %v153
    %v373 = vmul.f32 %v364, %v154
    %v374 = vmul.f32 %v364, %v155
    %v375 = vadd.f32 %v353, %v365
    %v376 = vadd.f32 %v354, %v366
    %v377 = vadd.f32 %v355, %v367
    %v378 = vadd.f32 %v356, %v368
    %v379 = vadd.f32 %v357, %v369
    %v380 = vadd.f32 %v358, %v370
    %v381 = vadd.f32 %v359, %v371
    %v382 = vadd.f32 %v360, %v372
    %v383 = vadd.f32 %v361, %v373
    %v384 = vadd.f32 %v362, %v374
    %s385 = sld [smem:[#allocation2 + $0x7]]
    %v386 = vstv %s385
    %v387 = vmul.f32 %v386, %v177
    %v388 = vmul.f32 %v386, %v178
    %v389 = vmul.f32 %v386, %v179
    %v390 = vmul.f32 %v386, %v180
    %v391 = vmul.f32 %v386, %v181
    %v392 = vmul.f32 %v386, %v182
    %v393 = vmul.f32 %v386, %v183
    %v394 = vmul.f32 %v386, %v184
    %v395 = vmul.f32 %v386, %v185
    %v396 = vmul.f32 %v386, %v186
    %v397 = vadd.f32 %v375, %v387
    %v398 = vadd.f32 %v376, %v388
    %v399 = vadd.f32 %v377, %v389
    %v400 = vadd.f32 %v378, %v390
    %v401 = vadd.f32 %v379, %v391
    %v402 = vadd.f32 %v380, %v392
    %v403 = vadd.f32 %v381, %v393
    %v404 = vadd.f32 %v382, %v394
    %v405 = vadd.f32 %v383, %v395
    %v406 = vadd.f32 %v384, %v396
    %s407 = sld [smem:[#allocation2 + $0x8]]
    %v408 = vstv %s407
    %v409 = vmul.f32 %v408, %v208
    %v410 = vmul.f32 %v408, %v209
    %v411 = vmul.f32 %v408, %v210
    %v412 = vmul.f32 %v408, %v211
    %v413 = vmul.f32 %v408, %v212
    %v414 = vmul.f32 %v408, %v213
    %v415 = vmul.f32 %v408, %v214
    %v416 = vmul.f32 %v408, %v215
    %v417 = vmul.f32 %v408, %v216
    %v418 = vmul.f32 %v408, %v217
    %v419 = vadd.f32 %v397, %v409
    %v420 = vadd.f32 %v398, %v410
    %v421 = vadd.f32 %v399, %v411
    %v422 = vadd.f32 %v400, %v412
    %v423 = vadd.f32 %v401, %v413
    %v424 = vadd.f32 %v402, %v414
    %v425 = vadd.f32 %v403, %v415
    %v426 = vadd.f32 %v404, %v416
    %v427 = vadd.f32 %v405, %v417
    %v428 = vadd.f32 %v406, %v418
    %s429 = sld [smem:[#allocation2 + $0x9]]
    %v430 = vstv %s429
    %v431 = vmul.f32 %v430, %v239
    %v432 = vmul.f32 %v430, %v240
    %v433 = vmul.f32 %v430, %v241
    %v434 = vmul.f32 %v430, %v242
    %v435 = vmul.f32 %v430, %v243
    %v436 = vmul.f32 %v430, %v244
    %v437 = vmul.f32 %v430, %v245
    %v438 = vmul.f32 %v430, %v246
    %v439 = vmul.f32 %v430, %v247
    %v440 = vmul.f32 %v430, %v248
    %v441 = vadd.f32 %v419, %v431
    %v442 = vadd.f32 %v420, %v432
    %v443 = vadd.f32 %v421, %v433
    %v444 = vadd.f32 %v422, %v434
    %v445 = vadd.f32 %v423, %v435
    %v446 = vadd.f32 %v424, %v436
    %v447 = vadd.f32 %v425, %v437
    %v448 = vadd.f32 %v426, %v438
    %v449 = vadd.f32 %v427, %v439
    %v450 = vadd.f32 %v428, %v440
    %s451 = sld [smem:[#allocation4 + $0x1]]
    %v452 = vstv %s451
    %s453 = sld [smem:[#allocation2 + $0xa]]
    %v454 = vstv %s453
    %v455 = vmul.f32 %v454, %v115
    %v456 = vmul.f32 %v454, %v116
    %v457 = vmul.f32 %v454, %v117
    %v458 = vmul.f32 %v454, %v118
    %v459 = vmul.f32 %v454, %v119
    %v460 = vmul.f32 %v454, %v120
    %v461 = vmul.f32 %v454, %v121
    %v462 = vmul.f32 %v454, %v122
    %v463 = vmul.f32 %v454, %v123
    %v464 = vmul.f32 %v454, %v124
    %s465 = sld [smem:[#allocation2 + $0xb]]
    %v466 = vstv %s465
    %v467 = vmul.f32 %v466, %v146
    %v468 = vmul.f32 %v466, %v147
    %v469 = vmul.f32 %v466, %v148
    %v470 = vmul.f32 %v466, %v149
    %v471 = vmul.f32 %v466, %v150
    %v472 = vmul.f32 %v466, %v151
    %v473 = vmul.f32 %v466, %v152
    %v474 = vmul.f32 %v466, %v153
    %v475 = vmul.f32 %v466, %v154
    %v476 = vmul.f32 %v466, %v155
    %v477 = vadd.f32 %v455, %v467
    %v478 = vadd.f32 %v456, %v468
    %v479 = vadd.f32 %v457, %v469
    %v480 = vadd.f32 %v458, %v470
    %v481 = vadd.f32 %v459, %v471
    %v482 = vadd.f32 %v460, %v472
    %v483 = vadd.f32 %v461, %v473
    %v484 = vadd.f32 %v462, %v474
    %v485 = vadd.f32 %v463, %v475
    %v486 = vadd.f32 %v464, %v476
    %s487 = sld [smem:[#allocation2 + $0xc]]
    %v488 = vstv %s487
    %v489 = vmul.f32 %v488, %v177
    %v490 = vmul.f32 %v488, %v178
    %v491 = vmul.f32 %v488, %v179
    %v492 = vmul.f32 %v488, %v180
    %v493 = vmul.f32 %v488, %v181
    %v494 = vmul.f32 %v488, %v182
    %v495 = vmul.f32 %v488, %v183
    %v496 = vmul.f32 %v488, %v184
    %v497 = vmul.f32 %v488, %v185
    %v498 = vmul.f32 %v488, %v186
    %v499 = vadd.f32 %v477, %v489
    %v500 = vadd.f32 %v478, %v490
    %v501 = vadd.f32 %v479, %v491
    %v502 = vadd.f32 %v480, %v492
    %v503 = vadd.f32 %v481, %v493
    %v504 = vadd.f32 %v482, %v494
    %v505 = vadd.f32 %v483, %v495
    %v506 = vadd.f32 %v484, %v496
    %v507 = vadd.f32 %v485, %v497
    %v508 = vadd.f32 %v486, %v498
    %s509 = sld [smem:[#allocation2 + $0xd]]
    %v510 = vstv %s509
    %v511 = vmul.f32 %v510, %v208
    %v512 = vmul.f32 %v510, %v209
    %v513 = vmul.f32 %v510, %v210
    %v514 = vmul.f32 %v510, %v211
    %v515 = vmul.f32 %v510, %v212
    %v516 = vmul.f32 %v510, %v213
    %v517 = vmul.f32 %v510, %v214
    %v518 = vmul.f32 %v510, %v215
    %v519 = vmul.f32 %v510, %v216
    %v520 = vmul.f32 %v510, %v217
    %v521 = vadd.f32 %v499, %v511
    %v522 = vadd.f32 %v500, %v512
    %v523 = vadd.f32 %v501, %v513
    %v524 = vadd.f32 %v502, %v514
    %v525 = vadd.f32 %v503, %v515
    %v526 = vadd.f32 %v504, %v516
    %v527 = vadd.f32 %v505, %v517
    %v528 = vadd.f32 %v506, %v518
    %v529 = vadd.f32 %v507, %v519
    %v530 = vadd.f32 %v508, %v520
    %s531 = sld [smem:[#allocation2 + $0xe]]
    %v532 = vstv %s531
    %v533 = vmul.f32 %v532, %v239
    %v534 = vmul.f32 %v532, %v240
    %v535 = vmul.f32 %v532, %v241
    %v536 = vmul.f32 %v532, %v242
    %v537 = vmul.f32 %v532, %v243
    %v538 = vmul.f32 %v532, %v244
    %v539 = vmul.f32 %v532, %v245
    %v540 = vmul.f32 %v532, %v246
    %v541 = vmul.f32 %v532, %v247
    %v542 = vmul.f32 %v532, %v248
    %v543 = vadd.f32 %v521, %v533
    %v544 = vadd.f32 %v522, %v534
    %v545 = vadd.f32 %v523, %v535
    %v546 = vadd.f32 %v524, %v536
    %v547 = vadd.f32 %v525, %v537
    %v548 = vadd.f32 %v526, %v538
    %v549 = vadd.f32 %v527, %v539
    %v550 = vadd.f32 %v528, %v540
    %v551 = vadd.f32 %v529, %v541
    %v552 = vadd.f32 %v530, %v542
    %s553 = sld [smem:[#allocation4 + $0x2]]
    %v554 = vstv %s553
    %565 = vrot.lane.b32.xlu0 %v441, 69
    %v566 = vpop.permute.xlu0 %565
    %567 = vrot.lane.b32.xlu0 %v442, 69
    %v568 = vpop.permute.xlu0 %567
    %569 = vrot.lane.b32.xlu0 %v443, 69
    %v570 = vpop.permute.xlu0 %569
    %571 = vrot.lane.b32.xlu0 %v444, 69
    %v572 = vpop.permute.xlu0 %571
    %573 = vrot.lane.b32.xlu0 %v445, 69
    %v574 = vpop.permute.xlu0 %573
    %575 = vrot.lane.b32.xlu0 %v446, 69
    %v576 = vpop.permute.xlu0 %575
    %577 = vrot.lane.b32.xlu0 %v447, 69
    %v578 = vpop.permute.xlu0 %577
    %579 = vrot.lane.b32.xlu0 %v448, 69
    %v580 = vpop.permute.xlu0 %579
    %581 = vrot.lane.b32.xlu0 %v449, 69
    %v582 = vpop.permute.xlu0 %581
    %583 = vrot.lane.b32.xlu0 %v450, 69
    %v584 = vpop.permute.xlu0 %583
    %605 = vrot.lane.b32.xlu0 %v543, 10
    %v606 = vpop.permute.xlu0 %605
    %607 = vrot.lane.b32.xlu0 %v544, 10
    %v608 = vpop.permute.xlu0 %607
    %609 = vrot.lane.b32.xlu0 %v545, 10
    %v610 = vpop.permute.xlu0 %609
    %611 = vrot.lane.b32.xlu0 %v546, 10
    %v612 = vpop.permute.xlu0 %611
    %613 = vrot.lane.b32.xlu0 %v547, 10
    %v614 = vpop.permute.xlu0 %613
    %615 = vrot.lane.b32.xlu0 %v548, 10
    %v616 = vpop.permute.xlu0 %615
    %617 = vrot.lane.b32.xlu0 %v549, 10
    %v618 = vpop.permute.xlu0 %617
    %619 = vrot.lane.b32.xlu0 %v550, 10
    %v620 = vpop.permute.xlu0 %619
    %621 = vrot.lane.b32.xlu0 %v551, 10
    %v622 = vpop.permute.xlu0 %621
    %623 = vrot.lane.b32.xlu0 %v552, 10
    %v624 = vpop.permute.xlu0 %623
    %vm635 = vcmask 564224
    %v636 = vsel %vm635, %v339, %v566
    %v637 = vsel %vm635, %v340, %v568
    %v638 = vsel %vm635, %v341, %v570
    %v639 = vsel %vm635, %v342, %v572
    %v640 = vsel %vm635, %v343, %v574
    %v641 = vsel %vm635, %v344, %v576
    %v642 = vsel %vm635, %v345, %v578
    %v643 = vsel %vm635, %v346, %v580
    %v644 = vsel %vm635, %v347, %v582
    %v645 = vsel %vm635, %v348, %v584
    %vm646 = vcmask 80896
    %v647 = vsel %vm646, %v566, %v606
    %v648 = vsel %vm646, %v568, %v608
    %v649 = vsel %vm646, %v570, %v610
    %v650 = vsel %vm646, %v572, %v612
    %v651 = vsel %vm646, %v574, %v614
    %v652 = vsel %vm646, %v576, %v616
    %v653 = vsel %vm646, %v578, %v618
    %v654 = vsel %vm646, %v580, %v620
    %v655 = vsel %vm646, %v582, %v622
    %v656 = vsel %vm646, %v584, %v624
    %v657 = vsel %vm635, %v350, %v452
    %v658 = vsel %vm646, %v452, %v554
    %v659 = vlaneseq
    %v660 = vshrl.u32 %v659, 7
    %v661 = vsub.s32 0, %v660
    %v662 = vrot.slane %v657, %v661
    %v663 = vlaneseq
    %v664 = vshrl.u32 %v663, 7
    %v665 = vsub.s32 0, %v664
    %v666 = vrot.slane %v658, %v665
    %vm667 = vcmask 596992
    %v669 = vsel %vm667, %v74, 0
    %v672 = vsel %vm667, %v75, 0
    %v675 = vsel %vm667, %v76, 0
    %v678 = vsel %vm667, %v77, 0
    %v681 = vsel %vm667, %v78, 0
    %v684 = vsel %vm667, %v79, 0
    %v687 = vsel %vm667, %v80, 0
    %v690 = vsel %vm667, %v81, 0
    %vm692 = vcmask 1040384
    %v694 = vsel %vm692, %v645, 0
    %v697 = vsel %vm692, %v656, 0
    %699 = vmatprep.subr.mxu0 0.0
    %700 = vmatpush1.msra.mxu0 0.0
    %701 = vmatprep.subr.mxu0 0.0
    %702 = vmatpush1.msra.mxu0 0.0
    %703 = vmatprep.subr.mxu0 0.0
    %704 = vmatpush1.msra.mxu0 0.0
    %705 = vmatprep.subr.mxu0 0.0
    %706 = vmatpush1.msra.mxu0 0.0
    %707 = vmatprep.subr.mxu0 0.0
    %708 = vmatpush1.msra.mxu0 0.0
    %709 = vmatprep.subr.mxu0 0.0
    %710 = vmatpush1.msra.mxu0 0.0
    %711 = vmatprep.subr.mxu0 %v697
    %712 = vmatpush1.msra.mxu0 %v694
    %713 = vmatprep.subr.mxu0 %v655
    %714 = vmatpush1.msra.mxu0 %v644
    %715 = vmatprep.subr.mxu0 %v654
    %716 = vmatpush1.msra.mxu0 %v643
    %717 = vmatprep.subr.mxu0 %v653
    %718 = vmatpush1.msra.mxu0 %v642
    %719 = vmatprep.subr.mxu0 %v652
    %720 = vmatpush1.msra.mxu0 %v641
    %721 = vmatprep.subr.mxu0 %v651
    %722 = vmatpush1.msra.mxu0 %v640
    %723 = vmatprep.subr.mxu0 %v650
    %724 = vmatpush1.msra.mxu0 %v639
    %725 = vmatprep.subr.mxu0 %v649
    %726 = vmatpush1.msra.mxu0 %v638
    %727 = vmatprep.subr.mxu0 %v648
    %728 = vmatpush1.msra.mxu0 %v637
    %729 = vmatprep.subr.mxu0 %v647
    %730 = vmatpush1.msra.mxu0 %v636
    %731 = vmatprep.subr.mxu0 0.0
    %732 = vmatpush2.msra.mxu0 0.0
    %733 = vmatprep.subr.mxu0 0.0
    %734 = vmatpush2.msra.mxu0 0.0
    %735 = vmatprep.subr.mxu0 0.0
    %736 = vmatpush2.msra.mxu0 0.0
    %737 = vmatprep.subr.mxu0 0.0
    %738 = vmatpush2.msra.mxu0 0.0
    %739 = vmatprep.subr.mxu0 0.0
    %740 = vmatpush2.msra.mxu0 0.0
    %741 = vmatprep.subr.mxu0 0.0
    %742 = vmatpush2.msra.mxu0 0.0
    %743 = vmatprep.subr.mxu0 0.0
    %744 = vmatpush2.msra.mxu0 0.0
    %745 = vmatprep.subr.mxu0 0.0
    %746 = vmatpush2.msra.mxu0 0.0
    %747 = vmatprep.subr.mxu0 0.0
    %748 = vmatpush2.msra.mxu0 0.0
    %749 = vmatprep.subr.mxu0 0.0
    %750 = vmatpush2.msra.mxu0 0.0
    %751 = vmatprep.subr.mxu0 0.0
    %752 = vmatpush2.msra.mxu0 0.0
    %753 = vmatprep.subr.mxu0 0.0
    %754 = vmatpush2.msra.mxu0 0.0
    %755 = vmatprep.subr.mxu0 0.0
    %756 = vmatpush2.msra.mxu0 0.0
    %757 = vmatprep.subr.mxu0 0.0
    %758 = vmatpush2.msra.mxu0 0.0
    %759 = vmatprep.subr.mxu0 0.0
    %760 = vmatpush2.msra.mxu0 0.0
    %761 = vmatprep.subr.mxu0 0.0
    %762 = vmatpush2.msra.mxu0 0.0
    %763 = vmatprep.mubr.f32.mxu0 0.0
    %764 = vmatmul.mubr.f32.gmra.mxu0 %v669
    %v765 = vpop.f32.mrf.mxu0
    %v766 = vadd.f32 %v662, %v765
    %v767 = vpop.f32.mrf.mxu0
    %v768 = vadd.f32 %v666, %v767
    %769 = vmatprep.mubr.f32.mxu0 0.0
    %770 = vmatmul.mubr.f32.gmra.mxu0 %v672
    %v771 = vpop.f32.mrf.mxu0
    %v772 = vadd.f32 %v662, %v771
    %v773 = vpop.f32.mrf.mxu0
    %v774 = vadd.f32 %v666, %v773
    %775 = vmatprep.mubr.f32.mxu0 0.0
    %776 = vmatmul.mubr.f32.gmra.mxu0 %v675
    %v777 = vpop.f32.mrf.mxu0
    %v778 = vadd.f32 %v662, %v777
    %v779 = vpop.f32.mrf.mxu0
    %v780 = vadd.f32 %v666, %v779
    %781 = vmatprep.mubr.f32.mxu0 0.0
    %782 = vmatmul.mubr.f32.gmra.mxu0 %v678
    %v783 = vpop.f32.mrf.mxu0
    %v784 = vadd.f32 %v662, %v783
    %v785 = vpop.f32.mrf.mxu0
    %v786 = vadd.f32 %v666, %v785
    %787 = vmatprep.mubr.f32.mxu0 0.0
    %788 = vmatmul.mubr.f32.gmra.mxu0 %v681
    %v789 = vpop.f32.mrf.mxu0
    %v790 = vadd.f32 %v662, %v789
    %v791 = vpop.f32.mrf.mxu0
    %v792 = vadd.f32 %v666, %v791
    %793 = vmatprep.mubr.f32.mxu0 0.0
    %794 = vmatmul.mubr.f32.gmra.mxu0 %v684
    %v795 = vpop.f32.mrf.mxu0
    %v796 = vadd.f32 %v662, %v795
    %v797 = vpop.f32.mrf.mxu0
    %v798 = vadd.f32 %v666, %v797
    %799 = vmatprep.mubr.f32.mxu0 0.0
    %800 = vmatmul.mubr.f32.gmra.mxu0 %v687
    %v801 = vpop.f32.mrf.mxu0
    %v802 = vadd.f32 %v662, %v801
    %v803 = vpop.f32.mrf.mxu0
    %v804 = vadd.f32 %v666, %v803
    %805 = vmatprep.mubr.f32.mxu0 0.0
    %806 = vmatmul.mubr.f32.gmra.mxu0 %v690
    %v807 = vpop.f32.mrf.mxu0
    %v808 = vadd.f32 %v662, %v807
    %v809 = vpop.f32.mrf.mxu0
    %v810 = vadd.f32 %v666, %v809
    %811 = vdwg.mxu0
    %v812 = vmax.f32 %v766, 0.0
    %v813 = vmax.f32 %v768, 0.0
    %v814 = vmax.f32 %v772, 0.0
    %v815 = vmax.f32 %v774, 0.0
    %v816 = vmax.f32 %v778, 0.0
    %v817 = vmax.f32 %v780, 0.0
    %v818 = vmax.f32 %v784, 0.0
    %v819 = vmax.f32 %v786, 0.0
    %v820 = vmax.f32 %v790, 0.0
    %v821 = vmax.f32 %v792, 0.0
    %v822 = vmax.f32 %v796, 0.0
    %v823 = vmax.f32 %v798, 0.0
    %v824 = vmax.f32 %v802, 0.0
    %v825 = vmax.f32 %v804, 0.0
    %v826 = vmax.f32 %v808, 0.0
    %v827 = vmax.f32 %v810, 0.0
    %v828 = vmul.u32 %v94, 2
    %vm829 = vcmp.eq.s32.totalorder %v83, %v828
    %vm830 = vcmp.eq.s32.totalorder %v84, %v828
    %vm831 = vcmp.eq.s32.totalorder %v85, %v828
    %vm832 = vcmp.eq.s32.totalorder %v86, %v828
    %vm833 = vcmp.eq.s32.totalorder %v87, %v828
    %vm834 = vcmp.eq.s32.totalorder %v88, %v828
    %vm835 = vcmp.eq.s32.totalorder %v89, %v828
    %vm836 = vcmp.eq.s32.totalorder %v90, %v828
    %vm837 = vcmp.eq.s32.totalorder %v91, %v828
    %v838 = vsel %vm829, 1, 0
    %v839 = vsel %vm830, 1, 0
    %v840 = vsel %vm831, 1, 0
    %v841 = vsel %vm832, 1, 0
    %v842 = vsel %vm833, 1, 0
    %v843 = vsel %vm834, 1, 0
    %v844 = vsel %vm835, 1, 0
    %v845 = vsel %vm836, 1, 0
    %v846 = vsel %vm837, 1, 0
    %v847 = vcvt.s32.f32 %v838
    %v848 = vcvt.s32.f32 %v839
    %v849 = vcvt.s32.f32 %v840
    %v850 = vcvt.s32.f32 %v841
    %v851 = vcvt.s32.f32 %v842
    %v852 = vcvt.s32.f32 %v843
    %v853 = vcvt.s32.f32 %v844
    %v854 = vcvt.s32.f32 %v845
    %v855 = vcvt.s32.f32 %v846
    %vm856 = vcmask 277504
    %v857 = vsel %vm856, %v847, 0.0
    %v858 = vsel %vm856, %v848, 0.0
    %v859 = vsel %vm856, %v849, 0.0
    %v860 = vsel %vm856, %v850, 0.0
    %v861 = vsel %vm856, %v851, 0.0
    %v862 = vsel %vm856, %v852, 0.0
    %v863 = vsel %vm856, %v853, 0.0
    %v864 = vsel %vm856, %v854, 0.0
    %v865 = vsel %vm856, %v855, 0.0
    %vm866 = vcmask 556032
    %v867 = vsel %vm866, %v857, 0.0
    %v868 = vsel %vm866, %v858, 0.0
    %v869 = vsel %vm866, %v859, 0.0
    %v870 = vsel %vm866, %v860, 0.0
    %v871 = vsel %vm866, %v861, 0.0
    %v872 = vsel %vm866, %v862, 0.0
    %v873 = vsel %vm866, %v863, 0.0
    %v874 = vsel %vm866, %v864, 0.0
    %v875 = vsel %vm866, %v865, 0.0
    %885 = vrot.lane.b32.xlu0 %v847, 34
    %v886 = vpop.permute.xlu0 %885
    %887 = vrot.lane.b32.xlu0 %v848, 34
    %v888 = vpop.permute.xlu0 %887
    %889 = vrot.lane.b32.xlu0 %v849, 34
    %v890 = vpop.permute.xlu0 %889
    %891 = vrot.lane.b32.xlu0 %v850, 34
    %v892 = vpop.permute.xlu0 %891
    %893 = vrot.lane.b32.xlu0 %v851, 34
    %v894 = vpop.permute.xlu0 %893
    %895 = vrot.lane.b32.xlu0 %v852, 34
    %v896 = vpop.permute.xlu0 %895
    %897 = vrot.lane.b32.xlu0 %v853, 34
    %v898 = vpop.permute.xlu0 %897
    %899 = vrot.lane.b32.xlu0 %v854, 34
    %v900 = vpop.permute.xlu0 %899
    %901 = vrot.lane.b32.xlu0 %v855, 34
    %v902 = vpop.permute.xlu0 %901
    %v912 = vsel %vm856, 0.0, %v886
    %v913 = vsel %vm856, 0.0, %v888
    %v914 = vsel %vm856, 0.0, %v890
    %v915 = vsel %vm856, 0.0, %v892
    %v916 = vsel %vm856, 0.0, %v894
    %v917 = vsel %vm856, 0.0, %v896
    %v918 = vsel %vm856, 0.0, %v898
    %v919 = vsel %vm856, 0.0, %v900
    %v920 = vsel %vm856, 0.0, %v902
    %v921 = vsel %vm866, %v912, 0.0
    %v922 = vsel %vm866, %v913, 0.0
    %v923 = vsel %vm866, %v914, 0.0
    %v924 = vsel %vm866, %v915, 0.0
    %v925 = vsel %vm866, %v916, 0.0
    %v926 = vsel %vm866, %v917, 0.0
    %v927 = vsel %vm866, %v918, 0.0
    %v928 = vsel %vm866, %v919, 0.0
    %v929 = vsel %vm866, %v920, 0.0
    %930 = vrot.lane.b32.xlu0 %v847, 68
    %v931 = vpop.permute.xlu0 %930
    %932 = vrot.lane.b32.xlu0 %v848, 68
    %v933 = vpop.permute.xlu0 %932
    %934 = vrot.lane.b32.xlu0 %v849, 68
    %v935 = vpop.permute.xlu0 %934
    %936 = vrot.lane.b32.xlu0 %v850, 68
    %v937 = vpop.permute.xlu0 %936
    %938 = vrot.lane.b32.xlu0 %v851, 68
    %v939 = vpop.permute.xlu0 %938
    %940 = vrot.lane.b32.xlu0 %v852, 68
    %v941 = vpop.permute.xlu0 %940
    %942 = vrot.lane.b32.xlu0 %v853, 68
    %v943 = vpop.permute.xlu0 %942
    %944 = vrot.lane.b32.xlu0 %v854, 68
    %v945 = vpop.permute.xlu0 %944
    %946 = vrot.lane.b32.xlu0 %v855, 68
    %v947 = vpop.permute.xlu0 %946
    %v957 = vsel %vm866, 0.0, %v931
    %v958 = vsel %vm866, 0.0, %v933
    %v959 = vsel %vm866, 0.0, %v935
    %v960 = vsel %vm866, 0.0, %v937
    %v961 = vsel %vm866, 0.0, %v939
    %v962 = vsel %vm866, 0.0, %v941
    %v963 = vsel %vm866, 0.0, %v943
    %v964 = vsel %vm866, 0.0, %v945
    %v965 = vsel %vm866, 0.0, %v947
    %vm975 = vcmask 1044480
    %v976 = vrot.slane %v921, 3
    %v977 = vrot.slane %v922, 3
    %v978 = vsel %vm975, %v976, %v977
    %v979 = vrot.slane %v923, 3
    %v980 = vsel %vm975, %v977, %v979
    %v981 = vrot.slane %v924, 3
    %v982 = vsel %vm975, %v979, %v981
    %v983 = vrot.slane %v925, 3
    %v984 = vsel %vm975, %v981, %v983
    %v985 = vrot.slane %v926, 3
    %v986 = vsel %vm975, %v983, %v985
    %v987 = vrot.slane %v927, 3
    %v988 = vsel %vm975, %v985, %v987
    %v989 = vrot.slane %v928, 3
    %v990 = vsel %vm975, %v987, %v989
    %v991 = vrot.slane %v929, 3
    %v992 = vsel %vm975, %v989, %v991
    %vm1012 = vcmask 1041408
    %v1013 = vrot.slane %v957, 6
    %v1014 = vrot.slane %v958, 6
    %v1015 = vsel %vm1012, %v1013, %v1014
    %v1016 = vrot.slane %v959, 6
    %v1017 = vsel %vm1012, %v1014, %v1016
    %v1018 = vrot.slane %v960, 6
    %v1019 = vsel %vm1012, %v1016, %v1018
    %v1020 = vrot.slane %v961, 6
    %v1021 = vsel %vm1012, %v1018, %v1020
    %v1022 = vrot.slane %v962, 6
    %v1023 = vsel %vm1012, %v1020, %v1022
    %v1024 = vrot.slane %v963, 6
    %v1025 = vsel %vm1012, %v1022, %v1024
    %v1026 = vrot.slane %v964, 6
    %v1027 = vsel %vm1012, %v1024, %v1026
    %v1028 = vrot.slane %v965, 6
    %v1029 = vsel %vm1012, %v1026, %v1028
    %v1038 = vsel %vm975, %v875, %v976
    %v1039 = vsel %vm1012, %v991, %v1013
    %vm1040 = vcmask 646144
    %v1042 = vsel %vm1040, %v813, 0
    %v1045 = vsel %vm1040, %v815, 0
    %v1048 = vsel %vm1040, %v817, 0
    %v1051 = vsel %vm1040, %v819, 0
    %v1054 = vsel %vm1040, %v821, 0
    %v1057 = vsel %vm1040, %v823, 0
    %v1060 = vsel %vm1040, %v825, 0
    %v1063 = vsel %vm1040, %v827, 0
    %vm1065 = vcmask 1046528
    %v1066 = vsel %vm1065, %v1029, 0
    %1068 = vmatprep.subr.mxu0 0.0
    %1069 = vmatpush1.msra.mxu0 %v990
    %1070 = vmatprep.subr.mxu0 0.0
    %1071 = vmatpush1.msra.mxu0 %v988
    %1072 = vmatprep.subr.mxu0 0.0
    %1073 = vmatpush1.msra.mxu0 %v986
    %1074 = vmatprep.subr.mxu0 0.0
    %1075 = vmatpush1.msra.mxu0 %v984
    %1076 = vmatprep.subr.mxu0 0.0
    %1077 = vmatpush1.msra.mxu0 %v982
    %1078 = vmatprep.subr.mxu0 0.0
    %1079 = vmatpush1.msra.mxu0 %v980
    %1080 = vmatprep.subr.mxu0 0.0
    %1081 = vmatpush1.msra.mxu0 %v978
    %1082 = vmatprep.subr.mxu0 0.0
    %1083 = vmatpush1.msra.mxu0 %v1038
    %1084 = vmatprep.subr.mxu0 0.0
    %1085 = vmatpush1.msra.mxu0 %v874
    %1086 = vmatprep.subr.mxu0 0.0
    %1087 = vmatpush1.msra.mxu0 %v873
    %1088 = vmatprep.subr.mxu0 0.0
    %1089 = vmatpush1.msra.mxu0 %v872
    %1090 = vmatprep.subr.mxu0 0.0
    %1091 = vmatpush1.msra.mxu0 %v871
    %1092 = vmatprep.subr.mxu0 0.0
    %1093 = vmatpush1.msra.mxu0 %v870
    %1094 = vmatprep.subr.mxu0 0.0
    %1095 = vmatpush1.msra.mxu0 %v869
    %1096 = vmatprep.subr.mxu0 0.0
    %1097 = vmatpush1.msra.mxu0 %v868
    %1098 = vmatprep.subr.mxu0 0.0
    %1099 = vmatpush1.msra.mxu0 %v867
    %1100 = vmatprep.subr.mxu0 0.0
    %1101 = vmatpush2.msra.mxu0 0.0
    %1102 = vmatprep.subr.mxu0 0.0
    %1103 = vmatpush2.msra.mxu0 0.0
    %1104 = vmatprep.subr.mxu0 0.0
    %1105 = vmatpush2.msra.mxu0 0.0
    %1106 = vmatprep.subr.mxu0 0.0
    %1107 = vmatpush2.msra.mxu0 0.0
    %1108 = vmatprep.subr.mxu0 0.0
    %1109 = vmatpush2.msra.mxu0 0.0
    %1110 = vmatprep.subr.mxu0 0.0
    %1111 = vmatpush2.msra.mxu0 0.0
    %1112 = vmatprep.subr.mxu0 0.0
    %1113 = vmatpush2.msra.mxu0 %v1066
    %1114 = vmatprep.subr.mxu0 0.0
    %1115 = vmatpush2.msra.mxu0 %v1027
    %1116 = vmatprep.subr.mxu0 0.0
    %1117 = vmatpush2.msra.mxu0 %v1025
    %1118 = vmatprep.subr.mxu0 0.0
    %1119 = vmatpush2.msra.mxu0 %v1023
    %1120 = vmatprep.subr.mxu0 0.0
    %1121 = vmatpush2.msra.mxu0 %v1021
    %1122 = vmatprep.subr.mxu0 0.0
    %1123 = vmatpush2.msra.mxu0 %v1019
    %1124 = vmatprep.subr.mxu0 0.0
    %1125 = vmatpush2.msra.mxu0 %v1017
    %1126 = vmatprep.subr.mxu0 0.0
    %1127 = vmatpush2.msra.mxu0 %v1015
    %1128 = vmatprep.subr.mxu0 0.0
    %1129 = vmatpush2.msra.mxu0 %v1039
    %1130 = vmatprep.subr.mxu0 0.0
    %1131 = vmatpush2.msra.mxu0 %v992
    %1132 = vmatprep.mubr.f32.mxu0 %v1042
    %1133 = vmatmul.mubr.f32.gmra.mxu0 %v812
    %v1134 = vpop.f32.mrf.mxu0
    %v1135 = vadd.f32 0.0, %v1134
    %v1136 = vpop.f32.mrf.mxu0
    %1137 = vmatprep.mubr.f32.mxu0 %v1045
    %1138 = vmatmul.mubr.f32.gmra.mxu0 %v814
    %v1139 = vpop.f32.mrf.mxu0
    %v1140 = vadd.f32 0.0, %v1139
    %v1141 = vpop.f32.mrf.mxu0
    %1142 = vmatprep.mubr.f32.mxu0 %v1048
    %1143 = vmatmul.mubr.f32.gmra.mxu0 %v816
    %v1144 = vpop.f32.mrf.mxu0
    %v1145 = vadd.f32 0.0, %v1144
    %v1146 = vpop.f32.mrf.mxu0
    %1147 = vmatprep.mubr.f32.mxu0 %v1051
    %1148 = vmatmul.mubr.f32.gmra.mxu0 %v818
    %v1149 = vpop.f32.mrf.mxu0
    %v1150 = vadd.f32 0.0, %v1149
    %v1151 = vpop.f32.mrf.mxu0
    %1152 = vmatprep.mubr.f32.mxu0 %v1054
    %1153 = vmatmul.mubr.f32.gmra.mxu0 %v820
    %v1154 = vpop.f32.mrf.mxu0
    %v1155 = vadd.f32 0.0, %v1154
    %v1156 = vpop.f32.mrf.mxu0
    %1157 = vmatprep.mubr.f32.mxu0 %v1057
    %1158 = vmatmul.mubr.f32.gmra.mxu0 %v822
    %v1159 = vpop.f32.mrf.mxu0
    %v1160 = vadd.f32 0.0, %v1159
    %v1161 = vpop.f32.mrf.mxu0
    %1162 = vmatprep.mubr.f32.mxu0 %v1060
    %1163 = vmatmul.mubr.f32.gmra.mxu0 %v824
    %v1164 = vpop.f32.mrf.mxu0
    %v1165 = vadd.f32 0.0, %v1164
    %v1166 = vpop.f32.mrf.mxu0
    %1167 = vmatprep.mubr.f32.mxu0 %v1063
    %1168 = vmatmul.mubr.f32.gmra.mxu0 %v826
    %v1169 = vpop.f32.mrf.mxu0
    %v1170 = vadd.f32 0.0, %v1169
    %v1171 = vpop.f32.mrf.mxu0
    %1172 = vdwg.mxu0
    %v1173 = vadd.s32 %v828, 1
    %vm1174 = vcmp.eq.s32.totalorder %v83, %v1173
    %vm1175 = vcmp.eq.s32.totalorder %v84, %v1173
    %vm1176 = vcmp.eq.s32.totalorder %v85, %v1173
    %vm1177 = vcmp.eq.s32.totalorder %v86, %v1173
    %vm1178 = vcmp.eq.s32.totalorder %v87, %v1173
    %vm1179 = vcmp.eq.s32.totalorder %v88, %v1173
    %vm1180 = vcmp.eq.s32.totalorder %v89, %v1173
    %vm1181 = vcmp.eq.s32.totalorder %v90, %v1173
    %vm1182 = vcmp.eq.s32.totalorder %v91, %v1173
    %v1183 = vsel %vm1174, 1, 0
    %v1184 = vsel %vm1175, 1, 0
    %v1185 = vsel %vm1176, 1, 0
    %v1186 = vsel %vm1177, 1, 0
    %v1187 = vsel %vm1178, 1, 0
    %v1188 = vsel %vm1179, 1, 0
    %v1189 = vsel %vm1180, 1, 0
    %v1190 = vsel %vm1181, 1, 0
    %v1191 = vsel %vm1182, 1, 0
    %v1192 = vcvt.s32.f32 %v1183
    %v1193 = vcvt.s32.f32 %v1184
    %v1194 = vcvt.s32.f32 %v1185
    %v1195 = vcvt.s32.f32 %v1186
    %v1196 = vcvt.s32.f32 %v1187
    %v1197 = vcvt.s32.f32 %v1188
    %v1198 = vcvt.s32.f32 %v1189
    %v1199 = vcvt.s32.f32 %v1190
    %v1200 = vcvt.s32.f32 %v1191
    %v1201 = vsel %vm856, %v1192, 0.0
    %v1202 = vsel %vm856, %v1193, 0.0
    %v1203 = vsel %vm856, %v1194, 0.0
    %v1204 = vsel %vm856, %v1195, 0.0
    %v1205 = vsel %vm856, %v1196, 0.0
    %v1206 = vsel %vm856, %v1197, 0.0
    %v1207 = vsel %vm856, %v1198, 0.0
    %v1208 = vsel %vm856, %v1199, 0.0
    %v1209 = vsel %vm856, %v1200, 0.0
    %v1210 = vsel %vm866, %v1201, 0.0
    %v1211 = vsel %vm866, %v1202, 0.0
    %v1212 = vsel %vm866, %v1203, 0.0
    %v1213 = vsel %vm866, %v1204, 0.0
    %v1214 = vsel %vm866, %v1205, 0.0
    %v1215 = vsel %vm866, %v1206, 0.0
    %v1216 = vsel %vm866, %v1207, 0.0
    %v1217 = vsel %vm866, %v1208, 0.0
    %v1218 = vsel %vm866, %v1209, 0.0
    %1228 = vrot.lane.b32.xlu0 %v1192, 34
    %v1229 = vpop.permute.xlu0 %1228
    %1230 = vrot.lane.b32.xlu0 %v1193, 34
    %v1231 = vpop.permute.xlu0 %1230
    %1232 = vrot.lane.b32.xlu0 %v1194, 34
    %v1233 = vpop.permute.xlu0 %1232
    %1234 = vrot.lane.b32.xlu0 %v1195, 34
    %v1235 = vpop.permute.xlu0 %1234
    %1236 = vrot.lane.b32.xlu0 %v1196, 34
    %v1237 = vpop.permute.xlu0 %1236
    %1238 = vrot.lane.b32.xlu0 %v1197, 34
    %v1239 = vpop.permute.xlu0 %1238
    %1240 = vrot.lane.b32.xlu0 %v1198, 34
    %v1241 = vpop.permute.xlu0 %1240
    %1242 = vrot.lane.b32.xlu0 %v1199, 34
    %v1243 = vpop.permute.xlu0 %1242
    %1244 = vrot.lane.b32.xlu0 %v1200, 34
    %v1245 = vpop.permute.xlu0 %1244
    %v1255 = vsel %vm856, 0.0, %v1229
    %v1256 = vsel %vm856, 0.0, %v1231
    %v1257 = vsel %vm856, 0.0, %v1233
    %v1258 = vsel %vm856, 0.0, %v1235
    %v1259 = vsel %vm856, 0.0, %v1237
    %v1260 = vsel %vm856, 0.0, %v1239
    %v1261 = vsel %vm856, 0.0, %v1241
    %v1262 = vsel %vm856, 0.0, %v1243
    %v1263 = vsel %vm856, 0.0, %v1245
    %v1264 = vsel %vm866, %v1255, 0.0
    %v1265 = vsel %vm866, %v1256, 0.0
    %v1266 = vsel %vm866, %v1257, 0.0
    %v1267 = vsel %vm866, %v1258, 0.0
    %v1268 = vsel %vm866, %v1259, 0.0
    %v1269 = vsel %vm866, %v1260, 0.0
    %v1270 = vsel %vm866, %v1261, 0.0
    %v1271 = vsel %vm866, %v1262, 0.0
    %v1272 = vsel %vm866, %v1263, 0.0
    %1273 = vrot.lane.b32.xlu0 %v1192, 68
    %v1274 = vpop.permute.xlu0 %1273
    %1275 = vrot.lane.b32.xlu0 %v1193, 68
    %v1276 = vpop.permute.xlu0 %1275
    %1277 = vrot.lane.b32.xlu0 %v1194, 68
    %v1278 = vpop.permute.xlu0 %1277
    %1279 = vrot.lane.b32.xlu0 %v1195, 68
    %v1280 = vpop.permute.xlu0 %1279
    %1281 = vrot.lane.b32.xlu0 %v1196, 68
    %v1282 = vpop.permute.xlu0 %1281
    %1283 = vrot.lane.b32.xlu0 %v1197, 68
    %v1284 = vpop.permute.xlu0 %1283
    %1285 = vrot.lane.b32.xlu0 %v1198, 68
    %v1286 = vpop.permute.xlu0 %1285
    %1287 = vrot.lane.b32.xlu0 %v1199, 68
    %v1288 = vpop.permute.xlu0 %1287
    %1289 = vrot.lane.b32.xlu0 %v1200, 68
    %v1290 = vpop.permute.xlu0 %1289
    %v1300 = vsel %vm866, 0.0, %v1274
    %v1301 = vsel %vm866, 0.0, %v1276
    %v1302 = vsel %vm866, 0.0, %v1278
    %v1303 = vsel %vm866, 0.0, %v1280
    %v1304 = vsel %vm866, 0.0, %v1282
    %v1305 = vsel %vm866, 0.0, %v1284
    %v1306 = vsel %vm866, 0.0, %v1286
    %v1307 = vsel %vm866, 0.0, %v1288
    %v1308 = vsel %vm866, 0.0, %v1290
    %v1318 = vrot.slane %v1264, 3
    %v1319 = vrot.slane %v1265, 3
    %v1320 = vsel %vm975, %v1318, %v1319
    %v1321 = vrot.slane %v1266, 3
    %v1322 = vsel %vm975, %v1319, %v1321
    %v1323 = vrot.slane %v1267, 3
    %v1324 = vsel %vm975, %v1321, %v1323
    %v1325 = vrot.slane %v1268, 3
    %v1326 = vsel %vm975, %v1323, %v1325
    %v1327 = vrot.slane %v1269, 3
    %v1328 = vsel %vm975, %v1325, %v1327
    %v1329 = vrot.slane %v1270, 3
    %v1330 = vsel %vm975, %v1327, %v1329
    %v1331 = vrot.slane %v1271, 3
    %v1332 = vsel %vm975, %v1329, %v1331
    %v1333 = vrot.slane %v1272, 3
    %v1334 = vsel %vm975, %v1331, %v1333
    %v1354 = vrot.slane %v1300, 6
    %v1355 = vrot.slane %v1301, 6
    %v1356 = vsel %vm1012, %v1354, %v1355
    %v1357 = vrot.slane %v1302, 6
    %v1358 = vsel %vm1012, %v1355, %v1357
    %v1359 = vrot.slane %v1303, 6
    %v1360 = vsel %vm1012, %v1357, %v1359
    %v1361 = vrot.slane %v1304, 6
    %v1362 = vsel %vm1012, %v1359, %v1361
    %v1363 = vrot.slane %v1305, 6
    %v1364 = vsel %vm1012, %v1361, %v1363
    %v1365 = vrot.slane %v1306, 6
    %v1366 = vsel %vm1012, %v1363, %v1365
    %v1367 = vrot.slane %v1307, 6
    %v1368 = vsel %vm1012, %v1365, %v1367
    %v1369 = vrot.slane %v1308, 6
    %v1370 = vsel %vm1012, %v1367, %v1369
    %v1379 = vsel %vm975, %v1218, %v1318
    %v1380 = vsel %vm1012, %v1333, %v1354
    %v1381 = vsel %vm1065, %v1370, 0
    %1383 = vmatprep.subr.mxu0 0.0
    %1384 = vmatpush1.msra.mxu0 %v1332
    %1385 = vmatprep.subr.mxu0 0.0
    %1386 = vmatpush1.msra.mxu0 %v1330
    %1387 = vmatprep.subr.mxu0 0.0
    %1388 = vmatpush1.msra.mxu0 %v1328
    %1389 = vmatprep.subr.mxu0 0.0
    %1390 = vmatpush1.msra.mxu0 %v1326
    %1391 = vmatprep.subr.mxu0 0.0
    %1392 = vmatpush1.msra.mxu0 %v1324
    %1393 = vmatprep.subr.mxu0 0.0
    %1394 = vmatpush1.msra.mxu0 %v1322
    %1395 = vmatprep.subr.mxu0 0.0
    %1396 = vmatpush1.msra.mxu0 %v1320
    %1397 = vmatprep.subr.mxu0 0.0
    %1398 = vmatpush1.msra.mxu0 %v1379
    %1399 = vmatprep.subr.mxu0 0.0
    %1400 = vmatpush1.msra.mxu0 %v1217
    %1401 = vmatprep.subr.mxu0 0.0
    %1402 = vmatpush1.msra.mxu0 %v1216
    %1403 = vmatprep.subr.mxu0 0.0
    %1404 = vmatpush1.msra.mxu0 %v1215
    %1405 = vmatprep.subr.mxu0 0.0
    %1406 = vmatpush1.msra.mxu0 %v1214
    %1407 = vmatprep.subr.mxu0 0.0
    %1408 = vmatpush1.msra.mxu0 %v1213
    %1409 = vmatprep.subr.mxu0 0.0
    %1410 = vmatpush1.msra.mxu0 %v1212
    %1411 = vmatprep.subr.mxu0 0.0
    %1412 = vmatpush1.msra.mxu0 %v1211
    %1413 = vmatprep.subr.mxu0 0.0
    %1414 = vmatpush1.msra.mxu0 %v1210
    %1415 = vmatprep.subr.mxu0 0.0
    %1416 = vmatpush2.msra.mxu0 0.0
    %1417 = vmatprep.subr.mxu0 0.0
    %1418 = vmatpush2.msra.mxu0 0.0
    %1419 = vmatprep.subr.mxu0 0.0
    %1420 = vmatpush2.msra.mxu0 0.0
    %1421 = vmatprep.subr.mxu0 0.0
    %1422 = vmatpush2.msra.mxu0 0.0
    %1423 = vmatprep.subr.mxu0 0.0
    %1424 = vmatpush2.msra.mxu0 0.0
    %1425 = vmatprep.subr.mxu0 0.0
    %1426 = vmatpush2.msra.mxu0 0.0
    %1427 = vmatprep.subr.mxu0 0.0
    %1428 = vmatpush2.msra.mxu0 %v1381
    %1429 = vmatprep.subr.mxu0 0.0
    %1430 = vmatpush2.msra.mxu0 %v1368
    %1431 = vmatprep.subr.mxu0 0.0
    %1432 = vmatpush2.msra.mxu0 %v1366
    %1433 = vmatprep.subr.mxu0 0.0
    %1434 = vmatpush2.msra.mxu0 %v1364
    %1435 = vmatprep.subr.mxu0 0.0
    %1436 = vmatpush2.msra.mxu0 %v1362
    %1437 = vmatprep.subr.mxu0 0.0
    %1438 = vmatpush2.msra.mxu0 %v1360
    %1439 = vmatprep.subr.mxu0 0.0
    %1440 = vmatpush2.msra.mxu0 %v1358
    %1441 = vmatprep.subr.mxu0 0.0
    %1442 = vmatpush2.msra.mxu0 %v1356
    %1443 = vmatprep.subr.mxu0 0.0
    %1444 = vmatpush2.msra.mxu0 %v1380
    %1445 = vmatprep.subr.mxu0 0.0
    %1446 = vmatpush2.msra.mxu0 %v1334
    %1447 = vmatprep.mubr.f32.mxu0 %v1042
    %1448 = vmatmul.mubr.f32.gmra.mxu0 %v812
    %v1449 = vpop.f32.mrf.mxu0
    %v1450 = vadd.f32 0.0, %v1449
    %v1451 = vpop.f32.mrf.mxu0
    %1452 = vmatprep.mubr.f32.mxu0 %v1045
    %1453 = vmatmul.mubr.f32.gmra.mxu0 %v814
    %v1454 = vpop.f32.mrf.mxu0
    %v1455 = vadd.f32 0.0, %v1454
    %v1456 = vpop.f32.mrf.mxu0
    %1457 = vmatprep.mubr.f32.mxu0 %v1048
    %1458 = vmatmul.mubr.f32.gmra.mxu0 %v816
    %v1459 = vpop.f32.mrf.mxu0
    %v1460 = vadd.f32 0.0, %v1459
    %v1461 = vpop.f32.mrf.mxu0
    %1462 = vmatprep.mubr.f32.mxu0 %v1051
    %1463 = vmatmul.mubr.f32.gmra.mxu0 %v818
    %v1464 = vpop.f32.mrf.mxu0
    %v1465 = vadd.f32 0.0, %v1464
    %v1466 = vpop.f32.mrf.mxu0
    %1467 = vmatprep.mubr.f32.mxu0 %v1054
    %1468 = vmatmul.mubr.f32.gmra.mxu0 %v820
    %v1469 = vpop.f32.mrf.mxu0
    %v1470 = vadd.f32 0.0, %v1469
    %v1471 = vpop.f32.mrf.mxu0
    %1472 = vmatprep.mubr.f32.mxu0 %v1057
    %1473 = vmatmul.mubr.f32.gmra.mxu0 %v822
    %v1474 = vpop.f32.mrf.mxu0
    %v1475 = vadd.f32 0.0, %v1474
    %v1476 = vpop.f32.mrf.mxu0
    %1477 = vmatprep.mubr.f32.mxu0 %v1060
    %1478 = vmatmul.mubr.f32.gmra.mxu0 %v824
    %v1479 = vpop.f32.mrf.mxu0
    %v1480 = vadd.f32 0.0, %v1479
    %v1481 = vpop.f32.mrf.mxu0
    %1482 = vmatprep.mubr.f32.mxu0 %v1063
    %1483 = vmatmul.mubr.f32.gmra.mxu0 %v826
    %v1484 = vpop.f32.mrf.mxu0
    %v1485 = vadd.f32 0.0, %v1484
    %v1486 = vpop.f32.mrf.mxu0
    %1487 = vdwg.mxu0
    %v1488 = vmax.f32 %v1135, %v1450
    %v1489 = vmax.f32 %v1140, %v1455
    %v1490 = vmax.f32 %v1145, %v1460
    %v1491 = vmax.f32 %v1150, %v1465
    %v1492 = vmax.f32 %v1155, %v1470
    %v1493 = vmax.f32 %v1160, %v1475
    %v1494 = vmax.f32 %v1165, %v1480
    %v1495 = vmax.f32 %v1170, %v1485
    %v1496 = vadd.s32 %v828, 2
    %vm1497 = vcmp.eq.s32.totalorder %v83, %v1496
    %vm1498 = vcmp.eq.s32.totalorder %v84, %v1496
    %vm1499 = vcmp.eq.s32.totalorder %v85, %v1496
    %vm1500 = vcmp.eq.s32.totalorder %v86, %v1496
    %vm1501 = vcmp.eq.s32.totalorder %v87, %v1496
    %vm1502 = vcmp.eq.s32.totalorder %v88, %v1496
    %vm1503 = vcmp.eq.s32.totalorder %v89, %v1496
    %vm1504 = vcmp.eq.s32.totalorder %v90, %v1496
    %vm1505 = vcmp.eq.s32.totalorder %v91, %v1496
    %v1506 = vsel %vm1497, 1, 0
    %v1507 = vsel %vm1498, 1, 0
    %v1508 = vsel %vm1499, 1, 0
    %v1509 = vsel %vm1500, 1, 0
    %v1510 = vsel %vm1501, 1, 0
    %v1511 = vsel %vm1502, 1, 0
    %v1512 = vsel %vm1503, 1, 0
    %v1513 = vsel %vm1504, 1, 0
    %v1514 = vsel %vm1505, 1, 0
    %v1515 = vcvt.s32.f32 %v1506
    %v1516 = vcvt.s32.f32 %v1507
    %v1517 = vcvt.s32.f32 %v1508
    %v1518 = vcvt.s32.f32 %v1509
    %v1519 = vcvt.s32.f32 %v1510
    %v1520 = vcvt.s32.f32 %v1511
    %v1521 = vcvt.s32.f32 %v1512
    %v1522 = vcvt.s32.f32 %v1513
    %v1523 = vcvt.s32.f32 %v1514
    %v1524 = vsel %vm856, %v1515, 0.0
    %v1525 = vsel %vm856, %v1516, 0.0
    %v1526 = vsel %vm856, %v1517, 0.0
    %v1527 = vsel %vm856, %v1518, 0.0
    %v1528 = vsel %vm856, %v1519, 0.0
    %v1529 = vsel %vm856, %v1520, 0.0
    %v1530 = vsel %vm856, %v1521, 0.0
    %v1531 = vsel %vm856, %v1522, 0.0
    %v1532 = vsel %vm856, %v1523, 0.0
    %v1533 = vsel %vm866, %v1524, 0.0
    %v1534 = vsel %vm866, %v1525, 0.0
    %v1535 = vsel %vm866, %v1526, 0.0
    %v1536 = vsel %vm866, %v1527, 0.0
    %v1537 = vsel %vm866, %v1528, 0.0
    %v1538 = vsel %vm866, %v1529, 0.0
    %v1539 = vsel %vm866, %v1530, 0.0
    %v1540 = vsel %vm866, %v1531, 0.0
    %v1541 = vsel %vm866, %v1532, 0.0
    %1551 = vrot.lane.b32.xlu0 %v1515, 34
    %v1552 = vpop.permute.xlu0 %1551
    %1553 = vrot.lane.b32.xlu0 %v1516, 34
    %v1554 = vpop.permute.xlu0 %1553
    %1555 = vrot.lane.b32.xlu0 %v1517, 34
    %v1556 = vpop.permute.xlu0 %1555
    %1557 = vrot.lane.b32.xlu0 %v1518, 34
    %v1558 = vpop.permute.xlu0 %1557
    %1559 = vrot.lane.b32.xlu0 %v1519, 34
    %v1560 = vpop.permute.xlu0 %1559
    %1561 = vrot.lane.b32.xlu0 %v1520, 34
    %v1562 = vpop.permute.xlu0 %1561
    %1563 = vrot.lane.b32.xlu0 %v1521, 34
    %v1564 = vpop.permute.xlu0 %1563
    %1565 = vrot.lane.b32.xlu0 %v1522, 34
    %v1566 = vpop.permute.xlu0 %1565
    %1567 = vrot.lane.b32.xlu0 %v1523, 34
    %v1568 = vpop.permute.xlu0 %1567
    %v1578 = vsel %vm856, 0.0, %v1552
    %v1579 = vsel %vm856, 0.0, %v1554
    %v1580 = vsel %vm856, 0.0, %v1556
    %v1581 = vsel %vm856, 0.0, %v1558
    %v1582 = vsel %vm856, 0.0, %v1560
    %v1583 = vsel %vm856, 0.0, %v1562
    %v1584 = vsel %vm856, 0.0, %v1564
    %v1585 = vsel %vm856, 0.0, %v1566
    %v1586 = vsel %vm856, 0.0, %v1568
    %v1587 = vsel %vm866, %v1578, 0.0
    %v1588 = vsel %vm866, %v1579, 0.0
    %v1589 = vsel %vm866, %v1580, 0.0
    %v1590 = vsel %vm866, %v1581, 0.0
    %v1591 = vsel %vm866, %v1582, 0.0
    %v1592 = vsel %vm866, %v1583, 0.0
    %v1593 = vsel %vm866, %v1584, 0.0
    %v1594 = vsel %vm866, %v1585, 0.0
    %v1595 = vsel %vm866, %v1586, 0.0
    %1596 = vrot.lane.b32.xlu0 %v1515, 68
    %v1597 = vpop.permute.xlu0 %1596
    %1598 = vrot.lane.b32.xlu0 %v1516, 68
    %v1599 = vpop.permute.xlu0 %1598
    %1600 = vrot.lane.b32.xlu0 %v1517, 68
    %v1601 = vpop.permute.xlu0 %1600
    %1602 = vrot.lane.b32.xlu0 %v1518, 68
    %v1603 = vpop.permute.xlu0 %1602
    %1604 = vrot.lane.b32.xlu0 %v1519, 68
    %v1605 = vpop.permute.xlu0 %1604
    %1606 = vrot.lane.b32.xlu0 %v1520, 68
    %v1607 = vpop.permute.xlu0 %1606
    %1608 = vrot.lane.b32.xlu0 %v1521, 68
    %v1609 = vpop.permute.xlu0 %1608
    %1610 = vrot.lane.b32.xlu0 %v1522, 68
    %v1611 = vpop.permute.xlu0 %1610
    %1612 = vrot.lane.b32.xlu0 %v1523, 68
    %v1613 = vpop.permute.xlu0 %1612
    %v1623 = vsel %vm866, 0.0, %v1597
    %v1624 = vsel %vm866, 0.0, %v1599
    %v1625 = vsel %vm866, 0.0, %v1601
    %v1626 = vsel %vm866, 0.0, %v1603
    %v1627 = vsel %vm866, 0.0, %v1605
    %v1628 = vsel %vm866, 0.0, %v1607
    %v1629 = vsel %vm866, 0.0, %v1609
    %v1630 = vsel %vm866, 0.0, %v1611
    %v1631 = vsel %vm866, 0.0, %v1613
    %v1641 = vrot.slane %v1587, 3
    %v1642 = vrot.slane %v1588, 3
    %v1643 = vsel %vm975, %v1641, %v1642
    %v1644 = vrot.slane %v1589, 3
    %v1645 = vsel %vm975, %v1642, %v1644
    %v1646 = vrot.slane %v1590, 3
    %v1647 = vsel %vm975, %v1644, %v1646
    %v1648 = vrot.slane %v1591, 3
    %v1649 = vsel %vm975, %v1646, %v1648
    %v1650 = vrot.slane %v1592, 3
    %v1651 = vsel %vm975, %v1648, %v1650
    %v1652 = vrot.slane %v1593, 3
    %v1653 = vsel %vm975, %v1650, %v1652
    %v1654 = vrot.slane %v1594, 3
    %v1655 = vsel %vm975, %v1652, %v1654
    %v1656 = vrot.slane %v1595, 3
    %v1657 = vsel %vm975, %v1654, %v1656
    %v1677 = vrot.slane %v1623, 6
    %v1678 = vrot.slane %v1624, 6
    %v1679 = vsel %vm1012, %v1677, %v1678
    %v1680 = vrot.slane %v1625, 6
    %v1681 = vsel %vm1012, %v1678, %v1680
    %v1682 = vrot.slane %v1626, 6
    %v1683 = vsel %vm1012, %v1680, %v1682
    %v1684 = vrot.slane %v1627, 6
    %v1685 = vsel %vm1012, %v1682, %v1684
    %v1686 = vrot.slane %v1628, 6
    %v1687 = vsel %vm1012, %v1684, %v1686
    %v1688 = vrot.slane %v1629, 6
    %v1689 = vsel %vm1012, %v1686, %v1688
    %v1690 = vrot.slane %v1630, 6
    %v1691 = vsel %vm1012, %v1688, %v1690
    %v1692 = vrot.slane %v1631, 6
    %v1693 = vsel %vm1012, %v1690, %v1692
    %v1702 = vsel %vm975, %v1541, %v1641
    %v1703 = vsel %vm1012, %v1656, %v1677
    %v1704 = vsel %vm1065, %v1693, 0
    %1706 = vmatprep.subr.mxu0 0.0
    %1707 = vmatpush1.msra.mxu0 %v1655
    %1708 = vmatprep.subr.mxu0 0.0
    %1709 = vmatpush1.msra.mxu0 %v1653
    %1710 = vmatprep.subr.mxu0 0.0
    %1711 = vmatpush1.msra.mxu0 %v1651
    %1712 = vmatprep.subr.mxu0 0.0
    %1713 = vmatpush1.msra.mxu0 %v1649
    %1714 = vmatprep.subr.mxu0 0.0
    %1715 = vmatpush1.msra.mxu0 %v1647
    %1716 = vmatprep.subr.mxu0 0.0
    %1717 = vmatpush1.msra.mxu0 %v1645
    %1718 = vmatprep.subr.mxu0 0.0
    %1719 = vmatpush1.msra.mxu0 %v1643
    %1720 = vmatprep.subr.mxu0 0.0
    %1721 = vmatpush1.msra.mxu0 %v1702
    %1722 = vmatprep.subr.mxu0 0.0
    %1723 = vmatpush1.msra.mxu0 %v1540
    %1724 = vmatprep.subr.mxu0 0.0
    %1725 = vmatpush1.msra.mxu0 %v1539
    %1726 = vmatprep.subr.mxu0 0.0
    %1727 = vmatpush1.msra.mxu0 %v1538
    %1728 = vmatprep.subr.mxu0 0.0
    %1729 = vmatpush1.msra.mxu0 %v1537
    %1730 = vmatprep.subr.mxu0 0.0
    %1731 = vmatpush1.msra.mxu0 %v1536
    %1732 = vmatprep.subr.mxu0 0.0
    %1733 = vmatpush1.msra.mxu0 %v1535
    %1734 = vmatprep.subr.mxu0 0.0
    %1735 = vmatpush1.msra.mxu0 %v1534
    %1736 = vmatprep.subr.mxu0 0.0
    %1737 = vmatpush1.msra.mxu0 %v1533
    %1738 = vmatprep.subr.mxu0 0.0
    %1739 = vmatpush2.msra.mxu0 0.0
    %1740 = vmatprep.subr.mxu0 0.0
    %1741 = vmatpush2.msra.mxu0 0.0
    %1742 = vmatprep.subr.mxu0 0.0
    %1743 = vmatpush2.msra.mxu0 0.0
    %1744 = vmatprep.subr.mxu0 0.0
    %1745 = vmatpush2.msra.mxu0 0.0
    %1746 = vmatprep.subr.mxu0 0.0
    %1747 = vmatpush2.msra.mxu0 0.0
    %1748 = vmatprep.subr.mxu0 0.0
    %1749 = vmatpush2.msra.mxu0 0.0
    %1750 = vmatprep.subr.mxu0 0.0
    %1751 = vmatpush2.msra.mxu0 %v1704
    %1752 = vmatprep.subr.mxu0 0.0
    %1753 = vmatpush2.msra.mxu0 %v1691
    %1754 = vmatprep.subr.mxu0 0.0
    %1755 = vmatpush2.msra.mxu0 %v1689
    %1756 = vmatprep.subr.mxu0 0.0
    %1757 = vmatpush2.msra.mxu0 %v1687
    %1758 = vmatprep.subr.mxu0 0.0
    %1759 = vmatpush2.msra.mxu0 %v1685
    %1760 = vmatprep.subr.mxu0 0.0
    %1761 = vmatpush2.msra.mxu0 %v1683
    %1762 = vmatprep.subr.mxu0 0.0
    %1763 = vmatpush2.msra.mxu0 %v1681
    %1764 = vmatprep.subr.mxu0 0.0
    %1765 = vmatpush2.msra.mxu0 %v1679
    %1766 = vmatprep.subr.mxu0 0.0
    %1767 = vmatpush2.msra.mxu0 %v1703
    %1768 = vmatprep.subr.mxu0 0.0
    %1769 = vmatpush2.msra.mxu0 %v1657
    %1770 = vmatprep.mubr.f32.mxu0 %v1042
    %1771 = vmatmul.mubr.f32.gmra.mxu0 %v812
    %v1772 = vpop.f32.mrf.mxu0
    %v1773 = vadd.f32 0.0, %v1772
    %v1774 = vpop.f32.mrf.mxu0
    %1775 = vmatprep.mubr.f32.mxu0 %v1045
    %1776 = vmatmul.mubr.f32.gmra.mxu0 %v814
    %v1777 = vpop.f32.mrf.mxu0
    %v1778 = vadd.f32 0.0, %v1777
    %v1779 = vpop.f32.mrf.mxu0
    %1780 = vmatprep.mubr.f32.mxu0 %v1048
    %1781 = vmatmul.mubr.f32.gmra.mxu0 %v816
    %v1782 = vpop.f32.mrf.mxu0
    %v1783 = vadd.f32 0.0, %v1782
    %v1784 = vpop.f32.mrf.mxu0
    %1785 = vmatprep.mubr.f32.mxu0 %v1051
    %1786 = vmatmul.mubr.f32.gmra.mxu0 %v818
    %v1787 = vpop.f32.mrf.mxu0
    %v1788 = vadd.f32 0.0, %v1787
    %v1789 = vpop.f32.mrf.mxu0
    %1790 = vmatprep.mubr.f32.mxu0 %v1054
    %1791 = vmatmul.mubr.f32.gmra.mxu0 %v820
    %v1792 = vpop.f32.mrf.mxu0
    %v1793 = vadd.f32 0.0, %v1792
    %v1794 = vpop.f32.mrf.mxu0
    %1795 = vmatprep.mubr.f32.mxu0 %v1057
    %1796 = vmatmul.mubr.f32.gmra.mxu0 %v822
    %v1797 = vpop.f32.mrf.mxu0
    %v1798 = vadd.f32 0.0, %v1797
    %v1799 = vpop.f32.mrf.mxu0
    %1800 = vmatprep.mubr.f32.mxu0 %v1060
    %1801 = vmatmul.mubr.f32.gmra.mxu0 %v824
    %v1802 = vpop.f32.mrf.mxu0
    %v1803 = vadd.f32 0.0, %v1802
    %v1804 = vpop.f32.mrf.mxu0
    %1805 = vmatprep.mubr.f32.mxu0 %v1063
    %1806 = vmatmul.mubr.f32.gmra.mxu0 %v826
    %v1807 = vpop.f32.mrf.mxu0
    %v1808 = vadd.f32 0.0, %v1807
    %v1809 = vpop.f32.mrf.mxu0
    %1810 = vdwg.mxu0
    %v1811 = vmax.f32 %v1488, %v1773
    %v1812 = vmax.f32 %v1489, %v1778
    %v1813 = vmax.f32 %v1490, %v1783
    %v1814 = vmax.f32 %v1491, %v1788
    %v1815 = vmax.f32 %v1492, %v1793
    %v1816 = vmax.f32 %v1493, %v1798
    %v1817 = vmax.f32 %v1494, %v1803
    %v1818 = vmax.f32 %v1495, %v1808
    %s1819 = sld [smem:[#allocation6]]
    %v1820 = vstv %s1819
    %v1821 = vmul.f32 %v1820, %v115
    %v1822 = vmul.f32 %v1820, %v116
    %v1823 = vmul.f32 %v1820, %v117
    %v1824 = vmul.f32 %v1820, %v118
    %v1825 = vmul.f32 %v1820, %v119
    %s1826 = sld [smem:[#allocation6 + $0x1]]
    %v1827 = vstv %s1826
    %v1828 = vmul.f32 %v1827, %v146
    %v1829 = vmul.f32 %v1827, %v147
    %v1830 = vmul.f32 %v1827, %v148
    %v1831 = vmul.f32 %v1827, %v149
    %v1832 = vmul.f32 %v1827, %v150
    %v1833 = vadd.f32 %v1821, %v1828
    %v1834 = vadd.f32 %v1822, %v1829
    %v1835 = vadd.f32 %v1823, %v1830
    %v1836 = vadd.f32 %v1824, %v1831
    %v1837 = vadd.f32 %v1825, %v1832
    %s1838 = sld [smem:[#allocation6 + $0x2]]
    %v1839 = vstv %s1838
    %v1840 = vmul.f32 %v1839, %v177
    %v1841 = vmul.f32 %v1839, %v178
    %v1842 = vmul.f32 %v1839, %v179
    %v1843 = vmul.f32 %v1839, %v180
    %v1844 = vmul.f32 %v1839, %v181
    %v1845 = vadd.f32 %v1833, %v1840
    %v1846 = vadd.f32 %v1834, %v1841
    %v1847 = vadd.f32 %v1835, %v1842
    %v1848 = vadd.f32 %v1836, %v1843
    %v1849 = vadd.f32 %v1837, %v1844
    %s1850 = sld [smem:[#allocation6 + $0x3]]
    %v1851 = vstv %s1850
    %v1852 = vmul.f32 %v1851, %v208
    %v1853 = vmul.f32 %v1851, %v209
    %v1854 = vmul.f32 %v1851, %v210
    %v1855 = vmul.f32 %v1851, %v211
    %v1856 = vmul.f32 %v1851, %v212
    %v1857 = vadd.f32 %v1845, %v1852
    %v1858 = vadd.f32 %v1846, %v1853
    %v1859 = vadd.f32 %v1847, %v1854
    %v1860 = vadd.f32 %v1848, %v1855
    %v1861 = vadd.f32 %v1849, %v1856
    %s1862 = sld [smem:[#allocation6 + $0x4]]
    %v1863 = vstv %s1862
    %v1864 = vmul.f32 %v1863, %v239
    %v1865 = vmul.f32 %v1863, %v240
    %v1866 = vmul.f32 %v1863, %v241
    %v1867 = vmul.f32 %v1863, %v242
    %v1868 = vmul.f32 %v1863, %v243
    %v1869 = vadd.f32 %v1857, %v1864
    %v1870 = vadd.f32 %v1858, %v1865
    %v1871 = vadd.f32 %v1859, %v1866
    %v1872 = vadd.f32 %v1860, %v1867
    %v1873 = vadd.f32 %v1861, %v1868
    %s1874 = sld [smem:[#allocation6 + $0x5]]
    %v1875 = vstv %s1874
    %v1876 = vmul.f32 %v1875, %v115
    %v1877 = vmul.f32 %v1875, %v116
    %v1878 = vmul.f32 %v1875, %v117
    %v1879 = vmul.f32 %v1875, %v118
    %v1880 = vmul.f32 %v1875, %v119
    %s1881 = sld [smem:[#allocation6 + $0x6]]
    %v1882 = vstv %s1881
    %v1883 = vmul.f32 %v1882, %v146
    %v1884 = vmul.f32 %v1882, %v147
    %v1885 = vmul.f32 %v1882, %v148
    %v1886 = vmul.f32 %v1882, %v149
    %v1887 = vmul.f32 %v1882, %v150
    %v1888 = vadd.f32 %v1876, %v1883
    %v1889 = vadd.f32 %v1877, %v1884
    %v1890 = vadd.f32 %v1878, %v1885
    %v1891 = vadd.f32 %v1879, %v1886
    %v1892 = vadd.f32 %v1880, %v1887
    %s1893 = sld [smem:[#allocation6 + $0x7]]
    %v1894 = vstv %s1893
    %v1895 = vmul.f32 %v1894, %v177
    %v1896 = vmul.f32 %v1894, %v178
    %v1897 = vmul.f32 %v1894, %v179
    %v1898 = vmul.f32 %v1894, %v180
    %v1899 = vmul.f32 %v1894, %v181
    %v1900 = vadd.f32 %v1888, %v1895
    %v1901 = vadd.f32 %v1889, %v1896
    %v1902 = vadd.f32 %v1890, %v1897
    %v1903 = vadd.f32 %v1891, %v1898
    %v1904 = vadd.f32 %v1892, %v1899
    %s1905 = sld [smem:[#allocation6 + $0x8]]
    %v1906 = vstv %s1905
    %v1907 = vmul.f32 %v1906, %v208
    %v1908 = vmul.f32 %v1906, %v209
    %v1909 = vmul.f32 %v1906, %v210
    %v1910 = vmul.f32 %v1906, %v211
    %v1911 = vmul.f32 %v1906, %v212
    %v1912 = vadd.f32 %v1900, %v1907
    %v1913 = vadd.f32 %v1901, %v1908
    %v1914 = vadd.f32 %v1902, %v1909
    %v1915 = vadd.f32 %v1903, %v1910
    %v1916 = vadd.f32 %v1904, %v1911
    %s1917 = sld [smem:[#allocation6 + $0x9]]
    %v1918 = vstv %s1917
    %v1919 = vmul.f32 %v1918, %v239
    %v1920 = vmul.f32 %v1918, %v240
    %v1921 = vmul.f32 %v1918, %v241
    %v1922 = vmul.f32 %v1918, %v242
    %v1923 = vmul.f32 %v1918, %v243
    %v1924 = vadd.f32 %v1912, %v1919
    %v1925 = vadd.f32 %v1913, %v1920
    %v1926 = vadd.f32 %v1914, %v1921
    %v1927 = vadd.f32 %v1915, %v1922
    %v1928 = vadd.f32 %v1916, %v1923
    %s1929 = sld [smem:[#allocation6 + $0xa]]
    %v1930 = vstv %s1929
    %v1931 = vmul.f32 %v1930, %v115
    %v1932 = vmul.f32 %v1930, %v116
    %v1933 = vmul.f32 %v1930, %v117
    %v1934 = vmul.f32 %v1930, %v118
    %v1935 = vmul.f32 %v1930, %v119
    %s1936 = sld [smem:[#allocation6 + $0xb]]
    %v1937 = vstv %s1936
    %v1938 = vmul.f32 %v1937, %v146
    %v1939 = vmul.f32 %v1937, %v147
    %v1940 = vmul.f32 %v1937, %v148
    %v1941 = vmul.f32 %v1937, %v149
    %v1942 = vmul.f32 %v1937, %v150
    %v1943 = vadd.f32 %v1931, %v1938
    %v1944 = vadd.f32 %v1932, %v1939
    %v1945 = vadd.f32 %v1933, %v1940
    %v1946 = vadd.f32 %v1934, %v1941
    %v1947 = vadd.f32 %v1935, %v1942
    %s1948 = sld [smem:[#allocation6 + $0xc]]
    %v1949 = vstv %s1948
    %v1950 = vmul.f32 %v1949, %v177
    %v1951 = vmul.f32 %v1949, %v178
    %v1952 = vmul.f32 %v1949, %v179
    %v1953 = vmul.f32 %v1949, %v180
    %v1954 = vmul.f32 %v1949, %v181
    %v1955 = vadd.f32 %v1943, %v1950
    %v1956 = vadd.f32 %v1944, %v1951
    %v1957 = vadd.f32 %v1945, %v1952
    %v1958 = vadd.f32 %v1946, %v1953
    %v1959 = vadd.f32 %v1947, %v1954
    %s1960 = sld [smem:[#allocation6 + $0xd]]
    %v1961 = vstv %s1960
    %v1962 = vmul.f32 %v1961, %v208
    %v1963 = vmul.f32 %v1961, %v209
    %v1964 = vmul.f32 %v1961, %v210
    %v1965 = vmul.f32 %v1961, %v211
    %v1966 = vmul.f32 %v1961, %v212
    %v1967 = vadd.f32 %v1955, %v1962
    %v1968 = vadd.f32 %v1956, %v1963
    %v1969 = vadd.f32 %v1957, %v1964
    %v1970 = vadd.f32 %v1958, %v1965
    %v1971 = vadd.f32 %v1959, %v1966
    %s1972 = sld [smem:[#allocation6 + $0xe]]
    %v1973 = vstv %s1972
    %v1974 = vmul.f32 %v1973, %v239
    %v1975 = vmul.f32 %v1973, %v240
    %v1976 = vmul.f32 %v1973, %v241
    %v1977 = vmul.f32 %v1973, %v242
    %v1978 = vmul.f32 %v1973, %v243
    %v1979 = vadd.f32 %v1967, %v1974
    %v1980 = vadd.f32 %v1968, %v1975
    %v1981 = vadd.f32 %v1969, %v1976
    %v1982 = vadd.f32 %v1970, %v1977
    %v1983 = vadd.f32 %v1971, %v1978
    %v1989 = vrot.slane %v1924, 6
    %v1990 = vrot.slane %v1925, 6
    %v1991 = vsel %vm1012, %v1989, %v1990
    %v1992 = vrot.slane %v1926, 6
    %v1993 = vsel %vm1012, %v1990, %v1992
    %v1994 = vrot.slane %v1927, 6
    %v1995 = vsel %vm1012, %v1992, %v1994
    %v1996 = vrot.slane %v1928, 6
    %v1997 = vsel %vm1012, %v1994, %v1996
    %vm2008 = vcmask 1043456
    %v2009 = vrot.slane %v1979, 4
    %v2010 = vrot.slane %v1980, 4
    %v2011 = vsel %vm2008, %v2009, %v2010
    %v2012 = vrot.slane %v1981, 4
    %v2013 = vsel %vm2008, %v2010, %v2012
    %v2014 = vrot.slane %v1982, 4
    %v2015 = vsel %vm2008, %v2012, %v2014
    %v2016 = vrot.slane %v1983, 4
    %v2017 = vsel %vm2008, %v2014, %v2016
    %v2023 = vsel %vm1012, %v1873, %v1989
    %v2024 = vsel %vm2008, %v1997, %v2009
    %s2025 = sld [smem:[#allocation7]]
    %v2026 = vstv %s2025
    %s2027 = sld [smem:[#allocation6 + $0xf]]
    %v2028 = vstv %s2027
    %v2029 = vmul.f32 %v2028, %v115
    %v2030 = vmul.f32 %v2028, %v116
    %v2031 = vmul.f32 %v2028, %v117
    %v2032 = vmul.f32 %v2028, %v118
    %v2033 = vmul.f32 %v2028, %v119
    %s2034 = sld [smem:[#allocation6 + $0x10]]
    %v2035 = vstv %s2034
    %v2036 = vmul.f32 %v2035, %v146
    %v2037 = vmul.f32 %v2035, %v147
    %v2038 = vmul.f32 %v2035, %v148
    %v2039 = vmul.f32 %v2035, %v149
    %v2040 = vmul.f32 %v2035, %v150
    %v2041 = vadd.f32 %v2029, %v2036
    %v2042 = vadd.f32 %v2030, %v2037
    %v2043 = vadd.f32 %v2031, %v2038
    %v2044 = vadd.f32 %v2032, %v2039
    %v2045 = vadd.f32 %v2033, %v2040
    %s2046 = sld [smem:[#allocation6 + $0x11]]
    %v2047 = vstv %s2046
    %v2048 = vmul.f32 %v2047, %v177
    %v2049 = vmul.f32 %v2047, %v178
    %v2050 = vmul.f32 %v2047, %v179
    %v2051 = vmul.f32 %v2047, %v180
    %v2052 = vmul.f32 %v2047, %v181
    %v2053 = vadd.f32 %v2041, %v2048
    %v2054 = vadd.f32 %v2042, %v2049
    %v2055 = vadd.f32 %v2043, %v2050
    %v2056 = vadd.f32 %v2044, %v2051
    %v2057 = vadd.f32 %v2045, %v2052
    %s2058 = sld [smem:[#allocation6 + $0x12]]
    %v2059 = vstv %s2058
    %v2060 = vmul.f32 %v2059, %v208
    %v2061 = vmul.f32 %v2059, %v209
    %v2062 = vmul.f32 %v2059, %v210
    %v2063 = vmul.f32 %v2059, %v211
    %v2064 = vmul.f32 %v2059, %v212
    %v2065 = vadd.f32 %v2053, %v2060
    %v2066 = vadd.f32 %v2054, %v2061
    %v2067 = vadd.f32 %v2055, %v2062
    %v2068 = vadd.f32 %v2056, %v2063
    %v2069 = vadd.f32 %v2057, %v2064
    %s2070 = sld [smem:[#allocation6 + $0x13]]
    %v2071 = vstv %s2070
    %v2072 = vmul.f32 %v2071, %v239
    %v2073 = vmul.f32 %v2071, %v240
    %v2074 = vmul.f32 %v2071, %v241
    %v2075 = vmul.f32 %v2071, %v242
    %v2076 = vmul.f32 %v2071, %v243
    %v2077 = vadd.f32 %v2065, %v2072
    %v2078 = vadd.f32 %v2066, %v2073
    %v2079 = vadd.f32 %v2067, %v2074
    %v2080 = vadd.f32 %v2068, %v2075
    %v2081 = vadd.f32 %v2069, %v2076
    %s2082 = sld [smem:[#allocation6 + $0x14]]
    %v2083 = vstv %s2082
    %v2084 = vmul.f32 %v2083, %v115
    %v2085 = vmul.f32 %v2083, %v116
    %v2086 = vmul.f32 %v2083, %v117
    %v2087 = vmul.f32 %v2083, %v118
    %v2088 = vmul.f32 %v2083, %v119
    %s2089 = sld [smem:[#allocation6 + $0x15]]
    %v2090 = vstv %s2089
    %v2091 = vmul.f32 %v2090, %v146
    %v2092 = vmul.f32 %v2090, %v147
    %v2093 = vmul.f32 %v2090, %v148
    %v2094 = vmul.f32 %v2090, %v149
    %v2095 = vmul.f32 %v2090, %v150
    %v2096 = vadd.f32 %v2084, %v2091
    %v2097 = vadd.f32 %v2085, %v2092
    %v2098 = vadd.f32 %v2086, %v2093
    %v2099 = vadd.f32 %v2087, %v2094
    %v2100 = vadd.f32 %v2088, %v2095
    %s2101 = sld [smem:[#allocation6 + $0x16]]
    %v2102 = vstv %s2101
    %v2103 = vmul.f32 %v2102, %v177
    %v2104 = vmul.f32 %v2102, %v178
    %v2105 = vmul.f32 %v2102, %v179
    %v2106 = vmul.f32 %v2102, %v180
    %v2107 = vmul.f32 %v2102, %v181
    %v2108 = vadd.f32 %v2096, %v2103
    %v2109 = vadd.f32 %v2097, %v2104
    %v2110 = vadd.f32 %v2098, %v2105
    %v2111 = vadd.f32 %v2099, %v2106
    %v2112 = vadd.f32 %v2100, %v2107
    %s2113 = sld [smem:[#allocation6 + $0x17]]
    %v2114 = vstv %s2113
    %v2115 = vmul.f32 %v2114, %v208
    %v2116 = vmul.f32 %v2114, %v209
    %v2117 = vmul.f32 %v2114, %v210
    %v2118 = vmul.f32 %v2114, %v211
    %v2119 = vmul.f32 %v2114, %v212
    %v2120 = vadd.f32 %v2108, %v2115
    %v2121 = vadd.f32 %v2109, %v2116
    %v2122 = vadd.f32 %v2110, %v2117
    %v2123 = vadd.f32 %v2111, %v2118
    %v2124 = vadd.f32 %v2112, %v2119
    %s2125 = sld [smem:[#allocation6 + $0x18]]
    %v2126 = vstv %s2125
    %v2127 = vmul.f32 %v2126, %v239
    %v2128 = vmul.f32 %v2126, %v240
    %v2129 = vmul.f32 %v2126, %v241
    %v2130 = vmul.f32 %v2126, %v242
    %v2131 = vmul.f32 %v2126, %v243
    %v2132 = vadd.f32 %v2120, %v2127
    %v2133 = vadd.f32 %v2121, %v2128
    %v2134 = vadd.f32 %v2122, %v2129
    %v2135 = vadd.f32 %v2123, %v2130
    %v2136 = vadd.f32 %v2124, %v2131
    %s2137 = sld [smem:[#allocation6 + $0x19]]
    %v2138 = vstv %s2137
    %v2139 = vmul.f32 %v2138, %v115
    %v2140 = vmul.f32 %v2138, %v116
    %v2141 = vmul.f32 %v2138, %v117
    %v2142 = vmul.f32 %v2138, %v118
    %v2143 = vmul.f32 %v2138, %v119
    %s2144 = sld [smem:[#allocation6 + $0x1a]]
    %v2145 = vstv %s2144
    %v2146 = vmul.f32 %v2145, %v146
    %v2147 = vmul.f32 %v2145, %v147
    %v2148 = vmul.f32 %v2145, %v148
    %v2149 = vmul.f32 %v2145, %v149
    %v2150 = vmul.f32 %v2145, %v150
    %v2151 = vadd.f32 %v2139, %v2146
    %v2152 = vadd.f32 %v2140, %v2147
    %v2153 = vadd.f32 %v2141, %v2148
    %v2154 = vadd.f32 %v2142, %v2149
    %v2155 = vadd.f32 %v2143, %v2150
    %s2156 = sld [smem:[#allocation6 + $0x1b]]
    %v2157 = vstv %s2156
    %v2158 = vmul.f32 %v2157, %v177
    %v2159 = vmul.f32 %v2157, %v178
    %v2160 = vmul.f32 %v2157, %v179
    %v2161 = vmul.f32 %v2157, %v180
    %v2162 = vmul.f32 %v2157, %v181
    %v2163 = vadd.f32 %v2151, %v2158
    %v2164 = vadd.f32 %v2152, %v2159
    %v2165 = vadd.f32 %v2153, %v2160
    %v2166 = vadd.f32 %v2154, %v2161
    %v2167 = vadd.f32 %v2155, %v2162
    %s2168 = sld [smem:[#allocation6 + $0x1c]]
    %v2169 = vstv %s2168
    %v2170 = vmul.f32 %v2169, %v208
    %v2171 = vmul.f32 %v2169, %v209
    %v2172 = vmul.f32 %v2169, %v210
    %v2173 = vmul.f32 %v2169, %v211
    %v2174 = vmul.f32 %v2169, %v212
    %v2175 = vadd.f32 %v2163, %v2170
    %v2176 = vadd.f32 %v2164, %v2171
    %v2177 = vadd.f32 %v2165, %v2172
    %v2178 = vadd.f32 %v2166, %v2173
    %v2179 = vadd.f32 %v2167, %v2174
    %s2180 = sld [smem:[#allocation6 + $0x1d]]
    %v2181 = vstv %s2180
    %v2182 = vmul.f32 %v2181, %v239
    %v2183 = vmul.f32 %v2181, %v240
    %v2184 = vmul.f32 %v2181, %v241
    %v2185 = vmul.f32 %v2181, %v242
    %v2186 = vmul.f32 %v2181, %v243
    %v2187 = vadd.f32 %v2175, %v2182
    %v2188 = vadd.f32 %v2176, %v2183
    %v2189 = vadd.f32 %v2177, %v2184
    %v2190 = vadd.f32 %v2178, %v2185
    %v2191 = vadd.f32 %v2179, %v2186
    %v2197 = vrot.slane %v2132, 6
    %v2198 = vrot.slane %v2133, 6
    %v2199 = vsel %vm1012, %v2197, %v2198
    %v2200 = vrot.slane %v2134, 6
    %v2201 = vsel %vm1012, %v2198, %v2200
    %v2202 = vrot.slane %v2135, 6
    %v2203 = vsel %vm1012, %v2200, %v2202
    %v2204 = vrot.slane %v2136, 6
    %v2205 = vsel %vm1012, %v2202, %v2204
    %v2213 = vrot.slane %v2187, 4
    %v2214 = vrot.slane %v2188, 4
    %v2215 = vsel %vm2008, %v2213, %v2214
    %v2216 = vrot.slane %v2189, 4
    %v2217 = vsel %vm2008, %v2214, %v2216
    %v2218 = vrot.slane %v2190, 4
    %v2219 = vsel %vm2008, %v2216, %v2218
    %v2220 = vrot.slane %v2191, 4
    %v2221 = vsel %vm2008, %v2218, %v2220
    %v2223 = vsel %vm1012, %v2081, %v2197
    %v2224 = vsel %vm2008, %v2205, %v2213
    %s2225 = sld [smem:[#allocation7 + $0x1]]
    %v2226 = vstv %s2225
    %s2227 = sld [smem:[#allocation6 + $0x1e]]
    %v2228 = vstv %s2227
    %v2229 = vmul.f32 %v2228, %v115
    %v2230 = vmul.f32 %v2228, %v116
    %v2231 = vmul.f32 %v2228, %v117
    %v2232 = vmul.f32 %v2228, %v118
    %v2233 = vmul.f32 %v2228, %v119
    %s2234 = sld [smem:[#allocation6 + $0x1f]]
    %v2235 = vstv %s2234
    %v2236 = vmul.f32 %v2235, %v146
    %v2237 = vmul.f32 %v2235, %v147
    %v2238 = vmul.f32 %v2235, %v148
    %v2239 = vmul.f32 %v2235, %v149
    %v2240 = vmul.f32 %v2235, %v150
    %v2241 = vadd.f32 %v2229, %v2236
    %v2242 = vadd.f32 %v2230, %v2237
    %v2243 = vadd.f32 %v2231, %v2238
    %v2244 = vadd.f32 %v2232, %v2239
    %v2245 = vadd.f32 %v2233, %v2240
    %s2246 = sld [smem:[#allocation6 + $0x20]]
    %v2247 = vstv %s2246
    %v2248 = vmul.f32 %v2247, %v177
    %v2249 = vmul.f32 %v2247, %v178
    %v2250 = vmul.f32 %v2247, %v179
    %v2251 = vmul.f32 %v2247, %v180
    %v2252 = vmul.f32 %v2247, %v181
    %v2253 = vadd.f32 %v2241, %v2248
    %v2254 = vadd.f32 %v2242, %v2249
    %v2255 = vadd.f32 %v2243, %v2250
    %v2256 = vadd.f32 %v2244, %v2251
    %v2257 = vadd.f32 %v2245, %v2252
    %s2258 = sld [smem:[#allocation6 + $0x21]]
    %v2259 = vstv %s2258
    %v2260 = vmul.f32 %v2259, %v208
    %v2261 = vmul.f32 %v2259, %v209
    %v2262 = vmul.f32 %v2259, %v210
    %v2263 = vmul.f32 %v2259, %v211
    %v2264 = vmul.f32 %v2259, %v212
    %v2265 = vadd.f32 %v2253, %v2260
    %v2266 = vadd.f32 %v2254, %v2261
    %v2267 = vadd.f32 %v2255, %v2262
    %v2268 = vadd.f32 %v2256, %v2263
    %v2269 = vadd.f32 %v2257, %v2264
    %s2270 = sld [smem:[#allocation6 + $0x22]]
    %v2271 = vstv %s2270
    %v2272 = vmul.f32 %v2271, %v239
    %v2273 = vmul.f32 %v2271, %v240
    %v2274 = vmul.f32 %v2271, %v241
    %v2275 = vmul.f32 %v2271, %v242
    %v2276 = vmul.f32 %v2271, %v243
    %v2277 = vadd.f32 %v2265, %v2272
    %v2278 = vadd.f32 %v2266, %v2273
    %v2279 = vadd.f32 %v2267, %v2274
    %v2280 = vadd.f32 %v2268, %v2275
    %v2281 = vadd.f32 %v2269, %v2276
    %s2282 = sld [smem:[#allocation6 + $0x23]]
    %v2283 = vstv %s2282
    %v2284 = vmul.f32 %v2283, %v115
    %v2285 = vmul.f32 %v2283, %v116
    %v2286 = vmul.f32 %v2283, %v117
    %v2287 = vmul.f32 %v2283, %v118
    %v2288 = vmul.f32 %v2283, %v119
    %s2289 = sld [smem:[#allocation6 + $0x24]]
    %v2290 = vstv %s2289
    %v2291 = vmul.f32 %v2290, %v146
    %v2292 = vmul.f32 %v2290, %v147
    %v2293 = vmul.f32 %v2290, %v148
    %v2294 = vmul.f32 %v2290, %v149
    %v2295 = vmul.f32 %v2290, %v150
    %v2296 = vadd.f32 %v2284, %v2291
    %v2297 = vadd.f32 %v2285, %v2292
    %v2298 = vadd.f32 %v2286, %v2293
    %v2299 = vadd.f32 %v2287, %v2294
    %v2300 = vadd.f32 %v2288, %v2295
    %s2301 = sld [smem:[#allocation6 + $0x25]]
    %v2302 = vstv %s2301
    %v2303 = vmul.f32 %v2302, %v177
    %v2304 = vmul.f32 %v2302, %v178
    %v2305 = vmul.f32 %v2302, %v179
    %v2306 = vmul.f32 %v2302, %v180
    %v2307 = vmul.f32 %v2302, %v181
    %v2308 = vadd.f32 %v2296, %v2303
    %v2309 = vadd.f32 %v2297, %v2304
    %v2310 = vadd.f32 %v2298, %v2305
    %v2311 = vadd.f32 %v2299, %v2306
    %v2312 = vadd.f32 %v2300, %v2307
    %s2313 = sld [smem:[#allocation6 + $0x26]]
    %v2314 = vstv %s2313
    %v2315 = vmul.f32 %v2314, %v208
    %v2316 = vmul.f32 %v2314, %v209
    %v2317 = vmul.f32 %v2314, %v210
    %v2318 = vmul.f32 %v2314, %v211
    %v2319 = vmul.f32 %v2314, %v212
    %v2320 = vadd.f32 %v2308, %v2315
    %v2321 = vadd.f32 %v2309, %v2316
    %v2322 = vadd.f32 %v2310, %v2317
    %v2323 = vadd.f32 %v2311, %v2318
    %v2324 = vadd.f32 %v2312, %v2319
    %s2325 = sld [smem:[#allocation6 + $0x27]]
    %v2326 = vstv %s2325
    %v2327 = vmul.f32 %v2326, %v239
    %v2328 = vmul.f32 %v2326, %v240
    %v2329 = vmul.f32 %v2326, %v241
    %v2330 = vmul.f32 %v2326, %v242
    %v2331 = vmul.f32 %v2326, %v243
    %v2332 = vadd.f32 %v2320, %v2327
    %v2333 = vadd.f32 %v2321, %v2328
    %v2334 = vadd.f32 %v2322, %v2329
    %v2335 = vadd.f32 %v2323, %v2330
    %v2336 = vadd.f32 %v2324, %v2331
    %s2337 = sld [smem:[#allocation6 + $0x28]]
    %v2338 = vstv %s2337
    %v2339 = vmul.f32 %v2338, %v115
    %v2340 = vmul.f32 %v2338, %v116
    %v2341 = vmul.f32 %v2338, %v117
    %v2342 = vmul.f32 %v2338, %v118
    %v2343 = vmul.f32 %v2338, %v119
    %s2344 = sld [smem:[#allocation6 + $0x29]]
    %v2345 = vstv %s2344
    %v2346 = vmul.f32 %v2345, %v146
    %v2347 = vmul.f32 %v2345, %v147
    %v2348 = vmul.f32 %v2345, %v148
    %v2349 = vmul.f32 %v2345, %v149
    %v2350 = vmul.f32 %v2345, %v150
    %v2351 = vadd.f32 %v2339, %v2346
    %v2352 = vadd.f32 %v2340, %v2347
    %v2353 = vadd.f32 %v2341, %v2348
    %v2354 = vadd.f32 %v2342, %v2349
    %v2355 = vadd.f32 %v2343, %v2350
    %s2356 = sld [smem:[#allocation6 + $0x2a]]
    %v2357 = vstv %s2356
    %v2358 = vmul.f32 %v2357, %v177
    %v2359 = vmul.f32 %v2357, %v178
    %v2360 = vmul.f32 %v2357, %v179
    %v2361 = vmul.f32 %v2357, %v180
    %v2362 = vmul.f32 %v2357, %v181
    %v2363 = vadd.f32 %v2351, %v2358
    %v2364 = vadd.f32 %v2352, %v2359
    %v2365 = vadd.f32 %v2353, %v2360
    %v2366 = vadd.f32 %v2354, %v2361
    %v2367 = vadd.f32 %v2355, %v2362
    %s2368 = sld [smem:[#allocation6 + $0x2b]]
    %v2369 = vstv %s2368
    %v2370 = vmul.f32 %v2369, %v208
    %v2371 = vmul.f32 %v2369, %v209
    %v2372 = vmul.f32 %v2369, %v210
    %v2373 = vmul.f32 %v2369, %v211
    %v2374 = vmul.f32 %v2369, %v212
    %v2375 = vadd.f32 %v2363, %v2370
    %v2376 = vadd.f32 %v2364, %v2371
    %v2377 = vadd.f32 %v2365, %v2372
    %v2378 = vadd.f32 %v2366, %v2373
    %v2379 = vadd.f32 %v2367, %v2374
    %s2380 = sld [smem:[#allocation6 + $0x2c]]
    %v2381 = vstv %s2380
    %v2382 = vmul.f32 %v2381, %v239
    %v2383 = vmul.f32 %v2381, %v240
    %v2384 = vmul.f32 %v2381, %v241
    %v2385 = vmul.f32 %v2381, %v242
    %v2386 = vmul.f32 %v2381, %v243
    %v2387 = vadd.f32 %v2375, %v2382
    %v2388 = vadd.f32 %v2376, %v2383
    %v2389 = vadd.f32 %v2377, %v2384
    %v2390 = vadd.f32 %v2378, %v2385
    %v2391 = vadd.f32 %v2379, %v2386
    %v2397 = vrot.slane %v2332, 6
    %v2398 = vrot.slane %v2333, 6
    %v2399 = vsel %vm1012, %v2397, %v2398
    %v2400 = vrot.slane %v2334, 6
    %v2401 = vsel %vm1012, %v2398, %v2400
    %v2402 = vrot.slane %v2335, 6
    %v2403 = vsel %vm1012, %v2400, %v2402
    %v2404 = vrot.slane %v2336, 6
    %v2405 = vsel %vm1012, %v2402, %v2404
    %v2413 = vrot.slane %v2387, 4
    %v2414 = vrot.slane %v2388, 4
    %v2415 = vsel %vm2008, %v2413, %v2414
    %v2416 = vrot.slane %v2389, 4
    %v2417 = vsel %vm2008, %v2414, %v2416
    %v2418 = vrot.slane %v2390, 4
    %v2419 = vsel %vm2008, %v2416, %v2418
    %v2420 = vrot.slane %v2391, 4
    %v2421 = vsel %vm2008, %v2418, %v2420
    %v2423 = vsel %vm1012, %v2281, %v2397
    %v2424 = vsel %vm2008, %v2405, %v2413
    %s2425 = sld [smem:[#allocation7 + $0x2]]
    %v2426 = vstv %s2425
    %s2427 = sld [smem:[#allocation6 + $0x2d]]
    %v2428 = vstv %s2427
    %v2429 = vmul.f32 %v2428, %v115
    %v2430 = vmul.f32 %v2428, %v116
    %v2431 = vmul.f32 %v2428, %v117
    %v2432 = vmul.f32 %v2428, %v118
    %v2433 = vmul.f32 %v2428, %v119
    %s2434 = sld [smem:[#allocation6 + $0x2e]]
    %v2435 = vstv %s2434
    %v2436 = vmul.f32 %v2435, %v146
    %v2437 = vmul.f32 %v2435, %v147
    %v2438 = vmul.f32 %v2435, %v148
    %v2439 = vmul.f32 %v2435, %v149
    %v2440 = vmul.f32 %v2435, %v150
    %v2441 = vadd.f32 %v2429, %v2436
    %v2442 = vadd.f32 %v2430, %v2437
    %v2443 = vadd.f32 %v2431, %v2438
    %v2444 = vadd.f32 %v2432, %v2439
    %v2445 = vadd.f32 %v2433, %v2440
    %s2446 = sld [smem:[#allocation6 + $0x2f]]
    %v2447 = vstv %s2446
    %v2448 = vmul.f32 %v2447, %v177
    %v2449 = vmul.f32 %v2447, %v178
    %v2450 = vmul.f32 %v2447, %v179
    %v2451 = vmul.f32 %v2447, %v180
    %v2452 = vmul.f32 %v2447, %v181
    %v2453 = vadd.f32 %v2441, %v2448
    %v2454 = vadd.f32 %v2442, %v2449
    %v2455 = vadd.f32 %v2443, %v2450
    %v2456 = vadd.f32 %v2444, %v2451
    %v2457 = vadd.f32 %v2445, %v2452
    %s2458 = sld [smem:[#allocation6 + $0x30]]
    %v2459 = vstv %s2458
    %v2460 = vmul.f32 %v2459, %v208
    %v2461 = vmul.f32 %v2459, %v209
    %v2462 = vmul.f32 %v2459, %v210
    %v2463 = vmul.f32 %v2459, %v211
    %v2464 = vmul.f32 %v2459, %v212
    %v2465 = vadd.f32 %v2453, %v2460
    %v2466 = vadd.f32 %v2454, %v2461
    %v2467 = vadd.f32 %v2455, %v2462
    %v2468 = vadd.f32 %v2456, %v2463
    %v2469 = vadd.f32 %v2457, %v2464
    %s2470 = sld [smem:[#allocation6 + $0x31]]
    %v2471 = vstv %s2470
    %v2472 = vmul.f32 %v2471, %v239
    %v2473 = vmul.f32 %v2471, %v240
    %v2474 = vmul.f32 %v2471, %v241
    %v2475 = vmul.f32 %v2471, %v242
    %v2476 = vmul.f32 %v2471, %v243
    %v2477 = vadd.f32 %v2465, %v2472
    %v2478 = vadd.f32 %v2466, %v2473
    %v2479 = vadd.f32 %v2467, %v2474
    %v2480 = vadd.f32 %v2468, %v2475
    %v2481 = vadd.f32 %v2469, %v2476
    %s2482 = sld [smem:[#allocation6 + $0x32]]
    %v2483 = vstv %s2482
    %v2484 = vmul.f32 %v2483, %v115
    %v2485 = vmul.f32 %v2483, %v116
    %v2486 = vmul.f32 %v2483, %v117
    %v2487 = vmul.f32 %v2483, %v118
    %v2488 = vmul.f32 %v2483, %v119
    %s2489 = sld [smem:[#allocation6 + $0x33]]
    %v2490 = vstv %s2489
    %v2491 = vmul.f32 %v2490, %v146
    %v2492 = vmul.f32 %v2490, %v147
    %v2493 = vmul.f32 %v2490, %v148
    %v2494 = vmul.f32 %v2490, %v149
    %v2495 = vmul.f32 %v2490, %v150
    %v2496 = vadd.f32 %v2484, %v2491
    %v2497 = vadd.f32 %v2485, %v2492
    %v2498 = vadd.f32 %v2486, %v2493
    %v2499 = vadd.f32 %v2487, %v2494
    %v2500 = vadd.f32 %v2488, %v2495
    %s2501 = sld [smem:[#allocation6 + $0x34]]
    %v2502 = vstv %s2501
    %v2503 = vmul.f32 %v2502, %v177
    %v2504 = vmul.f32 %v2502, %v178
    %v2505 = vmul.f32 %v2502, %v179
    %v2506 = vmul.f32 %v2502, %v180
    %v2507 = vmul.f32 %v2502, %v181
    %v2508 = vadd.f32 %v2496, %v2503
    %v2509 = vadd.f32 %v2497, %v2504
    %v2510 = vadd.f32 %v2498, %v2505
    %v2511 = vadd.f32 %v2499, %v2506
    %v2512 = vadd.f32 %v2500, %v2507
    %s2513 = sld [smem:[#allocation6 + $0x35]]
    %v2514 = vstv %s2513
    %v2515 = vmul.f32 %v2514, %v208
    %v2516 = vmul.f32 %v2514, %v209
    %v2517 = vmul.f32 %v2514, %v210
    %v2518 = vmul.f32 %v2514, %v211
    %v2519 = vmul.f32 %v2514, %v212
    %v2520 = vadd.f32 %v2508, %v2515
    %v2521 = vadd.f32 %v2509, %v2516
    %v2522 = vadd.f32 %v2510, %v2517
    %v2523 = vadd.f32 %v2511, %v2518
    %v2524 = vadd.f32 %v2512, %v2519
    %s2525 = sld [smem:[#allocation6 + $0x36]]
    %v2526 = vstv %s2525
    %v2527 = vmul.f32 %v2526, %v239
    %v2528 = vmul.f32 %v2526, %v240
    %v2529 = vmul.f32 %v2526, %v241
    %v2530 = vmul.f32 %v2526, %v242
    %v2531 = vmul.f32 %v2526, %v243
    %v2532 = vadd.f32 %v2520, %v2527
    %v2533 = vadd.f32 %v2521, %v2528
    %v2534 = vadd.f32 %v2522, %v2529
    %v2535 = vadd.f32 %v2523, %v2530
    %v2536 = vadd.f32 %v2524, %v2531
    %s2537 = sld [smem:[#allocation6 + $0x37]]
    %v2538 = vstv %s2537
    %v2539 = vmul.f32 %v2538, %v115
    %v2540 = vmul.f32 %v2538, %v116
    %v2541 = vmul.f32 %v2538, %v117
    %v2542 = vmul.f32 %v2538, %v118
    %v2543 = vmul.f32 %v2538, %v119
    %s2544 = sld [smem:[#allocation6 + $0x38]]
    %v2545 = vstv %s2544
    %v2546 = vmul.f32 %v2545, %v146
    %v2547 = vmul.f32 %v2545, %v147
    %v2548 = vmul.f32 %v2545, %v148
    %v2549 = vmul.f32 %v2545, %v149
    %v2550 = vmul.f32 %v2545, %v150
    %v2551 = vadd.f32 %v2539, %v2546
    %v2552 = vadd.f32 %v2540, %v2547
    %v2553 = vadd.f32 %v2541, %v2548
    %v2554 = vadd.f32 %v2542, %v2549
    %v2555 = vadd.f32 %v2543, %v2550
    %s2556 = sld [smem:[#allocation6 + $0x39]]
    %v2557 = vstv %s2556
    %v2558 = vmul.f32 %v2557, %v177
    %v2559 = vmul.f32 %v2557, %v178
    %v2560 = vmul.f32 %v2557, %v179
    %v2561 = vmul.f32 %v2557, %v180
    %v2562 = vmul.f32 %v2557, %v181
    %v2563 = vadd.f32 %v2551, %v2558
    %v2564 = vadd.f32 %v2552, %v2559
    %v2565 = vadd.f32 %v2553, %v2560
    %v2566 = vadd.f32 %v2554, %v2561
    %v2567 = vadd.f32 %v2555, %v2562
    %s2568 = sld [smem:[#allocation6 + $0x3a]]
    %v2569 = vstv %s2568
    %v2570 = vmul.f32 %v2569, %v208
    %v2571 = vmul.f32 %v2569, %v209
    %v2572 = vmul.f32 %v2569, %v210
    %v2573 = vmul.f32 %v2569, %v211
    %v2574 = vmul.f32 %v2569, %v212
    %v2575 = vadd.f32 %v2563, %v2570
    %v2576 = vadd.f32 %v2564, %v2571
    %v2577 = vadd.f32 %v2565, %v2572
    %v2578 = vadd.f32 %v2566, %v2573
    %v2579 = vadd.f32 %v2567, %v2574
    %s2580 = sld [smem:[#allocation6 + $0x3b]]
    %v2581 = vstv %s2580
    %v2582 = vmul.f32 %v2581, %v239
    %v2583 = vmul.f32 %v2581, %v240
    %v2584 = vmul.f32 %v2581, %v241
    %v2585 = vmul.f32 %v2581, %v242
    %v2586 = vmul.f32 %v2581, %v243
    %v2587 = vadd.f32 %v2575, %v2582
    %v2588 = vadd.f32 %v2576, %v2583
    %v2589 = vadd.f32 %v2577, %v2584
    %v2590 = vadd.f32 %v2578, %v2585
    %v2591 = vadd.f32 %v2579, %v2586
    %v2597 = vrot.slane %v2532, 6
    %v2598 = vrot.slane %v2533, 6
    %v2599 = vsel %vm1012, %v2597, %v2598
    %v2600 = vrot.slane %v2534, 6
    %v2601 = vsel %vm1012, %v2598, %v2600
    %v2602 = vrot.slane %v2535, 6
    %v2603 = vsel %vm1012, %v2600, %v2602
    %v2604 = vrot.slane %v2536, 6
    %v2605 = vsel %vm1012, %v2602, %v2604
    %v2613 = vrot.slane %v2587, 4
    %v2614 = vrot.slane %v2588, 4
    %v2615 = vsel %vm2008, %v2613, %v2614
    %v2616 = vrot.slane %v2589, 4
    %v2617 = vsel %vm2008, %v2614, %v2616
    %v2618 = vrot.slane %v2590, 4
    %v2619 = vsel %vm2008, %v2616, %v2618
    %v2620 = vrot.slane %v2591, 4
    %v2621 = vsel %vm2008, %v2618, %v2620
    %v2623 = vsel %vm1012, %v2481, %v2597
    %v2624 = vsel %vm2008, %v2605, %v2613
    %s2625 = sld [smem:[#allocation7 + $0x3]]
    %v2626 = vstv %s2625
    %s2627 = sld [smem:[#allocation6 + $0x3c]]
    %v2628 = vstv %s2627
    %v2629 = vmul.f32 %v2628, %v115
    %v2630 = vmul.f32 %v2628, %v116
    %v2631 = vmul.f32 %v2628, %v117
    %v2632 = vmul.f32 %v2628, %v118
    %v2633 = vmul.f32 %v2628, %v119
    %s2634 = sld [smem:[#allocation6 + $0x3d]]
    %v2635 = vstv %s2634
    %v2636 = vmul.f32 %v2635, %v146
    %v2637 = vmul.f32 %v2635, %v147
    %v2638 = vmul.f32 %v2635, %v148
    %v2639 = vmul.f32 %v2635, %v149
    %v2640 = vmul.f32 %v2635, %v150
    %v2641 = vadd.f32 %v2629, %v2636
    %v2642 = vadd.f32 %v2630, %v2637
    %v2643 = vadd.f32 %v2631, %v2638
    %v2644 = vadd.f32 %v2632, %v2639
    %v2645 = vadd.f32 %v2633, %v2640
    %s2646 = sld [smem:[#allocation6 + $0x3e]]
    %v2647 = vstv %s2646
    %v2648 = vmul.f32 %v2647, %v177
    %v2649 = vmul.f32 %v2647, %v178
    %v2650 = vmul.f32 %v2647, %v179
    %v2651 = vmul.f32 %v2647, %v180
    %v2652 = vmul.f32 %v2647, %v181
    %v2653 = vadd.f32 %v2641, %v2648
    %v2654 = vadd.f32 %v2642, %v2649
    %v2655 = vadd.f32 %v2643, %v2650
    %v2656 = vadd.f32 %v2644, %v2651
    %v2657 = vadd.f32 %v2645, %v2652
    %s2658 = sld [smem:[#allocation6 + $0x3f]]
    %v2659 = vstv %s2658
    %v2660 = vmul.f32 %v2659, %v208
    %v2661 = vmul.f32 %v2659, %v209
    %v2662 = vmul.f32 %v2659, %v210
    %v2663 = vmul.f32 %v2659, %v211
    %v2664 = vmul.f32 %v2659, %v212
    %v2665 = vadd.f32 %v2653, %v2660
    %v2666 = vadd.f32 %v2654, %v2661
    %v2667 = vadd.f32 %v2655, %v2662
    %v2668 = vadd.f32 %v2656, %v2663
    %v2669 = vadd.f32 %v2657, %v2664
    %s2670 = sld [smem:[#allocation6 + $0x40]]
    %v2671 = vstv %s2670
    %v2672 = vmul.f32 %v2671, %v239
    %v2673 = vmul.f32 %v2671, %v240
    %v2674 = vmul.f32 %v2671, %v241
    %v2675 = vmul.f32 %v2671, %v242
    %v2676 = vmul.f32 %v2671, %v243
    %v2677 = vadd.f32 %v2665, %v2672
    %v2678 = vadd.f32 %v2666, %v2673
    %v2679 = vadd.f32 %v2667, %v2674
    %v2680 = vadd.f32 %v2668, %v2675
    %v2681 = vadd.f32 %v2669, %v2676
    %s2682 = sld [smem:[#allocation6 + $0x41]]
    %v2683 = vstv %s2682
    %v2684 = vmul.f32 %v2683, %v115
    %v2685 = vmul.f32 %v2683, %v116
    %v2686 = vmul.f32 %v2683, %v117
    %v2687 = vmul.f32 %v2683, %v118
    %v2688 = vmul.f32 %v2683, %v119
    %s2689 = sld [smem:[#allocation6 + $0x42]]
    %v2690 = vstv %s2689
    %v2691 = vmul.f32 %v2690, %v146
    %v2692 = vmul.f32 %v2690, %v147
    %v2693 = vmul.f32 %v2690, %v148
    %v2694 = vmul.f32 %v2690, %v149
    %v2695 = vmul.f32 %v2690, %v150
    %v2696 = vadd.f32 %v2684, %v2691
    %v2697 = vadd.f32 %v2685, %v2692
    %v2698 = vadd.f32 %v2686, %v2693
    %v2699 = vadd.f32 %v2687, %v2694
    %v2700 = vadd.f32 %v2688, %v2695
    %s2701 = sld [smem:[#allocation6 + $0x43]]
    %v2702 = vstv %s2701
    %v2703 = vmul.f32 %v2702, %v177
    %v2704 = vmul.f32 %v2702, %v178
    %v2705 = vmul.f32 %v2702, %v179
    %v2706 = vmul.f32 %v2702, %v180
    %v2707 = vmul.f32 %v2702, %v181
    %v2708 = vadd.f32 %v2696, %v2703
    %v2709 = vadd.f32 %v2697, %v2704
    %v2710 = vadd.f32 %v2698, %v2705
    %v2711 = vadd.f32 %v2699, %v2706
    %v2712 = vadd.f32 %v2700, %v2707
    %s2713 = sld [smem:[#allocation6 + $0x44]]
    %v2714 = vstv %s2713
    %v2715 = vmul.f32 %v2714, %v208
    %v2716 = vmul.f32 %v2714, %v209
    %v2717 = vmul.f32 %v2714, %v210
    %v2718 = vmul.f32 %v2714, %v211
    %v2719 = vmul.f32 %v2714, %v212
    %v2720 = vadd.f32 %v2708, %v2715
    %v2721 = vadd.f32 %v2709, %v2716
    %v2722 = vadd.f32 %v2710, %v2717
    %v2723 = vadd.f32 %v2711, %v2718
    %v2724 = vadd.f32 %v2712, %v2719
    %s2725 = sld [smem:[#allocation6 + $0x45]]
    %v2726 = vstv %s2725
    %v2727 = vmul.f32 %v2726, %v239
    %v2728 = vmul.f32 %v2726, %v240
    %v2729 = vmul.f32 %v2726, %v241
    %v2730 = vmul.f32 %v2726, %v242
    %v2731 = vmul.f32 %v2726, %v243
    %v2732 = vadd.f32 %v2720, %v2727
    %v2733 = vadd.f32 %v2721, %v2728
    %v2734 = vadd.f32 %v2722, %v2729
    %v2735 = vadd.f32 %v2723, %v2730
    %v2736 = vadd.f32 %v2724, %v2731
    %s2737 = sld [smem:[#allocation6 + $0x46]]
    %v2738 = vstv %s2737
    %v2739 = vmul.f32 %v2738, %v115
    %v2740 = vmul.f32 %v2738, %v116
    %v2741 = vmul.f32 %v2738, %v117
    %v2742 = vmul.f32 %v2738, %v118
    %v2743 = vmul.f32 %v2738, %v119
    %s2744 = sld [smem:[#allocation6 + $0x47]]
    %v2745 = vstv %s2744
    %v2746 = vmul.f32 %v2745, %v146
    %v2747 = vmul.f32 %v2745, %v147
    %v2748 = vmul.f32 %v2745, %v148
    %v2749 = vmul.f32 %v2745, %v149
    %v2750 = vmul.f32 %v2745, %v150
    %v2751 = vadd.f32 %v2739, %v2746
    %v2752 = vadd.f32 %v2740, %v2747
    %v2753 = vadd.f32 %v2741, %v2748
    %v2754 = vadd.f32 %v2742, %v2749
    %v2755 = vadd.f32 %v2743, %v2750
    %s2756 = sld [smem:[#allocation6 + $0x48]]
    %v2757 = vstv %s2756
    %v2758 = vmul.f32 %v2757, %v177
    %v2759 = vmul.f32 %v2757, %v178
    %v2760 = vmul.f32 %v2757, %v179
    %v2761 = vmul.f32 %v2757, %v180
    %v2762 = vmul.f32 %v2757, %v181
    %v2763 = vadd.f32 %v2751, %v2758
    %v2764 = vadd.f32 %v2752, %v2759
    %v2765 = vadd.f32 %v2753, %v2760
    %v2766 = vadd.f32 %v2754, %v2761
    %v2767 = vadd.f32 %v2755, %v2762
    %s2768 = sld [smem:[#allocation6 + $0x49]]
    %v2769 = vstv %s2768
    %v2770 = vmul.f32 %v2769, %v208
    %v2771 = vmul.f32 %v2769, %v209
    %v2772 = vmul.f32 %v2769, %v210
    %v2773 = vmul.f32 %v2769, %v211
    %v2774 = vmul.f32 %v2769, %v212
    %v2775 = vadd.f32 %v2763, %v2770
    %v2776 = vadd.f32 %v2764, %v2771
    %v2777 = vadd.f32 %v2765, %v2772
    %v2778 = vadd.f32 %v2766, %v2773
    %v2779 = vadd.f32 %v2767, %v2774
    %s2780 = sld [smem:[#allocation6 + $0x4a]]
    %v2781 = vstv %s2780
    %v2782 = vmul.f32 %v2781, %v239
    %v2783 = vmul.f32 %v2781, %v240
    %v2784 = vmul.f32 %v2781, %v241
    %v2785 = vmul.f32 %v2781, %v242
    %v2786 = vmul.f32 %v2781, %v243
    %v2787 = vadd.f32 %v2775, %v2782
    %v2788 = vadd.f32 %v2776, %v2783
    %v2789 = vadd.f32 %v2777, %v2784
    %v2790 = vadd.f32 %v2778, %v2785
    %v2791 = vadd.f32 %v2779, %v2786
    %v2797 = vrot.slane %v2732, 6
    %v2798 = vrot.slane %v2733, 6
    %v2799 = vsel %vm1012, %v2797, %v2798
    %v2800 = vrot.slane %v2734, 6
    %v2801 = vsel %vm1012, %v2798, %v2800
    %v2802 = vrot.slane %v2735, 6
    %v2803 = vsel %vm1012, %v2800, %v2802
    %v2804 = vrot.slane %v2736, 6
    %v2805 = vsel %vm1012, %v2802, %v2804
    %v2813 = vrot.slane %v2787, 4
    %v2814 = vrot.slane %v2788, 4
    %v2815 = vsel %vm2008, %v2813, %v2814
    %v2816 = vrot.slane %v2789, 4
    %v2817 = vsel %vm2008, %v2814, %v2816
    %v2818 = vrot.slane %v2790, 4
    %v2819 = vsel %vm2008, %v2816, %v2818
    %v2820 = vrot.slane %v2791, 4
    %v2821 = vsel %vm2008, %v2818, %v2820
    %v2823 = vsel %vm1012, %v2681, %v2797
    %v2824 = vsel %vm2008, %v2805, %v2813
    %s2825 = sld [smem:[#allocation7 + $0x4]]
    %v2826 = vstv %s2825
    %s2827 = sld [smem:[#allocation6 + $0x4b]]
    %v2828 = vstv %s2827
    %v2829 = vmul.f32 %v2828, %v115
    %v2830 = vmul.f32 %v2828, %v116
    %v2831 = vmul.f32 %v2828, %v117
    %v2832 = vmul.f32 %v2828, %v118
    %v2833 = vmul.f32 %v2828, %v119
    %s2834 = sld [smem:[#allocation6 + $0x4c]]
    %v2835 = vstv %s2834
    %v2836 = vmul.f32 %v2835, %v146
    %v2837 = vmul.f32 %v2835, %v147
    %v2838 = vmul.f32 %v2835, %v148
    %v2839 = vmul.f32 %v2835, %v149
    %v2840 = vmul.f32 %v2835, %v150
    %v2841 = vadd.f32 %v2829, %v2836
    %v2842 = vadd.f32 %v2830, %v2837
    %v2843 = vadd.f32 %v2831, %v2838
    %v2844 = vadd.f32 %v2832, %v2839
    %v2845 = vadd.f32 %v2833, %v2840
    %s2846 = sld [smem:[#allocation6 + $0x4d]]
    %v2847 = vstv %s2846
    %v2848 = vmul.f32 %v2847, %v177
    %v2849 = vmul.f32 %v2847, %v178
    %v2850 = vmul.f32 %v2847, %v179
    %v2851 = vmul.f32 %v2847, %v180
    %v2852 = vmul.f32 %v2847, %v181
    %v2853 = vadd.f32 %v2841, %v2848
    %v2854 = vadd.f32 %v2842, %v2849
    %v2855 = vadd.f32 %v2843, %v2850
    %v2856 = vadd.f32 %v2844, %v2851
    %v2857 = vadd.f32 %v2845, %v2852
    %s2858 = sld [smem:[#allocation6 + $0x4e]]
    %v2859 = vstv %s2858
    %v2860 = vmul.f32 %v2859, %v208
    %v2861 = vmul.f32 %v2859, %v209
    %v2862 = vmul.f32 %v2859, %v210
    %v2863 = vmul.f32 %v2859, %v211
    %v2864 = vmul.f32 %v2859, %v212
    %v2865 = vadd.f32 %v2853, %v2860
    %v2866 = vadd.f32 %v2854, %v2861
    %v2867 = vadd.f32 %v2855, %v2862
    %v2868 = vadd.f32 %v2856, %v2863
    %v2869 = vadd.f32 %v2857, %v2864
    %s2870 = sld [smem:[#allocation6 + $0x4f]]
    %v2871 = vstv %s2870
    %v2872 = vmul.f32 %v2871, %v239
    %v2873 = vmul.f32 %v2871, %v240
    %v2874 = vmul.f32 %v2871, %v241
    %v2875 = vmul.f32 %v2871, %v242
    %v2876 = vmul.f32 %v2871, %v243
    %v2877 = vadd.f32 %v2865, %v2872
    %v2878 = vadd.f32 %v2866, %v2873
    %v2879 = vadd.f32 %v2867, %v2874
    %v2880 = vadd.f32 %v2868, %v2875
    %v2881 = vadd.f32 %v2869, %v2876
    %s2882 = sld [smem:[#allocation6 + $0x50]]
    %v2883 = vstv %s2882
    %v2884 = vmul.f32 %v2883, %v115
    %v2885 = vmul.f32 %v2883, %v116
    %v2886 = vmul.f32 %v2883, %v117
    %v2887 = vmul.f32 %v2883, %v118
    %v2888 = vmul.f32 %v2883, %v119
    %s2889 = sld [smem:[#allocation6 + $0x51]]
    %v2890 = vstv %s2889
    %v2891 = vmul.f32 %v2890, %v146
    %v2892 = vmul.f32 %v2890, %v147
    %v2893 = vmul.f32 %v2890, %v148
    %v2894 = vmul.f32 %v2890, %v149
    %v2895 = vmul.f32 %v2890, %v150
    %v2896 = vadd.f32 %v2884, %v2891
    %v2897 = vadd.f32 %v2885, %v2892
    %v2898 = vadd.f32 %v2886, %v2893
    %v2899 = vadd.f32 %v2887, %v2894
    %v2900 = vadd.f32 %v2888, %v2895
    %s2901 = sld [smem:[#allocation6 + $0x52]]
    %v2902 = vstv %s2901
    %v2903 = vmul.f32 %v2902, %v177
    %v2904 = vmul.f32 %v2902, %v178
    %v2905 = vmul.f32 %v2902, %v179
    %v2906 = vmul.f32 %v2902, %v180
    %v2907 = vmul.f32 %v2902, %v181
    %v2908 = vadd.f32 %v2896, %v2903
    %v2909 = vadd.f32 %v2897, %v2904
    %v2910 = vadd.f32 %v2898, %v2905
    %v2911 = vadd.f32 %v2899, %v2906
    %v2912 = vadd.f32 %v2900, %v2907
    %s2913 = sld [smem:[#allocation6 + $0x53]]
    %v2914 = vstv %s2913
    %v2915 = vmul.f32 %v2914, %v208
    %v2916 = vmul.f32 %v2914, %v209
    %v2917 = vmul.f32 %v2914, %v210
    %v2918 = vmul.f32 %v2914, %v211
    %v2919 = vmul.f32 %v2914, %v212
    %v2920 = vadd.f32 %v2908, %v2915
    %v2921 = vadd.f32 %v2909, %v2916
    %v2922 = vadd.f32 %v2910, %v2917
    %v2923 = vadd.f32 %v2911, %v2918
    %v2924 = vadd.f32 %v2912, %v2919
    %s2925 = sld [smem:[#allocation6 + $0x54]]
    %v2926 = vstv %s2925
    %v2927 = vmul.f32 %v2926, %v239
    %v2928 = vmul.f32 %v2926, %v240
    %v2929 = vmul.f32 %v2926, %v241
    %v2930 = vmul.f32 %v2926, %v242
    %v2931 = vmul.f32 %v2926, %v243
    %v2932 = vadd.f32 %v2920, %v2927
    %v2933 = vadd.f32 %v2921, %v2928
    %v2934 = vadd.f32 %v2922, %v2929
    %v2935 = vadd.f32 %v2923, %v2930
    %v2936 = vadd.f32 %v2924, %v2931
    %s2937 = sld [smem:[#allocation6 + $0x55]]
    %v2938 = vstv %s2937
    %v2939 = vmul.f32 %v2938, %v115
    %v2940 = vmul.f32 %v2938, %v116
    %v2941 = vmul.f32 %v2938, %v117
    %v2942 = vmul.f32 %v2938, %v118
    %v2943 = vmul.f32 %v2938, %v119
    %s2944 = sld [smem:[#allocation6 + $0x56]]
    %v2945 = vstv %s2944
    %v2946 = vmul.f32 %v2945, %v146
    %v2947 = vmul.f32 %v2945, %v147
    %v2948 = vmul.f32 %v2945, %v148
    %v2949 = vmul.f32 %v2945, %v149
    %v2950 = vmul.f32 %v2945, %v150
    %v2951 = vadd.f32 %v2939, %v2946
    %v2952 = vadd.f32 %v2940, %v2947
    %v2953 = vadd.f32 %v2941, %v2948
    %v2954 = vadd.f32 %v2942, %v2949
    %v2955 = vadd.f32 %v2943, %v2950
    %s2956 = sld [smem:[#allocation6 + $0x57]]
    %v2957 = vstv %s2956
    %v2958 = vmul.f32 %v2957, %v177
    %v2959 = vmul.f32 %v2957, %v178
    %v2960 = vmul.f32 %v2957, %v179
    %v2961 = vmul.f32 %v2957, %v180
    %v2962 = vmul.f32 %v2957, %v181
    %v2963 = vadd.f32 %v2951, %v2958
    %v2964 = vadd.f32 %v2952, %v2959
    %v2965 = vadd.f32 %v2953, %v2960
    %v2966 = vadd.f32 %v2954, %v2961
    %v2967 = vadd.f32 %v2955, %v2962
    %s2968 = sld [smem:[#allocation6 + $0x58]]
    %v2969 = vstv %s2968
    %v2970 = vmul.f32 %v2969, %v208
    %v2971 = vmul.f32 %v2969, %v209
    %v2972 = vmul.f32 %v2969, %v210
    %v2973 = vmul.f32 %v2969, %v211
    %v2974 = vmul.f32 %v2969, %v212
    %v2975 = vadd.f32 %v2963, %v2970
    %v2976 = vadd.f32 %v2964, %v2971
    %v2977 = vadd.f32 %v2965, %v2972
    %v2978 = vadd.f32 %v2966, %v2973
    %v2979 = vadd.f32 %v2967, %v2974
    %s2980 = sld [smem:[#allocation6 + $0x59]]
    %v2981 = vstv %s2980
    %v2982 = vmul.f32 %v2981, %v239
    %v2983 = vmul.f32 %v2981, %v240
    %v2984 = vmul.f32 %v2981, %v241
    %v2985 = vmul.f32 %v2981, %v242
    %v2986 = vmul.f32 %v2981, %v243
    %v2987 = vadd.f32 %v2975, %v2982
    %v2988 = vadd.f32 %v2976, %v2983
    %v2989 = vadd.f32 %v2977, %v2984
    %v2990 = vadd.f32 %v2978, %v2985
    %v2991 = vadd.f32 %v2979, %v2986
    %v2997 = vrot.slane %v2932, 6
    %v2998 = vrot.slane %v2933, 6
    %v2999 = vsel %vm1012, %v2997, %v2998
    %v3000 = vrot.slane %v2934, 6
    %v3001 = vsel %vm1012, %v2998, %v3000
    %v3002 = vrot.slane %v2935, 6
    %v3003 = vsel %vm1012, %v3000, %v3002
    %v3004 = vrot.slane %v2936, 6
    %v3005 = vsel %vm1012, %v3002, %v3004
    %v3013 = vrot.slane %v2987, 4
    %v3014 = vrot.slane %v2988, 4
    %v3015 = vsel %vm2008, %v3013, %v3014
    %v3016 = vrot.slane %v2989, 4
    %v3017 = vsel %vm2008, %v3014, %v3016
    %v3018 = vrot.slane %v2990, 4
    %v3019 = vsel %vm2008, %v3016, %v3018
    %v3020 = vrot.slane %v2991, 4
    %v3021 = vsel %vm2008, %v3018, %v3020
    %v3023 = vsel %vm1012, %v2881, %v2997
    %v3024 = vsel %vm2008, %v3005, %v3013
    %s3025 = sld [smem:[#allocation7 + $0x5]]
    %v3026 = vstv %s3025
    %3033 = vrot.lane.b32.xlu0 %v2077, 30
    %v3034 = vpop.permute.xlu0 %3033
    %3035 = vrot.lane.b32.xlu0 %v2078, 30
    %v3036 = vpop.permute.xlu0 %3035
    %3037 = vrot.lane.b32.xlu0 %v2079, 30
    %v3038 = vpop.permute.xlu0 %3037
    %3039 = vrot.lane.b32.xlu0 %v2080, 30
    %v3040 = vpop.permute.xlu0 %3039
    %3041 = vrot.lane.b32.xlu0 %v2223, 30
    %v3042 = vpop.permute.xlu0 %3041
    %3043 = vrot.lane.b32.xlu0 %v2199, 30
    %v3044 = vpop.permute.xlu0 %3043
    %3045 = vrot.lane.b32.xlu0 %v2201, 30
    %v3046 = vpop.permute.xlu0 %3045
    %3047 = vrot.lane.b32.xlu0 %v2203, 30
    %v3048 = vpop.permute.xlu0 %3047
    %3049 = vrot.lane.b32.xlu0 %v2224, 30
    %v3050 = vpop.permute.xlu0 %3049
    %3051 = vrot.lane.b32.xlu0 %v2215, 30
    %v3052 = vpop.permute.xlu0 %3051
    %3053 = vrot.lane.b32.xlu0 %v2217, 30
    %v3054 = vpop.permute.xlu0 %3053
    %3055 = vrot.lane.b32.xlu0 %v2219, 30
    %v3056 = vpop.permute.xlu0 %3055
    %3057 = vrot.lane.b32.xlu0 %v2221, 30
    %v3058 = vpop.permute.xlu0 %3057
    %3078 = vrot.lane.b32.xlu0 %v2277, 60
    %v3079 = vpop.permute.xlu0 %3078
    %3080 = vrot.lane.b32.xlu0 %v2278, 60
    %v3081 = vpop.permute.xlu0 %3080
    %3082 = vrot.lane.b32.xlu0 %v2279, 60
    %v3083 = vpop.permute.xlu0 %3082
    %3084 = vrot.lane.b32.xlu0 %v2280, 60
    %v3085 = vpop.permute.xlu0 %3084
    %3086 = vrot.lane.b32.xlu0 %v2423, 60
    %v3087 = vpop.permute.xlu0 %3086
    %3088 = vrot.lane.b32.xlu0 %v2399, 60
    %v3089 = vpop.permute.xlu0 %3088
    %3090 = vrot.lane.b32.xlu0 %v2401, 60
    %v3091 = vpop.permute.xlu0 %3090
    %3092 = vrot.lane.b32.xlu0 %v2403, 60
    %v3093 = vpop.permute.xlu0 %3092
    %3094 = vrot.lane.b32.xlu0 %v2424, 60
    %v3095 = vpop.permute.xlu0 %3094
    %3096 = vrot.lane.b32.xlu0 %v2415, 60
    %v3097 = vpop.permute.xlu0 %3096
    %3098 = vrot.lane.b32.xlu0 %v2417, 60
    %v3099 = vpop.permute.xlu0 %3098
    %3100 = vrot.lane.b32.xlu0 %v2419, 60
    %v3101 = vpop.permute.xlu0 %3100
    %3102 = vrot.lane.b32.xlu0 %v2421, 60
    %v3103 = vpop.permute.xlu0 %3102
    %3123 = vrot.lane.b32.xlu0 %v2477, 90
    %v3124 = vpop.permute.xlu0 %3123
    %3125 = vrot.lane.b32.xlu0 %v2478, 90
    %v3126 = vpop.permute.xlu0 %3125
    %3127 = vrot.lane.b32.xlu0 %v2479, 90
    %v3128 = vpop.permute.xlu0 %3127
    %3129 = vrot.lane.b32.xlu0 %v2480, 90
    %v3130 = vpop.permute.xlu0 %3129
    %3131 = vrot.lane.b32.xlu0 %v2623, 90
    %v3132 = vpop.permute.xlu0 %3131
    %3133 = vrot.lane.b32.xlu0 %v2599, 90
    %v3134 = vpop.permute.xlu0 %3133
    %3135 = vrot.lane.b32.xlu0 %v2601, 90
    %v3136 = vpop.permute.xlu0 %3135
    %3137 = vrot.lane.b32.xlu0 %v2603, 90
    %v3138 = vpop.permute.xlu0 %3137
    %3139 = vrot.lane.b32.xlu0 %v2624, 90
    %v3140 = vpop.permute.xlu0 %3139
    %3141 = vrot.lane.b32.xlu0 %v2615, 90
    %v3142 = vpop.permute.xlu0 %3141
    %3143 = vrot.lane.b32.xlu0 %v2617, 90
    %v3144 = vpop.permute.xlu0 %3143
    %3145 = vrot.lane.b32.xlu0 %v2619, 90
    %v3146 = vpop.permute.xlu0 %3145
    %3147 = vrot.lane.b32.xlu0 %v2621, 90
    %v3148 = vpop.permute.xlu0 %3147
    %3168 = vrot.lane.b32.xlu0 %v2677, 120
    %v3169 = vpop.permute.xlu0 %3168
    %3170 = vrot.lane.b32.xlu0 %v2678, 120
    %v3171 = vpop.permute.xlu0 %3170
    %3172 = vrot.lane.b32.xlu0 %v2679, 120
    %v3173 = vpop.permute.xlu0 %3172
    %3174 = vrot.lane.b32.xlu0 %v2680, 120
    %v3175 = vpop.permute.xlu0 %3174
    %3176 = vrot.lane.b32.xlu0 %v2823, 120
    %v3177 = vpop.permute.xlu0 %3176
    %3178 = vrot.lane.b32.xlu0 %v2799, 120
    %v3179 = vpop.permute.xlu0 %3178
    %3180 = vrot.lane.b32.xlu0 %v2801, 120
    %v3181 = vpop.permute.xlu0 %3180
    %3182 = vrot.lane.b32.xlu0 %v2803, 120
    %v3183 = vpop.permute.xlu0 %3182
    %3184 = vrot.lane.b32.xlu0 %v2824, 120
    %v3185 = vpop.permute.xlu0 %3184
    %3186 = vrot.lane.b32.xlu0 %v2815, 120
    %v3187 = vpop.permute.xlu0 %3186
    %3188 = vrot.lane.b32.xlu0 %v2817, 120
    %v3189 = vpop.permute.xlu0 %3188
    %3190 = vrot.lane.b32.xlu0 %v2819, 120
    %v3191 = vpop.permute.xlu0 %3190
    %3192 = vrot.lane.b32.xlu0 %v2821, 120
    %v3193 = vpop.permute.xlu0 %3192
    %3213 = vrot.lane.b32.xlu0 %v2877, 22
    %v3214 = vpop.permute.xlu0 %3213
    %3215 = vrot.lane.b32.xlu0 %v2878, 22
    %v3216 = vpop.permute.xlu0 %3215
    %3217 = vrot.lane.b32.xlu0 %v2879, 22
    %v3218 = vpop.permute.xlu0 %3217
    %3219 = vrot.lane.b32.xlu0 %v2880, 22
    %v3220 = vpop.permute.xlu0 %3219
    %3221 = vrot.lane.b32.xlu0 %v3023, 22
    %v3222 = vpop.permute.xlu0 %3221
    %3223 = vrot.lane.b32.xlu0 %v2999, 22
    %v3224 = vpop.permute.xlu0 %3223
    %3225 = vrot.lane.b32.xlu0 %v3001, 22
    %v3226 = vpop.permute.xlu0 %3225
    %3227 = vrot.lane.b32.xlu0 %v3003, 22
    %v3228 = vpop.permute.xlu0 %3227
    %3229 = vrot.lane.b32.xlu0 %v3024, 22
    %v3230 = vpop.permute.xlu0 %3229
    %3231 = vrot.lane.b32.xlu0 %v3015, 22
    %v3232 = vpop.permute.xlu0 %3231
    %3233 = vrot.lane.b32.xlu0 %v3017, 22
    %v3234 = vpop.permute.xlu0 %3233
    %3235 = vrot.lane.b32.xlu0 %v3019, 22
    %v3236 = vpop.permute.xlu0 %3235
    %3237 = vrot.lane.b32.xlu0 %v3021, 22
    %v3238 = vpop.permute.xlu0 %3237
    %vm3252 = vcmask 244736
    %v3253 = vsel %vm3252, %v1869, %v3034
    %v3254 = vsel %vm3252, %v1870, %v3036
    %v3255 = vsel %vm3252, %v1871, %v3038
    %v3256 = vsel %vm3252, %v1872, %v3040
    %v3257 = vsel %vm3252, %v2023, %v3042
    %v3258 = vsel %vm3252, %v1991, %v3044
    %v3259 = vsel %vm3252, %v1993, %v3046
    %v3260 = vsel %vm3252, %v1995, %v3048
    %v3261 = vsel %vm3252, %v2024, %v3050
    %v3262 = vsel %vm3252, %v2011, %v3052
    %v3263 = vsel %vm3252, %v2013, %v3054
    %v3264 = vsel %vm3252, %v2015, %v3056
    %v3265 = vsel %vm3252, %v2017, %v3058
    %vm3266 = vcmask 490496
    %v3267 = vsel %vm3266, %v3253, %v3079
    %v3268 = vsel %vm3266, %v3254, %v3081
    %v3269 = vsel %vm3266, %v3255, %v3083
    %v3270 = vsel %vm3266, %v3256, %v3085
    %v3271 = vsel %vm3266, %v3257, %v3087
    %v3272 = vsel %vm3266, %v3258, %v3089
    %v3273 = vsel %vm3266, %v3259, %v3091
    %v3274 = vsel %vm3266, %v3260, %v3093
    %v3275 = vsel %vm3266, %v3261, %v3095
    %v3276 = vsel %vm3266, %v3262, %v3097
    %v3277 = vsel %vm3266, %v3263, %v3099
    %v3278 = vsel %vm3266, %v3264, %v3101
    %v3279 = vsel %vm3266, %v3265, %v3103
    %vm3280 = vcmask 736256
    %v3281 = vsel %vm3280, %v3267, %v3124
    %v3282 = vsel %vm3280, %v3268, %v3126
    %v3283 = vsel %vm3280, %v3269, %v3128
    %v3284 = vsel %vm3280, %v3270, %v3130
    %v3285 = vsel %vm3280, %v3271, %v3132
    %v3286 = vsel %vm3280, %v3272, %v3134
    %v3287 = vsel %vm3280, %v3273, %v3136
    %v3288 = vsel %vm3280, %v3274, %v3138
    %v3289 = vsel %vm3280, %v3275, %v3140
    %v3290 = vsel %vm3280, %v3276, %v3142
    %v3291 = vsel %vm3280, %v3277, %v3144
    %v3292 = vsel %vm3280, %v3278, %v3146
    %v3293 = vsel %vm3280, %v3279, %v3148
    %vm3294 = vcmask 982016
    %v3295 = vsel %vm3294, %v3281, %v3169
    %v3296 = vsel %vm3294, %v3282, %v3171
    %v3297 = vsel %vm3294, %v3283, %v3173
    %v3298 = vsel %vm3294, %v3284, %v3175
    %v3299 = vsel %vm3294, %v3285, %v3177
    %v3300 = vsel %vm3294, %v3286, %v3179
    %v3301 = vsel %vm3294, %v3287, %v3181
    %v3302 = vsel %vm3294, %v3288, %v3183
    %v3303 = vsel %vm3294, %v3289, %v3185
    %v3304 = vsel %vm3294, %v3290, %v3187
    %v3305 = vsel %vm3294, %v3291, %v3189
    %v3306 = vsel %vm3294, %v3292, %v3191
    %v3307 = vsel %vm3294, %v3293, %v3193
    %vm3308 = vcmask 179200
    %v3309 = vsel %vm3308, %v3169, %v3214
    %v3310 = vsel %vm3308, %v3171, %v3216
    %v3311 = vsel %vm3308, %v3173, %v3218
    %v3312 = vsel %vm3308, %v3175, %v3220
    %v3313 = vsel %vm3308, %v3177, %v3222
    %v3314 = vsel %vm3308, %v3179, %v3224
    %v3315 = vsel %vm3308, %v3181, %v3226
    %v3316 = vsel %vm3308, %v3183, %v3228
    %v3317 = vsel %vm3308, %v3185, %v3230
    %v3318 = vsel %vm3308, %v3187, %v3232
    %v3319 = vsel %vm3308, %v3189, %v3234
    %v3320 = vsel %vm3308, %v3191, %v3236
    %v3321 = vsel %vm3308, %v3193, %v3238
    %v3322 = vsel %vm3252, %v2026, %v2226
    %v3323 = vsel %vm3266, %v3322, %v2426
    %v3324 = vsel %vm3280, %v3323, %v2626
    %v3325 = vsel %vm3294, %v3324, %v2826
    %v3326 = vsel %vm3308, %v2826, %v3026
    %v3327 = vlaneseq
    %v3328 = vshrl.u32 %v3327, 7
    %v3329 = vsub.s32 0, %v3328
    %v3330 = vrot.slane %v3325, %v3329
    %v3331 = vlaneseq
    %v3332 = vshrl.u32 %v3331, 7
    %v3333 = vsub.s32 0, %v3332
    %v3334 = vrot.slane %v3326, %v3333
    %vm3335 = vcmask 834560
    %v3337 = vsel %vm3335, %v1811, 0
    %v3340 = vsel %vm3335, %v1812, 0
    %v3343 = vsel %vm3335, %v1813, 0
    %v3346 = vsel %vm3335, %v1814, 0
    %v3349 = vsel %vm3335, %v1815, 0
    %v3352 = vsel %vm3335, %v1816, 0
    %v3355 = vsel %vm3335, %v1817, 0
    %v3358 = vsel %vm3335, %v1818, 0
    %vm3360 = vcmask 1045504
    %v3362 = vsel %vm3360, %v3307, 0
    %v3365 = vsel %vm3360, %v3321, 0
    %3367 = vmatprep.subr.mxu0 0.0
    %3368 = vmatpush1.msra.mxu0 0.0
    %3369 = vmatprep.subr.mxu0 0.0
    %3370 = vmatpush1.msra.mxu0 0.0
    %3371 = vmatprep.subr.mxu0 0.0
    %3372 = vmatpush1.msra.mxu0 0.0
    %3373 = vmatprep.subr.mxu0 %v3365
    %3374 = vmatpush1.msra.mxu0 %v3362
    %3375 = vmatprep.subr.mxu0 %v3320
    %3376 = vmatpush1.msra.mxu0 %v3306
    %3377 = vmatprep.subr.mxu0 %v3319
    %3378 = vmatpush1.msra.mxu0 %v3305
    %3379 = vmatprep.subr.mxu0 %v3318
    %3380 = vmatpush1.msra.mxu0 %v3304
    %3381 = vmatprep.subr.mxu0 %v3317
    %3382 = vmatpush1.msra.mxu0 %v3303
    %3383 = vmatprep.subr.mxu0 %v3316
    %3384 = vmatpush1.msra.mxu0 %v3302
    %3385 = vmatprep.subr.mxu0 %v3315
    %3386 = vmatpush1.msra.mxu0 %v3301
    %3387 = vmatprep.subr.mxu0 %v3314
    %3388 = vmatpush1.msra.mxu0 %v3300
    %3389 = vmatprep.subr.mxu0 %v3313
    %3390 = vmatpush1.msra.mxu0 %v3299
    %3391 = vmatprep.subr.mxu0 %v3312
    %3392 = vmatpush1.msra.mxu0 %v3298
    %3393 = vmatprep.subr.mxu0 %v3311
    %3394 = vmatpush1.msra.mxu0 %v3297
    %3395 = vmatprep.subr.mxu0 %v3310
    %3396 = vmatpush1.msra.mxu0 %v3296
    %3397 = vmatprep.subr.mxu0 %v3309
    %3398 = vmatpush1.msra.mxu0 %v3295
    %3399 = vmatprep.subr.mxu0 0.0
    %3400 = vmatpush2.msra.mxu0 0.0
    %3401 = vmatprep.subr.mxu0 0.0
    %3402 = vmatpush2.msra.mxu0 0.0
    %3403 = vmatprep.subr.mxu0 0.0
    %3404 = vmatpush2.msra.mxu0 0.0
    %3405 = vmatprep.subr.mxu0 0.0
    %3406 = vmatpush2.msra.mxu0 0.0
    %3407 = vmatprep.subr.mxu0 0.0
    %3408 = vmatpush2.msra.mxu0 0.0
    %3409 = vmatprep.subr.mxu0 0.0
    %3410 = vmatpush2.msra.mxu0 0.0
    %3411 = vmatprep.subr.mxu0 0.0
    %3412 = vmatpush2.msra.mxu0 0.0
    %3413 = vmatprep.subr.mxu0 0.0
    %3414 = vmatpush2.msra.mxu0 0.0
    %3415 = vmatprep.subr.mxu0 0.0
    %3416 = vmatpush2.msra.mxu0 0.0
    %3417 = vmatprep.subr.mxu0 0.0
    %3418 = vmatpush2.msra.mxu0 0.0
    %3419 = vmatprep.subr.mxu0 0.0
    %3420 = vmatpush2.msra.mxu0 0.0
    %3421 = vmatprep.subr.mxu0 0.0
    %3422 = vmatpush2.msra.mxu0 0.0
    %3423 = vmatprep.subr.mxu0 0.0
    %3424 = vmatpush2.msra.mxu0 0.0
    %3425 = vmatprep.subr.mxu0 0.0
    %3426 = vmatpush2.msra.mxu0 0.0
    %3427 = vmatprep.subr.mxu0 0.0
    %3428 = vmatpush2.msra.mxu0 0.0
    %3429 = vmatprep.subr.mxu0 0.0
    %3430 = vmatpush2.msra.mxu0 0.0
    %3431 = vmatprep.mubr.f32.mxu0 0.0
    %3432 = vmatmul.mubr.f32.gmra.mxu0 %v3337
    %v3433 = vpop.f32.mrf.mxu0
    %v3434 = vadd.f32 %v3330, %v3433
    %v3435 = vpop.f32.mrf.mxu0
    %v3436 = vadd.f32 %v3334, %v3435
    %3437 = vmatprep.mubr.f32.mxu0 0.0
    %3438 = vmatmul.mubr.f32.gmra.mxu0 %v3340
    %v3439 = vpop.f32.mrf.mxu0
    %v3440 = vadd.f32 %v3330, %v3439
    %v3441 = vpop.f32.mrf.mxu0
    %v3442 = vadd.f32 %v3334, %v3441
    %3443 = vmatprep.mubr.f32.mxu0 0.0
    %3444 = vmatmul.mubr.f32.gmra.mxu0 %v3343
    %v3445 = vpop.f32.mrf.mxu0
    %v3446 = vadd.f32 %v3330, %v3445
    %v3447 = vpop.f32.mrf.mxu0
    %v3448 = vadd.f32 %v3334, %v3447
    %3449 = vmatprep.mubr.f32.mxu0 0.0
    %3450 = vmatmul.mubr.f32.gmra.mxu0 %v3346
    %v3451 = vpop.f32.mrf.mxu0
    %v3452 = vadd.f32 %v3330, %v3451
    %v3453 = vpop.f32.mrf.mxu0
    %v3454 = vadd.f32 %v3334, %v3453
    %3455 = vmatprep.mubr.f32.mxu0 0.0
    %3456 = vmatmul.mubr.f32.gmra.mxu0 %v3349
    %v3457 = vpop.f32.mrf.mxu0
    %v3458 = vadd.f32 %v3330, %v3457
    %v3459 = vpop.f32.mrf.mxu0
    %v3460 = vadd.f32 %v3334, %v3459
    %3461 = vmatprep.mubr.f32.mxu0 0.0
    %3462 = vmatmul.mubr.f32.gmra.mxu0 %v3352
    %v3463 = vpop.f32.mrf.mxu0
    %v3464 = vadd.f32 %v3330, %v3463
    %v3465 = vpop.f32.mrf.mxu0
    %v3466 = vadd.f32 %v3334, %v3465
    %3467 = vmatprep.mubr.f32.mxu0 0.0
    %3468 = vmatmul.mubr.f32.gmra.mxu0 %v3355
    %v3469 = vpop.f32.mrf.mxu0
    %v3470 = vadd.f32 %v3330, %v3469
    %v3471 = vpop.f32.mrf.mxu0
    %v3472 = vadd.f32 %v3334, %v3471
    %3473 = vmatprep.mubr.f32.mxu0 0.0
    %3474 = vmatmul.mubr.f32.gmra.mxu0 %v3358
    %v3475 = vpop.f32.mrf.mxu0
    %v3476 = vadd.f32 %v3330, %v3475
    %v3477 = vpop.f32.mrf.mxu0
    %v3478 = vadd.f32 %v3334, %v3477
    %3479 = vdwg.mxu0
    %v3480 = vmax.f32 %v3434, 0.0
    %v3481 = vmax.f32 %v3436, 0.0
    %v3482 = vmax.f32 %v3440, 0.0
    %v3483 = vmax.f32 %v3442, 0.0
    %v3484 = vmax.f32 %v3446, 0.0
    %v3485 = vmax.f32 %v3448, 0.0
    %v3486 = vmax.f32 %v3452, 0.0
    %v3487 = vmax.f32 %v3454, 0.0
    %v3488 = vmax.f32 %v3458, 0.0
    %v3489 = vmax.f32 %v3460, 0.0
    %v3490 = vmax.f32 %v3464, 0.0
    %v3491 = vmax.f32 %v3466, 0.0
    %v3492 = vmax.f32 %v3470, 0.0
    %v3493 = vmax.f32 %v3472, 0.0
    %v3494 = vmax.f32 %v3476, 0.0
    %v3495 = vmax.f32 %v3478, 0.0
    %vm3496 = vcmask 113664
    %v3497 = vsel %vm3496, %v847, 0.0
    %v3498 = vsel %vm3496, %v848, 0.0
    %v3499 = vsel %vm3496, %v849, 0.0
    %v3500 = vsel %vm3496, %v850, 0.0
    %vm3501 = vcmask 228352
    %v3502 = vsel %vm3501, %v3497, 0.0
    %v3503 = vsel %vm3501, %v3498, 0.0
    %v3504 = vsel %vm3501, %v3499, 0.0
    %v3505 = vsel %vm3501, %v3500, 0.0
    %vm3506 = vcmask 343040
    %v3507 = vsel %vm3506, %v3502, 0.0
    %v3508 = vsel %vm3506, %v3503, 0.0
    %v3509 = vsel %vm3506, %v3504, 0.0
    %v3510 = vsel %vm3506, %v3505, 0.0
    %vm3511 = vcmask 457728
    %v3512 = vsel %vm3511, %v3507, 0.0
    %v3513 = vsel %vm3511, %v3508, 0.0
    %v3514 = vsel %vm3511, %v3509, 0.0
    %v3515 = vsel %vm3511, %v3510, 0.0
    %vm3516 = vcmask 572416
    %v3517 = vsel %vm3516, %v3512, 0.0
    %v3518 = vsel %vm3516, %v3513, 0.0
    %v3519 = vsel %vm3516, %v3514, 0.0
    %v3520 = vsel %vm3516, %v3515, 0.0
    %3521 = vrot.lane.b32.xlu0 %v847, 14
    %v3522 = vpop.permute.xlu0 %3521
    %3523 = vrot.lane.b32.xlu0 %v848, 14
    %v3524 = vpop.permute.xlu0 %3523
    %3525 = vrot.lane.b32.xlu0 %v849, 14
    %v3526 = vpop.permute.xlu0 %3525
    %3527 = vrot.lane.b32.xlu0 %v850, 14
    %v3528 = vpop.permute.xlu0 %3527
    %v3533 = vsel %vm3496, 0.0, %v3522
    %v3534 = vsel %vm3496, 0.0, %v3524
    %v3535 = vsel %vm3496, 0.0, %v3526
    %v3536 = vsel %vm3496, 0.0, %v3528
    %v3537 = vsel %vm3501, %v3533, 0.0
    %v3538 = vsel %vm3501, %v3534, 0.0
    %v3539 = vsel %vm3501, %v3535, 0.0
    %v3540 = vsel %vm3501, %v3536, 0.0
    %v3541 = vsel %vm3506, %v3537, 0.0
    %v3542 = vsel %vm3506, %v3538, 0.0
    %v3543 = vsel %vm3506, %v3539, 0.0
    %v3544 = vsel %vm3506, %v3540, 0.0
    %v3545 = vsel %vm3511, %v3541, 0.0
    %v3546 = vsel %vm3511, %v3542, 0.0
    %v3547 = vsel %vm3511, %v3543, 0.0
    %v3548 = vsel %vm3511, %v3544, 0.0
    %v3549 = vsel %vm3516, %v3545, 0.0
    %v3550 = vsel %vm3516, %v3546, 0.0
    %v3551 = vsel %vm3516, %v3547, 0.0
    %v3552 = vsel %vm3516, %v3548, 0.0
    %3553 = vrot.lane.b32.xlu0 %v847, 28
    %v3554 = vpop.permute.xlu0 %3553
    %3555 = vrot.lane.b32.xlu0 %v848, 28
    %v3556 = vpop.permute.xlu0 %3555
    %3557 = vrot.lane.b32.xlu0 %v849, 28
    %v3558 = vpop.permute.xlu0 %3557
    %3559 = vrot.lane.b32.xlu0 %v850, 28
    %v3560 = vpop.permute.xlu0 %3559
    %v3565 = vsel %vm3501, 0.0, %v3554
    %v3566 = vsel %vm3501, 0.0, %v3556
    %v3567 = vsel %vm3501, 0.0, %v3558
    %v3568 = vsel %vm3501, 0.0, %v3560
    %v3569 = vsel %vm3506, %v3565, 0.0
    %v3570 = vsel %vm3506, %v3566, 0.0
    %v3571 = vsel %vm3506, %v3567, 0.0
    %v3572 = vsel %vm3506, %v3568, 0.0
    %v3573 = vsel %vm3511, %v3569, 0.0
    %v3574 = vsel %vm3511, %v3570, 0.0
    %v3575 = vsel %vm3511, %v3571, 0.0
    %v3576 = vsel %vm3511, %v3572, 0.0
    %v3577 = vsel %vm3516, %v3573, 0.0
    %v3578 = vsel %vm3516, %v3574, 0.0
    %v3579 = vsel %vm3516, %v3575, 0.0
    %v3580 = vsel %vm3516, %v3576, 0.0
    %3581 = vrot.lane.b32.xlu0 %v847, 42
    %v3582 = vpop.permute.xlu0 %3581
    %3583 = vrot.lane.b32.xlu0 %v848, 42
    %v3584 = vpop.permute.xlu0 %3583
    %3585 = vrot.lane.b32.xlu0 %v849, 42
    %v3586 = vpop.permute.xlu0 %3585
    %3587 = vrot.lane.b32.xlu0 %v850, 42
    %v3588 = vpop.permute.xlu0 %3587
    %v3593 = vsel %vm3506, 0.0, %v3582
    %v3594 = vsel %vm3506, 0.0, %v3584
    %v3595 = vsel %vm3506, 0.0, %v3586
    %v3596 = vsel %vm3506, 0.0, %v3588
    %v3597 = vsel %vm3511, %v3593, 0.0
    %v3598 = vsel %vm3511, %v3594, 0.0
    %v3599 = vsel %vm3511, %v3595, 0.0
    %v3600 = vsel %vm3511, %v3596, 0.0
    %v3601 = vsel %vm3516, %v3597, 0.0
    %v3602 = vsel %vm3516, %v3598, 0.0
    %v3603 = vsel %vm3516, %v3599, 0.0
    %v3604 = vsel %vm3516, %v3600, 0.0
    %3605 = vrot.lane.b32.xlu0 %v847, 56
    %v3606 = vpop.permute.xlu0 %3605
    %3607 = vrot.lane.b32.xlu0 %v848, 56
    %v3608 = vpop.permute.xlu0 %3607
    %3609 = vrot.lane.b32.xlu0 %v849, 56
    %v3610 = vpop.permute.xlu0 %3609
    %3611 = vrot.lane.b32.xlu0 %v850, 56
    %v3612 = vpop.permute.xlu0 %3611
    %v3617 = vsel %vm3511, 0.0, %v3606
    %v3618 = vsel %vm3511, 0.0, %v3608
    %v3619 = vsel %vm3511, 0.0, %v3610
    %v3620 = vsel %vm3511, 0.0, %v3612
    %v3621 = vsel %vm3516, %v3617, 0.0
    %v3622 = vsel %vm3516, %v3618, 0.0
    %v3623 = vsel %vm3516, %v3619, 0.0
    %v3624 = vsel %vm3516, %v3620, 0.0
    %3625 = vrot.lane.b32.xlu0 %v847, 70
    %v3626 = vpop.permute.xlu0 %3625
    %3627 = vrot.lane.b32.xlu0 %v848, 70
    %v3628 = vpop.permute.xlu0 %3627
    %3629 = vrot.lane.b32.xlu0 %v849, 70
    %v3630 = vpop.permute.xlu0 %3629
    %3631 = vrot.lane.b32.xlu0 %v850, 70
    %v3632 = vpop.permute.xlu0 %3631
    %v3637 = vsel %vm3516, 0.0, %v3626
    %v3638 = vsel %vm3516, 0.0, %v3628
    %v3639 = vsel %vm3516, 0.0, %v3630
    %v3640 = vsel %vm3516, 0.0, %v3632
    %v3645 = vrot.slane %v3549, 2
    %v3646 = vrot.slane %v3550, 2
    %v3647 = vsel %vm3360, %v3645, %v3646
    %v3648 = vrot.slane %v3551, 2
    %v3649 = vsel %vm3360, %v3646, %v3648
    %v3650 = vrot.slane %v3552, 2
    %v3651 = vsel %vm3360, %v3648, %v3650
    %v3661 = vrot.slane %v3577, 4
    %v3662 = vrot.slane %v3578, 4
    %v3663 = vsel %vm2008, %v3661, %v3662
    %v3664 = vrot.slane %v3579, 4
    %v3665 = vsel %vm2008, %v3662, %v3664
    %v3666 = vrot.slane %v3580, 4
    %v3667 = vsel %vm2008, %v3664, %v3666
    %v3677 = vrot.slane %v3601, 6
    %v3678 = vrot.slane %v3602, 6
    %v3679 = vsel %vm1012, %v3677, %v3678
    %v3680 = vrot.slane %v3603, 6
    %v3681 = vsel %vm1012, %v3678, %v3680
    %v3682 = vrot.slane %v3604, 6
    %v3683 = vsel %vm1012, %v3680, %v3682
    %v3692 = vrot.slane %v3637, 2
    %v3693 = vrot.slane %v3638, 2
    %v3694 = vsel %vm3360, %v3692, %v3693
    %v3695 = vrot.slane %v3639, 2
    %v3696 = vsel %vm3360, %v3693, %v3695
    %v3697 = vrot.slane %v3640, 2
    %v3698 = vsel %vm3360, %v3695, %v3697
    %v3703 = vsel %vm3360, %v3520, %v3645
    %v3704 = vsel %vm2008, %v3650, %v3661
    %v3705 = vsel %vm1012, %v3666, %v3677
    %v3706 = vsel %vm3360, %v3624, %v3692
    %vm3707 = vcmask 424960
    %v3709 = vsel %vm3707, %v3481, 0
    %v3712 = vsel %vm3707, %v3483, 0
    %v3715 = vsel %vm3707, %v3485, 0
    %v3718 = vsel %vm3707, %v3487, 0
    %v3721 = vsel %vm3707, %v3489, 0
    %v3724 = vsel %vm3707, %v3491, 0
    %v3727 = vsel %vm3707, %v3493, 0
    %v3730 = vsel %vm3707, %v3495, 0
    %v3732 = vsel %vm2008, %v3697, 0
    %3734 = vmatprep.subr.mxu0 0.0
    %3735 = vmatpush1.msra.mxu0 %v3621
    %3736 = vmatprep.subr.mxu0 0.0
    %3737 = vmatpush1.msra.mxu0 %v3683
    %3738 = vmatprep.subr.mxu0 0.0
    %3739 = vmatpush1.msra.mxu0 %v3681
    %3740 = vmatprep.subr.mxu0 0.0
    %3741 = vmatpush1.msra.mxu0 %v3679
    %3742 = vmatprep.subr.mxu0 0.0
    %3743 = vmatpush1.msra.mxu0 %v3705
    %3744 = vmatprep.subr.mxu0 0.0
    %3745 = vmatpush1.msra.mxu0 %v3667
    %3746 = vmatprep.subr.mxu0 0.0
    %3747 = vmatpush1.msra.mxu0 %v3665
    %3748 = vmatprep.subr.mxu0 0.0
    %3749 = vmatpush1.msra.mxu0 %v3663
    %3750 = vmatprep.subr.mxu0 0.0
    %3751 = vmatpush1.msra.mxu0 %v3704
    %3752 = vmatprep.subr.mxu0 0.0
    %3753 = vmatpush1.msra.mxu0 %v3651
    %3754 = vmatprep.subr.mxu0 0.0
    %3755 = vmatpush1.msra.mxu0 %v3649
    %3756 = vmatprep.subr.mxu0 0.0
    %3757 = vmatpush1.msra.mxu0 %v3647
    %3758 = vmatprep.subr.mxu0 0.0
    %3759 = vmatpush1.msra.mxu0 %v3703
    %3760 = vmatprep.subr.mxu0 0.0
    %3761 = vmatpush1.msra.mxu0 %v3519
    %3762 = vmatprep.subr.mxu0 0.0
    %3763 = vmatpush1.msra.mxu0 %v3518
    %3764 = vmatprep.subr.mxu0 0.0
    %3765 = vmatpush1.msra.mxu0 %v3517
    %3766 = vmatprep.subr.mxu0 0.0
    %3767 = vmatpush2.msra.mxu0 0.0
    %3768 = vmatprep.subr.mxu0 0.0
    %3769 = vmatpush2.msra.mxu0 0.0
    %3770 = vmatprep.subr.mxu0 0.0
    %3771 = vmatpush2.msra.mxu0 0.0
    %3772 = vmatprep.subr.mxu0 0.0
    %3773 = vmatpush2.msra.mxu0 0.0
    %3774 = vmatprep.subr.mxu0 0.0
    %3775 = vmatpush2.msra.mxu0 0.0
    %3776 = vmatprep.subr.mxu0 0.0
    %3777 = vmatpush2.msra.mxu0 0.0
    %3778 = vmatprep.subr.mxu0 0.0
    %3779 = vmatpush2.msra.mxu0 0.0
    %3780 = vmatprep.subr.mxu0 0.0
    %3781 = vmatpush2.msra.mxu0 0.0
    %3782 = vmatprep.subr.mxu0 0.0
    %3783 = vmatpush2.msra.mxu0 0.0
    %3784 = vmatprep.subr.mxu0 0.0
    %3785 = vmatpush2.msra.mxu0 %v3732
    %3786 = vmatprep.subr.mxu0 0.0
    %3787 = vmatpush2.msra.mxu0 %v3698
    %3788 = vmatprep.subr.mxu0 0.0
    %3789 = vmatpush2.msra.mxu0 %v3696
    %3790 = vmatprep.subr.mxu0 0.0
    %3791 = vmatpush2.msra.mxu0 %v3694
    %3792 = vmatprep.subr.mxu0 0.0
    %3793 = vmatpush2.msra.mxu0 %v3706
    %3794 = vmatprep.subr.mxu0 0.0
    %3795 = vmatpush2.msra.mxu0 %v3623
    %3796 = vmatprep.subr.mxu0 0.0
    %3797 = vmatpush2.msra.mxu0 %v3622
    %3798 = vmatprep.mubr.f32.mxu0 %v3709
    %3799 = vmatmul.mubr.f32.gmra.mxu0 %v3480
    %v3800 = vpop.f32.mrf.mxu0
    %v3801 = vadd.f32 0.0, %v3800
    %v3802 = vpop.f32.mrf.mxu0
    %3803 = vmatprep.mubr.f32.mxu0 %v3712
    %3804 = vmatmul.mubr.f32.gmra.mxu0 %v3482
    %v3805 = vpop.f32.mrf.mxu0
    %v3806 = vadd.f32 0.0, %v3805
    %v3807 = vpop.f32.mrf.mxu0
    %3808 = vmatprep.mubr.f32.mxu0 %v3715
    %3809 = vmatmul.mubr.f32.gmra.mxu0 %v3484
    %v3810 = vpop.f32.mrf.mxu0
    %v3811 = vadd.f32 0.0, %v3810
    %v3812 = vpop.f32.mrf.mxu0
    %3813 = vmatprep.mubr.f32.mxu0 %v3718
    %3814 = vmatmul.mubr.f32.gmra.mxu0 %v3486
    %v3815 = vpop.f32.mrf.mxu0
    %v3816 = vadd.f32 0.0, %v3815
    %v3817 = vpop.f32.mrf.mxu0
    %3818 = vmatprep.mubr.f32.mxu0 %v3721
    %3819 = vmatmul.mubr.f32.gmra.mxu0 %v3488
    %v3820 = vpop.f32.mrf.mxu0
    %v3821 = vadd.f32 0.0, %v3820
    %v3822 = vpop.f32.mrf.mxu0
    %3823 = vmatprep.mubr.f32.mxu0 %v3724
    %3824 = vmatmul.mubr.f32.gmra.mxu0 %v3490
    %v3825 = vpop.f32.mrf.mxu0
    %v3826 = vadd.f32 0.0, %v3825
    %v3827 = vpop.f32.mrf.mxu0
    %3828 = vmatprep.mubr.f32.mxu0 %v3727
    %3829 = vmatmul.mubr.f32.gmra.mxu0 %v3492
    %v3830 = vpop.f32.mrf.mxu0
    %v3831 = vadd.f32 0.0, %v3830
    %v3832 = vpop.f32.mrf.mxu0
    %3833 = vmatprep.mubr.f32.mxu0 %v3730
    %3834 = vmatmul.mubr.f32.gmra.mxu0 %v3494
    %v3835 = vpop.f32.mrf.mxu0
    %v3836 = vadd.f32 0.0, %v3835
    %v3837 = vpop.f32.mrf.mxu0
    %3838 = vdwg.mxu0
    %v3839 = vsel %vm3496, %v1192, 0.0
    %v3840 = vsel %vm3496, %v1193, 0.0
    %v3841 = vsel %vm3496, %v1194, 0.0
    %v3842 = vsel %vm3496, %v1195, 0.0
    %v3843 = vsel %vm3501, %v3839, 0.0
    %v3844 = vsel %vm3501, %v3840, 0.0
    %v3845 = vsel %vm3501, %v3841, 0.0
    %v3846 = vsel %vm3501, %v3842, 0.0
    %v3847 = vsel %vm3506, %v3843, 0.0
    %v3848 = vsel %vm3506, %v3844, 0.0
    %v3849 = vsel %vm3506, %v3845, 0.0
    %v3850 = vsel %vm3506, %v3846, 0.0
    %v3851 = vsel %vm3511, %v3847, 0.0
    %v3852 = vsel %vm3511, %v3848, 0.0
    %v3853 = vsel %vm3511, %v3849, 0.0
    %v3854 = vsel %vm3511, %v3850, 0.0
    %v3855 = vsel %vm3516, %v3851, 0.0
    %v3856 = vsel %vm3516, %v3852, 0.0
    %v3857 = vsel %vm3516, %v3853, 0.0
    %v3858 = vsel %vm3516, %v3854, 0.0
    %3859 = vrot.lane.b32.xlu0 %v1192, 14
    %v3860 = vpop.permute.xlu0 %3859
    %3861 = vrot.lane.b32.xlu0 %v1193, 14
    %v3862 = vpop.permute.xlu0 %3861
    %3863 = vrot.lane.b32.xlu0 %v1194, 14
    %v3864 = vpop.permute.xlu0 %3863
    %3865 = vrot.lane.b32.xlu0 %v1195, 14
    %v3866 = vpop.permute.xlu0 %3865
    %v3871 = vsel %vm3496, 0.0, %v3860
    %v3872 = vsel %vm3496, 0.0, %v3862
    %v3873 = vsel %vm3496, 0.0, %v3864
    %v3874 = vsel %vm3496, 0.0, %v3866
    %v3875 = vsel %vm3501, %v3871, 0.0
    %v3876 = vsel %vm3501, %v3872, 0.0
    %v3877 = vsel %vm3501, %v3873, 0.0
    %v3878 = vsel %vm3501, %v3874, 0.0
    %v3879 = vsel %vm3506, %v3875, 0.0
    %v3880 = vsel %vm3506, %v3876, 0.0
    %v3881 = vsel %vm3506, %v3877, 0.0
    %v3882 = vsel %vm3506, %v3878, 0.0
    %v3883 = vsel %vm3511, %v3879, 0.0
    %v3884 = vsel %vm3511, %v3880, 0.0
    %v3885 = vsel %vm3511, %v3881, 0.0
    %v3886 = vsel %vm3511, %v3882, 0.0
    %v3887 = vsel %vm3516, %v3883, 0.0
    %v3888 = vsel %vm3516, %v3884, 0.0
    %v3889 = vsel %vm3516, %v3885, 0.0
    %v3890 = vsel %vm3516, %v3886, 0.0
    %3891 = vrot.lane.b32.xlu0 %v1192, 28
    %v3892 = vpop.permute.xlu0 %3891
    %3893 = vrot.lane.b32.xlu0 %v1193, 28
    %v3894 = vpop.permute.xlu0 %3893
    %3895 = vrot.lane.b32.xlu0 %v1194, 28
    %v3896 = vpop.permute.xlu0 %3895
    %3897 = vrot.lane.b32.xlu0 %v1195, 28
    %v3898 = vpop.permute.xlu0 %3897
    %v3903 = vsel %vm3501, 0.0, %v3892
    %v3904 = vsel %vm3501, 0.0, %v3894
    %v3905 = vsel %vm3501, 0.0, %v3896
    %v3906 = vsel %vm3501, 0.0, %v3898
    %v3907 = vsel %vm3506, %v3903, 0.0
    %v3908 = vsel %vm3506, %v3904, 0.0
    %v3909 = vsel %vm3506, %v3905, 0.0
    %v3910 = vsel %vm3506, %v3906, 0.0
    %v3911 = vsel %vm3511, %v3907, 0.0
    %v3912 = vsel %vm3511, %v3908, 0.0
    %v3913 = vsel %vm3511, %v3909, 0.0
    %v3914 = vsel %vm3511, %v3910, 0.0
    %v3915 = vsel %vm3516, %v3911, 0.0
    %v3916 = vsel %vm3516, %v3912, 0.0
    %v3917 = vsel %vm3516, %v3913, 0.0
    %v3918 = vsel %vm3516, %v3914, 0.0
    %3919 = vrot.lane.b32.xlu0 %v1192, 42
    %v3920 = vpop.permute.xlu0 %3919
    %3921 = vrot.lane.b32.xlu0 %v1193, 42
    %v3922 = vpop.permute.xlu0 %3921
    %3923 = vrot.lane.b32.xlu0 %v1194, 42
    %v3924 = vpop.permute.xlu0 %3923
    %3925 = vrot.lane.b32.xlu0 %v1195, 42
    %v3926 = vpop.permute.xlu0 %3925
    %v3931 = vsel %vm3506, 0.0, %v3920
    %v3932 = vsel %vm3506, 0.0, %v3922
    %v3933 = vsel %vm3506, 0.0, %v3924
    %v3934 = vsel %vm3506, 0.0, %v3926
    %v3935 = vsel %vm3511, %v3931, 0.0
    %v3936 = vsel %vm3511, %v3932, 0.0
    %v3937 = vsel %vm3511, %v3933, 0.0
    %v3938 = vsel %vm3511, %v3934, 0.0
    %v3939 = vsel %vm3516, %v3935, 0.0
    %v3940 = vsel %vm3516, %v3936, 0.0
    %v3941 = vsel %vm3516, %v3937, 0.0
    %v3942 = vsel %vm3516, %v3938, 0.0
    %3943 = vrot.lane.b32.xlu0 %v1192, 56
    %v3944 = vpop.permute.xlu0 %3943
    %3945 = vrot.lane.b32.xlu0 %v1193, 56
    %v3946 = vpop.permute.xlu0 %3945
    %3947 = vrot.lane.b32.xlu0 %v1194, 56
    %v3948 = vpop.permute.xlu0 %3947
    %3949 = vrot.lane.b32.xlu0 %v1195, 56
    %v3950 = vpop.permute.xlu0 %3949
    %v3955 = vsel %vm3511, 0.0, %v3944
    %v3956 = vsel %vm3511, 0.0, %v3946
    %v3957 = vsel %vm3511, 0.0, %v3948
    %v3958 = vsel %vm3511, 0.0, %v3950
    %v3959 = vsel %vm3516, %v3955, 0.0
    %v3960 = vsel %vm3516, %v3956, 0.0
    %v3961 = vsel %vm3516, %v3957, 0.0
    %v3962 = vsel %vm3516, %v3958, 0.0
    %3963 = vrot.lane.b32.xlu0 %v1192, 70
    %v3964 = vpop.permute.xlu0 %3963
    %3965 = vrot.lane.b32.xlu0 %v1193, 70
    %v3966 = vpop.permute.xlu0 %3965
    %3967 = vrot.lane.b32.xlu0 %v1194, 70
    %v3968 = vpop.permute.xlu0 %3967
    %3969 = vrot.lane.b32.xlu0 %v1195, 70
    %v3970 = vpop.permute.xlu0 %3969
    %v3975 = vsel %vm3516, 0.0, %v3964
    %v3976 = vsel %vm3516, 0.0, %v3966
    %v3977 = vsel %vm3516, 0.0, %v3968
    %v3978 = vsel %vm3516, 0.0, %v3970
    %v3983 = vrot.slane %v3887, 2
    %v3984 = vrot.slane %v3888, 2
    %v3985 = vsel %vm3360, %v3983, %v3984
    %v3986 = vrot.slane %v3889, 2
    %v3987 = vsel %vm3360, %v3984, %v3986
    %v3988 = vrot.slane %v3890, 2
    %v3989 = vsel %vm3360, %v3986, %v3988
    %v3999 = vrot.slane %v3915, 4
    %v4000 = vrot.slane %v3916, 4
    %v4001 = vsel %vm2008, %v3999, %v4000
    %v4002 = vrot.slane %v3917, 4
    %v4003 = vsel %vm2008, %v4000, %v4002
    %v4004 = vrot.slane %v3918, 4
    %v4005 = vsel %vm2008, %v4002, %v4004
    %v4015 = vrot.slane %v3939, 6
    %v4016 = vrot.slane %v3940, 6
    %v4017 = vsel %vm1012, %v4015, %v4016
    %v4018 = vrot.slane %v3941, 6
    %v4019 = vsel %vm1012, %v4016, %v4018
    %v4020 = vrot.slane %v3942, 6
    %v4021 = vsel %vm1012, %v4018, %v4020
    %v4030 = vrot.slane %v3975, 2
    %v4031 = vrot.slane %v3976, 2
    %v4032 = vsel %vm3360, %v4030, %v4031
    %v4033 = vrot.slane %v3977, 2
    %v4034 = vsel %vm3360, %v4031, %v4033
    %v4035 = vrot.slane %v3978, 2
    %v4036 = vsel %vm3360, %v4033, %v4035
    %v4041 = vsel %vm3360, %v3858, %v3983
    %v4042 = vsel %vm2008, %v3988, %v3999
    %v4043 = vsel %vm1012, %v4004, %v4015
    %v4044 = vsel %vm3360, %v3962, %v4030
    %v4045 = vsel %vm2008, %v4035, 0
    %4047 = vmatprep.subr.mxu0 0.0
    %4048 = vmatpush1.msra.mxu0 %v3959
    %4049 = vmatprep.subr.mxu0 0.0
    %4050 = vmatpush1.msra.mxu0 %v4021
    %4051 = vmatprep.subr.mxu0 0.0
    %4052 = vmatpush1.msra.mxu0 %v4019
    %4053 = vmatprep.subr.mxu0 0.0
    %4054 = vmatpush1.msra.mxu0 %v4017
    %4055 = vmatprep.subr.mxu0 0.0
    %4056 = vmatpush1.msra.mxu0 %v4043
    %4057 = vmatprep.subr.mxu0 0.0
    %4058 = vmatpush1.msra.mxu0 %v4005
    %4059 = vmatprep.subr.mxu0 0.0
    %4060 = vmatpush1.msra.mxu0 %v4003
    %4061 = vmatprep.subr.mxu0 0.0
    %4062 = vmatpush1.msra.mxu0 %v4001
    %4063 = vmatprep.subr.mxu0 0.0
    %4064 = vmatpush1.msra.mxu0 %v4042
    %4065 = vmatprep.subr.mxu0 0.0
    %4066 = vmatpush1.msra.mxu0 %v3989
    %4067 = vmatprep.subr.mxu0 0.0
    %4068 = vmatpush1.msra.mxu0 %v3987
    %4069 = vmatprep.subr.mxu0 0.0
    %4070 = vmatpush1.msra.mxu0 %v3985
    %4071 = vmatprep.subr.mxu0 0.0
    %4072 = vmatpush1.msra.mxu0 %v4041
    %4073 = vmatprep.subr.mxu0 0.0
    %4074 = vmatpush1.msra.mxu0 %v3857
    %4075 = vmatprep.subr.mxu0 0.0
    %4076 = vmatpush1.msra.mxu0 %v3856
    %4077 = vmatprep.subr.mxu0 0.0
    %4078 = vmatpush1.msra.mxu0 %v3855
    %4079 = vmatprep.subr.mxu0 0.0
    %4080 = vmatpush2.msra.mxu0 0.0
    %4081 = vmatprep.subr.mxu0 0.0
    %4082 = vmatpush2.msra.mxu0 0.0
    %4083 = vmatprep.subr.mxu0 0.0
    %4084 = vmatpush2.msra.mxu0 0.0
    %4085 = vmatprep.subr.mxu0 0.0
    %4086 = vmatpush2.msra.mxu0 0.0
    %4087 = vmatprep.subr.mxu0 0.0
    %4088 = vmatpush2.msra.mxu0 0.0
    %4089 = vmatprep.subr.mxu0 0.0
    %4090 = vmatpush2.msra.mxu0 0.0
    %4091 = vmatprep.subr.mxu0 0.0
    %4092 = vmatpush2.msra.mxu0 0.0
    %4093 = vmatprep.subr.mxu0 0.0
    %4094 = vmatpush2.msra.mxu0 0.0
    %4095 = vmatprep.subr.mxu0 0.0
    %4096 = vmatpush2.msra.mxu0 0.0
    %4097 = vmatprep.subr.mxu0 0.0
    %4098 = vmatpush2.msra.mxu0 %v4045
    %4099 = vmatprep.subr.mxu0 0.0
    %4100 = vmatpush2.msra.mxu0 %v4036
    %4101 = vmatprep.subr.mxu0 0.0
    %4102 = vmatpush2.msra.mxu0 %v4034
    %4103 = vmatprep.subr.mxu0 0.0
    %4104 = vmatpush2.msra.mxu0 %v4032
    %4105 = vmatprep.subr.mxu0 0.0
    %4106 = vmatpush2.msra.mxu0 %v4044
    %4107 = vmatprep.subr.mxu0 0.0
    %4108 = vmatpush2.msra.mxu0 %v3961
    %4109 = vmatprep.subr.mxu0 0.0
    %4110 = vmatpush2.msra.mxu0 %v3960
    %4111 = vmatprep.mubr.f32.mxu0 %v3709
    %4112 = vmatmul.mubr.f32.gmra.mxu0 %v3480
    %v4113 = vpop.f32.mrf.mxu0
    %v4114 = vadd.f32 0.0, %v4113
    %v4115 = vpop.f32.mrf.mxu0
    %4116 = vmatprep.mubr.f32.mxu0 %v3712
    %4117 = vmatmul.mubr.f32.gmra.mxu0 %v3482
    %v4118 = vpop.f32.mrf.mxu0
    %v4119 = vadd.f32 0.0, %v4118
    %v4120 = vpop.f32.mrf.mxu0
    %4121 = vmatprep.mubr.f32.mxu0 %v3715
    %4122 = vmatmul.mubr.f32.gmra.mxu0 %v3484
    %v4123 = vpop.f32.mrf.mxu0
    %v4124 = vadd.f32 0.0, %v4123
    %v4125 = vpop.f32.mrf.mxu0
    %4126 = vmatprep.mubr.f32.mxu0 %v3718
    %4127 = vmatmul.mubr.f32.gmra.mxu0 %v3486
    %v4128 = vpop.f32.mrf.mxu0
    %v4129 = vadd.f32 0.0, %v4128
    %v4130 = vpop.f32.mrf.mxu0
    %4131 = vmatprep.mubr.f32.mxu0 %v3721
    %4132 = vmatmul.mubr.f32.gmra.mxu0 %v3488
    %v4133 = vpop.f32.mrf.mxu0
    %v4134 = vadd.f32 0.0, %v4133
    %v4135 = vpop.f32.mrf.mxu0
    %4136 = vmatprep.mubr.f32.mxu0 %v3724
    %4137 = vmatmul.mubr.f32.gmra.mxu0 %v3490
    %v4138 = vpop.f32.mrf.mxu0
    %v4139 = vadd.f32 0.0, %v4138
    %v4140 = vpop.f32.mrf.mxu0
    %4141 = vmatprep.mubr.f32.mxu0 %v3727
    %4142 = vmatmul.mubr.f32.gmra.mxu0 %v3492
    %v4143 = vpop.f32.mrf.mxu0
    %v4144 = vadd.f32 0.0, %v4143
    %v4145 = vpop.f32.mrf.mxu0
    %4146 = vmatprep.mubr.f32.mxu0 %v3730
    %4147 = vmatmul.mubr.f32.gmra.mxu0 %v3494
    %v4148 = vpop.f32.mrf.mxu0
    %v4149 = vadd.f32 0.0, %v4148
    %v4150 = vpop.f32.mrf.mxu0
    %4151 = vdwg.mxu0
    %v4152 = vmax.f32 %v3801, %v4114
    %v4153 = vmax.f32 %v3806, %v4119
    %v4154 = vmax.f32 %v3811, %v4124
    %v4155 = vmax.f32 %v3816, %v4129
    %v4156 = vmax.f32 %v3821, %v4134
    %v4157 = vmax.f32 %v3826, %v4139
    %v4158 = vmax.f32 %v3831, %v4144
    %v4159 = vmax.f32 %v3836, %v4149
    %v4160 = vsel %vm3496, %v1515, 0.0
    %v4161 = vsel %vm3496, %v1516, 0.0
    %v4162 = vsel %vm3496, %v1517, 0.0
    %v4163 = vsel %vm3496, %v1518, 0.0
    %v4164 = vsel %vm3501, %v4160, 0.0
    %v4165 = vsel %vm3501, %v4161, 0.0
    %v4166 = vsel %vm3501, %v4162, 0.0
    %v4167 = vsel %vm3501, %v4163, 0.0
    %v4168 = vsel %vm3506, %v4164, 0.0
    %v4169 = vsel %vm3506, %v4165, 0.0
    %v4170 = vsel %vm3506, %v4166, 0.0
    %v4171 = vsel %vm3506, %v4167, 0.0
    %v4172 = vsel %vm3511, %v4168, 0.0
    %v4173 = vsel %vm3511, %v4169, 0.0
    %v4174 = vsel %vm3511, %v4170, 0.0
    %v4175 = vsel %vm3511, %v4171, 0.0
    %v4176 = vsel %vm3516, %v4172, 0.0
    %v4177 = vsel %vm3516, %v4173, 0.0
    %v4178 = vsel %vm3516, %v4174, 0.0
    %v4179 = vsel %vm3516, %v4175, 0.0
    %4180 = vrot.lane.b32.xlu0 %v1515, 14
    %v4181 = vpop.permute.xlu0 %4180
    %4182 = vrot.lane.b32.xlu0 %v1516, 14
    %v4183 = vpop.permute.xlu0 %4182
    %4184 = vrot.lane.b32.xlu0 %v1517, 14
    %v4185 = vpop.permute.xlu0 %4184
    %4186 = vrot.lane.b32.xlu0 %v1518, 14
    %v4187 = vpop.permute.xlu0 %4186
    %v4192 = vsel %vm3496, 0.0, %v4181
    %v4193 = vsel %vm3496, 0.0, %v4183
    %v4194 = vsel %vm3496, 0.0, %v4185
    %v4195 = vsel %vm3496, 0.0, %v4187
    %v4196 = vsel %vm3501, %v4192, 0.0
    %v4197 = vsel %vm3501, %v4193, 0.0
    %v4198 = vsel %vm3501, %v4194, 0.0
    %v4199 = vsel %vm3501, %v4195, 0.0
    %v4200 = vsel %vm3506, %v4196, 0.0
    %v4201 = vsel %vm3506, %v4197, 0.0
    %v4202 = vsel %vm3506, %v4198, 0.0
    %v4203 = vsel %vm3506, %v4199, 0.0
    %v4204 = vsel %vm3511, %v4200, 0.0
    %v4205 = vsel %vm3511, %v4201, 0.0
    %v4206 = vsel %vm3511, %v4202, 0.0
    %v4207 = vsel %vm3511, %v4203, 0.0
    %v4208 = vsel %vm3516, %v4204, 0.0
    %v4209 = vsel %vm3516, %v4205, 0.0
    %v4210 = vsel %vm3516, %v4206, 0.0
    %v4211 = vsel %vm3516, %v4207, 0.0
    %4212 = vrot.lane.b32.xlu0 %v1515, 28
    %v4213 = vpop.permute.xlu0 %4212
    %4214 = vrot.lane.b32.xlu0 %v1516, 28
    %v4215 = vpop.permute.xlu0 %4214
    %4216 = vrot.lane.b32.xlu0 %v1517, 28
    %v4217 = vpop.permute.xlu0 %4216
    %4218 = vrot.lane.b32.xlu0 %v1518, 28
    %v4219 = vpop.permute.xlu0 %4218
    %v4224 = vsel %vm3501, 0.0, %v4213
    %v4225 = vsel %vm3501, 0.0, %v4215
    %v4226 = vsel %vm3501, 0.0, %v4217
    %v4227 = vsel %vm3501, 0.0, %v4219
    %v4228 = vsel %vm3506, %v4224, 0.0
    %v4229 = vsel %vm3506, %v4225, 0.0
    %v4230 = vsel %vm3506, %v4226, 0.0
    %v4231 = vsel %vm3506, %v4227, 0.0
    %v4232 = vsel %vm3511, %v4228, 0.0
    %v4233 = vsel %vm3511, %v4229, 0.0
    %v4234 = vsel %vm3511, %v4230, 0.0
    %v4235 = vsel %vm3511, %v4231, 0.0
    %v4236 = vsel %vm3516, %v4232, 0.0
    %v4237 = vsel %vm3516, %v4233, 0.0
    %v4238 = vsel %vm3516, %v4234, 0.0
    %v4239 = vsel %vm3516, %v4235, 0.0
    %4240 = vrot.lane.b32.xlu0 %v1515, 42
    %v4241 = vpop.permute.xlu0 %4240
    %4242 = vrot.lane.b32.xlu0 %v1516, 42
    %v4243 = vpop.permute.xlu0 %4242
    %4244 = vrot.lane.b32.xlu0 %v1517, 42
    %v4245 = vpop.permute.xlu0 %4244
    %4246 = vrot.lane.b32.xlu0 %v1518, 42
    %v4247 = vpop.permute.xlu0 %4246
    %v4252 = vsel %vm3506, 0.0, %v4241
    %v4253 = vsel %vm3506, 0.0, %v4243
    %v4254 = vsel %vm3506, 0.0, %v4245
    %v4255 = vsel %vm3506, 0.0, %v4247
    %v4256 = vsel %vm3511, %v4252, 0.0
    %v4257 = vsel %vm3511, %v4253, 0.0
    %v4258 = vsel %vm3511, %v4254, 0.0
    %v4259 = vsel %vm3511, %v4255, 0.0
    %v4260 = vsel %vm3516, %v4256, 0.0
    %v4261 = vsel %vm3516, %v4257, 0.0
    %v4262 = vsel %vm3516, %v4258, 0.0
    %v4263 = vsel %vm3516, %v4259, 0.0
    %4264 = vrot.lane.b32.xlu0 %v1515, 56
    %v4265 = vpop.permute.xlu0 %4264
    %4266 = vrot.lane.b32.xlu0 %v1516, 56
    %v4267 = vpop.permute.xlu0 %4266
    %4268 = vrot.lane.b32.xlu0 %v1517, 56
    %v4269 = vpop.permute.xlu0 %4268
    %4270 = vrot.lane.b32.xlu0 %v1518, 56
    %v4271 = vpop.permute.xlu0 %4270
    %v4276 = vsel %vm3511, 0.0, %v4265
    %v4277 = vsel %vm3511, 0.0, %v4267
    %v4278 = vsel %vm3511, 0.0, %v4269
    %v4279 = vsel %vm3511, 0.0, %v4271
    %v4280 = vsel %vm3516, %v4276, 0.0
    %v4281 = vsel %vm3516, %v4277, 0.0
    %v4282 = vsel %vm3516, %v4278, 0.0
    %v4283 = vsel %vm3516, %v4279, 0.0
    %4284 = vrot.lane.b32.xlu0 %v1515, 70
    %v4285 = vpop.permute.xlu0 %4284
    %4286 = vrot.lane.b32.xlu0 %v1516, 70
    %v4287 = vpop.permute.xlu0 %4286
    %4288 = vrot.lane.b32.xlu0 %v1517, 70
    %v4289 = vpop.permute.xlu0 %4288
    %4290 = vrot.lane.b32.xlu0 %v1518, 70
    %v4291 = vpop.permute.xlu0 %4290
    %v4296 = vsel %vm3516, 0.0, %v4285
    %v4297 = vsel %vm3516, 0.0, %v4287
    %v4298 = vsel %vm3516, 0.0, %v4289
    %v4299 = vsel %vm3516, 0.0, %v4291
    %v4304 = vrot.slane %v4208, 2
    %v4305 = vrot.slane %v4209, 2
    %v4306 = vsel %vm3360, %v4304, %v4305
    %v4307 = vrot.slane %v4210, 2
    %v4308 = vsel %vm3360, %v4305, %v4307
    %v4309 = vrot.slane %v4211, 2
    %v4310 = vsel %vm3360, %v4307, %v4309
    %v4320 = vrot.slane %v4236, 4
    %v4321 = vrot.slane %v4237, 4
    %v4322 = vsel %vm2008, %v4320, %v4321
    %v4323 = vrot.slane %v4238, 4
    %v4324 = vsel %vm2008, %v4321, %v4323
    %v4325 = vrot.slane %v4239, 4
    %v4326 = vsel %vm2008, %v4323, %v4325
    %v4336 = vrot.slane %v4260, 6
    %v4337 = vrot.slane %v4261, 6
    %v4338 = vsel %vm1012, %v4336, %v4337
    %v4339 = vrot.slane %v4262, 6
    %v4340 = vsel %vm1012, %v4337, %v4339
    %v4341 = vrot.slane %v4263, 6
    %v4342 = vsel %vm1012, %v4339, %v4341
    %v4351 = vrot.slane %v4296, 2
    %v4352 = vrot.slane %v4297, 2
    %v4353 = vsel %vm3360, %v4351, %v4352
    %v4354 = vrot.slane %v4298, 2
    %v4355 = vsel %vm3360, %v4352, %v4354
    %v4356 = vrot.slane %v4299, 2
    %v4357 = vsel %vm3360, %v4354, %v4356
    %v4362 = vsel %vm3360, %v4179, %v4304
    %v4363 = vsel %vm2008, %v4309, %v4320
    %v4364 = vsel %vm1012, %v4325, %v4336
    %v4365 = vsel %vm3360, %v4283, %v4351
    %v4366 = vsel %vm2008, %v4356, 0
    %4368 = vmatprep.subr.mxu0 0.0
    %4369 = vmatpush1.msra.mxu0 %v4280
    %4370 = vmatprep.subr.mxu0 0.0
    %4371 = vmatpush1.msra.mxu0 %v4342
    %4372 = vmatprep.subr.mxu0 0.0
    %4373 = vmatpush1.msra.mxu0 %v4340
    %4374 = vmatprep.subr.mxu0 0.0
    %4375 = vmatpush1.msra.mxu0 %v4338
    %4376 = vmatprep.subr.mxu0 0.0
    %4377 = vmatpush1.msra.mxu0 %v4364
    %4378 = vmatprep.subr.mxu0 0.0
    %4379 = vmatpush1.msra.mxu0 %v4326
    %4380 = vmatprep.subr.mxu0 0.0
    %4381 = vmatpush1.msra.mxu0 %v4324
    %4382 = vmatprep.subr.mxu0 0.0
    %4383 = vmatpush1.msra.mxu0 %v4322
    %4384 = vmatprep.subr.mxu0 0.0
    %4385 = vmatpush1.msra.mxu0 %v4363
    %4386 = vmatprep.subr.mxu0 0.0
    %4387 = vmatpush1.msra.mxu0 %v4310
    %4388 = vmatprep.subr.mxu0 0.0
    %4389 = vmatpush1.msra.mxu0 %v4308
    %4390 = vmatprep.subr.mxu0 0.0
    %4391 = vmatpush1.msra.mxu0 %v4306
    %4392 = vmatprep.subr.mxu0 0.0
    %4393 = vmatpush1.msra.mxu0 %v4362
    %4394 = vmatprep.subr.mxu0 0.0
    %4395 = vmatpush1.msra.mxu0 %v4178
    %4396 = vmatprep.subr.mxu0 0.0
    %4397 = vmatpush1.msra.mxu0 %v4177
    %4398 = vmatprep.subr.mxu0 0.0
    %4399 = vmatpush1.msra.mxu0 %v4176
    %4400 = vmatprep.subr.mxu0 0.0
    %4401 = vmatpush2.msra.mxu0 0.0
    %4402 = vmatprep.subr.mxu0 0.0
    %4403 = vmatpush2.msra.mxu0 0.0
    %4404 = vmatprep.subr.mxu0 0.0
    %4405 = vmatpush2.msra.mxu0 0.0
    %4406 = vmatprep.subr.mxu0 0.0
    %4407 = vmatpush2.msra.mxu0 0.0
    %4408 = vmatprep.subr.mxu0 0.0
    %4409 = vmatpush2.msra.mxu0 0.0
    %4410 = vmatprep.subr.mxu0 0.0
    %4411 = vmatpush2.msra.mxu0 0.0
    %4412 = vmatprep.subr.mxu0 0.0
    %4413 = vmatpush2.msra.mxu0 0.0
    %4414 = vmatprep.subr.mxu0 0.0
    %4415 = vmatpush2.msra.mxu0 0.0
    %4416 = vmatprep.subr.mxu0 0.0
    %4417 = vmatpush2.msra.mxu0 0.0
    %4418 = vmatprep.subr.mxu0 0.0
    %4419 = vmatpush2.msra.mxu0 %v4366
    %4420 = vmatprep.subr.mxu0 0.0
    %4421 = vmatpush2.msra.mxu0 %v4357
    %4422 = vmatprep.subr.mxu0 0.0
    %4423 = vmatpush2.msra.mxu0 %v4355
    %4424 = vmatprep.subr.mxu0 0.0
    %4425 = vmatpush2.msra.mxu0 %v4353
    %4426 = vmatprep.subr.mxu0 0.0
    %4427 = vmatpush2.msra.mxu0 %v4365
    %4428 = vmatprep.subr.mxu0 0.0
    %4429 = vmatpush2.msra.mxu0 %v4282
    %4430 = vmatprep.subr.mxu0 0.0
    %4431 = vmatpush2.msra.mxu0 %v4281
    %4432 = vmatprep.mubr.f32.mxu0 %v3709
    %4433 = vmatmul.mubr.f32.gmra.mxu0 %v3480
    %v4434 = vpop.f32.mrf.mxu0
    %v4435 = vadd.f32 0.0, %v4434
    %v4436 = vpop.f32.mrf.mxu0
    %4437 = vmatprep.mubr.f32.mxu0 %v3712
    %4438 = vmatmul.mubr.f32.gmra.mxu0 %v3482
    %v4439 = vpop.f32.mrf.mxu0
    %v4440 = vadd.f32 0.0, %v4439
    %v4441 = vpop.f32.mrf.mxu0
    %4442 = vmatprep.mubr.f32.mxu0 %v3715
    %4443 = vmatmul.mubr.f32.gmra.mxu0 %v3484
    %v4444 = vpop.f32.mrf.mxu0
    %v4445 = vadd.f32 0.0, %v4444
    %v4446 = vpop.f32.mrf.mxu0
    %4447 = vmatprep.mubr.f32.mxu0 %v3718
    %4448 = vmatmul.mubr.f32.gmra.mxu0 %v3486
    %v4449 = vpop.f32.mrf.mxu0
    %v4450 = vadd.f32 0.0, %v4449
    %v4451 = vpop.f32.mrf.mxu0
    %4452 = vmatprep.mubr.f32.mxu0 %v3721
    %4453 = vmatmul.mubr.f32.gmra.mxu0 %v3488
    %v4454 = vpop.f32.mrf.mxu0
    %v4455 = vadd.f32 0.0, %v4454
    %v4456 = vpop.f32.mrf.mxu0
    %4457 = vmatprep.mubr.f32.mxu0 %v3724
    %4458 = vmatmul.mubr.f32.gmra.mxu0 %v3490
    %v4459 = vpop.f32.mrf.mxu0
    %v4460 = vadd.f32 0.0, %v4459
    %v4461 = vpop.f32.mrf.mxu0
    %4462 = vmatprep.mubr.f32.mxu0 %v3727
    %4463 = vmatmul.mubr.f32.gmra.mxu0 %v3492
    %v4464 = vpop.f32.mrf.mxu0
    %v4465 = vadd.f32 0.0, %v4464
    %v4466 = vpop.f32.mrf.mxu0
    %4467 = vmatprep.mubr.f32.mxu0 %v3730
    %4468 = vmatmul.mubr.f32.gmra.mxu0 %v3494
    %v4469 = vpop.f32.mrf.mxu0
    %v4470 = vadd.f32 0.0, %v4469
    %v4471 = vpop.f32.mrf.mxu0
    %4472 = vdwg.mxu0
    %v4473 = vmax.f32 %v4152, %v4435
    %v4474 = vmax.f32 %v4153, %v4440
    %v4475 = vmax.f32 %v4154, %v4445
    %v4476 = vmax.f32 %v4155, %v4450
    %v4477 = vmax.f32 %v4156, %v4455
    %v4478 = vmax.f32 %v4157, %v4460
    %v4479 = vmax.f32 %v4158, %v4465
    %v4480 = vmax.f32 %v4159, %v4470
    %v4481 = vld [vmem:[%s1] sm:$0xff]
    %v4482 = vld [vmem:[%s1 + $0x8] sm:$0xff]
    %v4483 = vld [vmem:[%s1 + $0x10] sm:$0xff]
    %v4484 = vld [vmem:[%s1 + $0x18] sm:$0xff]
    %v4485 = vld [vmem:[%s1 + $0x20] sm:$0xff]
    %v4486 = vld [vmem:[%s1 + $0x28] sm:$0xff]
    %v4487 = vld [vmem:[%s1 + $0x30] sm:$0xff]
    %v4488 = vld [vmem:[%s1 + $0x38] sm:$0xff]
    %v4489 = vld [vmem:[%s1 + $0x40] sm:$0xff]
    %v4490 = vld [vmem:[%s1 + $0x48] sm:$0xff]
    %v4491 = vld [vmem:[%s1 + $0x50] sm:$0xf]
    %v4492 = vld [vmem:[%s2] sm:$0x1]
    %v4494 = vlaneseq
    %v4495 = vshrl.u32 %v4494, 7
    %v4496 = vsub.s32 0, %v4495
    %v4497 = vrot.slane %v4492, %v4496
    %vm4499 = vcmask 687104
    %v4501 = vsel %vm4499, %v4473, 0
    %v4504 = vsel %vm4499, %v4474, 0
    %v4507 = vsel %vm4499, %v4475, 0
    %v4510 = vsel %vm4499, %v4476, 0
    %v4513 = vsel %vm4499, %v4477, 0
    %v4516 = vsel %vm4499, %v4478, 0
    %v4519 = vsel %vm4499, %v4479, 0
    %v4522 = vsel %vm4499, %v4480, 0
    %v4525 = vsel %vm2008, %v4491, 0
    %4527 = vmatprep.subr.mxu0 0.0
    %4528 = vmatpush1.msra.mxu0 0.0
    %4529 = vmatprep.subr.mxu0 0.0
    %4530 = vmatpush1.msra.mxu0 0.0
    %4531 = vmatprep.subr.mxu0 0.0
    %4532 = vmatpush1.msra.mxu0 0.0
    %4533 = vmatprep.subr.mxu0 0.0
    %4534 = vmatpush1.msra.mxu0 0.0
    %4535 = vmatprep.subr.mxu0 0.0
    %4536 = vmatpush1.msra.mxu0 0.0
    %4537 = vmatprep.subr.mxu0 0.0
    %4538 = vmatpush1.msra.mxu0 %v4525
    %4539 = vmatprep.subr.mxu0 0.0
    %4540 = vmatpush1.msra.mxu0 %v4490
    %4541 = vmatprep.subr.mxu0 0.0
    %4542 = vmatpush1.msra.mxu0 %v4489
    %4543 = vmatprep.subr.mxu0 0.0
    %4544 = vmatpush1.msra.mxu0 %v4488
    %4545 = vmatprep.subr.mxu0 0.0
    %4546 = vmatpush1.msra.mxu0 %v4487
    %4547 = vmatprep.subr.mxu0 0.0
    %4548 = vmatpush1.msra.mxu0 %v4486
    %4549 = vmatprep.subr.mxu0 0.0
    %4550 = vmatpush1.msra.mxu0 %v4485
    %4551 = vmatprep.subr.mxu0 0.0
    %4552 = vmatpush1.msra.mxu0 %v4484
    %4553 = vmatprep.subr.mxu0 0.0
    %4554 = vmatpush1.msra.mxu0 %v4483
    %4555 = vmatprep.subr.mxu0 0.0
    %4556 = vmatpush1.msra.mxu0 %v4482
    %4557 = vmatprep.subr.mxu0 0.0
    %4558 = vmatpush1.msra.mxu0 %v4481
    %4559 = vmatprep.subr.mxu0 0.0
    %4560 = vmatpush2.msra.mxu0 0.0
    %4561 = vmatprep.subr.mxu0 0.0
    %4562 = vmatpush2.msra.mxu0 0.0
    %4563 = vmatprep.subr.mxu0 0.0
    %4564 = vmatpush2.msra.mxu0 0.0
    %4565 = vmatprep.subr.mxu0 0.0
    %4566 = vmatpush2.msra.mxu0 0.0
    %4567 = vmatprep.subr.mxu0 0.0
    %4568 = vmatpush2.msra.mxu0 0.0
    %4569 = vmatprep.subr.mxu0 0.0
    %4570 = vmatpush2.msra.mxu0 0.0
    %4571 = vmatprep.subr.mxu0 0.0
    %4572 = vmatpush2.msra.mxu0 0.0
    %4573 = vmatprep.subr.mxu0 0.0
    %4574 = vmatpush2.msra.mxu0 0.0
    %4575 = vmatprep.subr.mxu0 0.0
    %4576 = vmatpush2.msra.mxu0 0.0
    %4577 = vmatprep.subr.mxu0 0.0
    %4578 = vmatpush2.msra.mxu0 0.0
    %4579 = vmatprep.subr.mxu0 0.0
    %4580 = vmatpush2.msra.mxu0 0.0
    %4581 = vmatprep.subr.mxu0 0.0
    %4582 = vmatpush2.msra.mxu0 0.0
    %4583 = vmatprep.subr.mxu0 0.0
    %4584 = vmatpush2.msra.mxu0 0.0
    %4585 = vmatprep.subr.mxu0 0.0
    %4586 = vmatpush2.msra.mxu0 0.0
    %4587 = vmatprep.subr.mxu0 0.0
    %4588 = vmatpush2.msra.mxu0 0.0
    %4589 = vmatprep.subr.mxu0 0.0
    %4590 = vmatpush2.msra.mxu0 0.0
    %4591 = vmatprep.mubr.f32.mxu0 0.0
    %4592 = vmatmul.mubr.f32.gmra.mxu0 %v4501
    %v4593 = vpop.f32.mrf.mxu0
    %v4594 = vadd.f32 %v4497, %v4593
    %v4595 = vpop.f32.mrf.mxu0
    %4596 = vmatprep.mubr.f32.mxu0 0.0
    %4597 = vmatmul.mubr.f32.gmra.mxu0 %v4504
    %v4598 = vpop.f32.mrf.mxu0
    %v4599 = vadd.f32 %v4497, %v4598
    %v4600 = vpop.f32.mrf.mxu0
    %4601 = vmatprep.mubr.f32.mxu0 0.0
    %4602 = vmatmul.mubr.f32.gmra.mxu0 %v4507
    %v4603 = vpop.f32.mrf.mxu0
    %v4604 = vadd.f32 %v4497, %v4603
    %v4605 = vpop.f32.mrf.mxu0
    %4606 = vmatprep.mubr.f32.mxu0 0.0
    %4607 = vmatmul.mubr.f32.gmra.mxu0 %v4510
    %v4608 = vpop.f32.mrf.mxu0
    %v4609 = vadd.f32 %v4497, %v4608
    %v4610 = vpop.f32.mrf.mxu0
    %4611 = vmatprep.mubr.f32.mxu0 0.0
    %4612 = vmatmul.mubr.f32.gmra.mxu0 %v4513
    %v4613 = vpop.f32.mrf.mxu0
    %v4614 = vadd.f32 %v4497, %v4613
    %v4615 = vpop.f32.mrf.mxu0
    %4616 = vmatprep.mubr.f32.mxu0 0.0
    %4617 = vmatmul.mubr.f32.gmra.mxu0 %v4516
    %v4618 = vpop.f32.mrf.mxu0
    %v4619 = vadd.f32 %v4497, %v4618
    %v4620 = vpop.f32.mrf.mxu0
    %4621 = vmatprep.mubr.f32.mxu0 0.0
    %4622 = vmatmul.mubr.f32.gmra.mxu0 %v4519
    %v4623 = vpop.f32.mrf.mxu0
    %v4624 = vadd.f32 %v4497, %v4623
    %v4625 = vpop.f32.mrf.mxu0
    %4626 = vmatprep.mubr.f32.mxu0 0.0
    %4627 = vmatmul.mubr.f32.gmra.mxu0 %v4522
    %v4628 = vpop.f32.mrf.mxu0
    %v4629 = vadd.f32 %v4497, %v4628
    %v4630 = vpop.f32.mrf.mxu0
    %4631 = vdwg.mxu0
    %vm4632 = vcmask 48128
    %4633 = vst.msk [vmem:[%s7] sm:$0xff] %vm4632, %v4594
    %4634 = vst.msk [vmem:[%s7 + $0x8] sm:$0xff] %vm4632, %v4599
    %4635 = vst.msk [vmem:[%s7 + $0x10] sm:$0xff] %vm4632, %v4604
    %4636 = vst.msk [vmem:[%s7 + $0x18] sm:$0xff] %vm4632, %v4609
    %4637 = vst.msk [vmem:[%s7 + $0x20] sm:$0xff] %vm4632, %v4614
    %4638 = vst.msk [vmem:[%s7 + $0x28] sm:$0xff] %vm4632, %v4619
    %4639 = vst.msk [vmem:[%s7 + $0x30] sm:$0xff] %vm4632, %v4624
    %4640 = vst.msk [vmem:[%s7 + $0x38] sm:$0xff] %vm4632, %v4629
    // Predicated region
    $region46: #{tpu_custom_call.1} parent=1 // pred_check
      _
    $region47: #{tpu_custom_call.1} parent=1 // pred_check_branch
      %4642 = sbr.rel (0) target = $region49
    $region48: #{tpu_custom_call.1} parent=1 // pred_region
      _
    $region49: #{tpu_custom_call.1} parent=1 // pred_fallthru
      _
    // Predicated region
    $region50: #{tpu_custom_call.1} parent=1 // pred_check
      _
    $region51: #{tpu_custom_call.1} parent=1 // pred_check_branch
      %4644 = sbr.rel (0) target = $region53
    $region52: #{tpu_custom_call.1} parent=1 // pred_region
      _
    $region53: #{tpu_custom_call.1} parent=1 // pred_fallthru
      _
    %4645 = vsyncpa [#allocation3], 1
    %4646 = vsyncpa [#allocation5], 1
    %4647 = vsyncpa [#allocation8], 1

</llo_original>
